<compile_context>
chip_gen: v6e
topology: v6e:2x2x1
jax: 0.10.0
libtpu: 0.0.40
codegen_flags: <defaults>
</compile_context>

<pallas_src>
import jax
import jax.numpy as jnp
import numpy as np
from jax.experimental import pallas as pl
from jax.experimental.pallas import tpu as pltpu

N_CHAN = 9          # args['num_chan'] default
N_CLASSES = 6       # args['num_class'] default
SEQ_LEN = 128       # implied by Linear(3968, ...) : 64 * ((128 - 4) // 2) == 3968
C_MID = 64
L1 = SEQ_LEN - 2    # 126 (after conv1, k=3, valid)
L2 = L1 - 2         # 124 (after conv2)
LP = L2 // 2        # 62  (after maxpool k=2 s=2)
FLAT = C_MID * LP   # 3968
HIDDEN = 100
BB = 8              # samples processed per features grid step (lane-stacked)
W_LANES = BB * SEQ_LEN


# ---------------------------------------------------------------------------
# Pallas kernels
# ---------------------------------------------------------------------------
def _shift_left(v, k):
    """v[:, j] -> v[:, j + k] (circular; wrapped columns land only in unused tail positions)."""
    if k == 0:
        return v
    return pltpu.roll(v, shift=W_LANES - k, axis=1)


def _features_kernel(x_ref, w1_ref, b1_ref, w2_ref, b2_ref, sel_ref, o_ref):
    # x_ref: (9, BB*128) — BB samples side by side along lanes, stride 128 per sample.
    x = x_ref[...]
    x1 = _shift_left(x, 1)
    x2 = _shift_left(x, 2)

    # Conv1d(9 -> 64, k=3, valid): 3 shifted matmuls with a wide, lane-aligned N.
    acc = jnp.dot(w1_ref[0], x, preferred_element_type=jnp.float32)
    acc = acc + jnp.dot(w1_ref[1], x1, preferred_element_type=jnp.float32)
    acc = acc + jnp.dot(w1_ref[2], x2, preferred_element_type=jnp.float32)
    h1 = jnp.maximum(acc + b1_ref[...], 0.0)          # (64, BB*128); cols 126/127 per chunk junk

    # Conv1d(64 -> 64, k=3, valid): single im2col matmul (64,192)x(192,BB*128).
    h192 = jnp.concatenate([h1, _shift_left(h1, 1), _shift_left(h1, 2)], axis=0)
    h2 = jnp.maximum(
        jnp.dot(w2_ref[...], h192, preferred_element_type=jnp.float32) + b2_ref[...], 0.0)
    # TODO(synk): nn.Dropout(p=0.6) is identity in eval mode; training-mode mask not implemented.

    # MaxPool1d(kernel_size=2, stride=2): pairwise max via roll (XLU) + VPU max, then keep the
    # even columns of each per-sample chunk with one hoisted 0/1 selection matmul per sample.
    h2m = jnp.maximum(h2, _shift_left(h2, 1))         # valid at even cols 0..122 per chunk
    sel = sel_ref[...]                                # (128, 62); rows >= 124 and odd rows are 0
    for s in range(BB):                               # statically unrolled, tiny per-sample matmul
        chunk = h2m[:, s * SEQ_LEN:(s + 1) * SEQ_LEN]                 # (64, 128), lane-aligned
        o_ref[s] = jnp.dot(chunk, sel,
                           preferred_element_type=jnp.float32).astype(o_ref.dtype)  # (64, 62)


def _classifier_kernel(x_ref, w1_ref, b1_ref, w2_ref, b2_ref, o_ref):
    h = jnp.dot(x_ref[...], w1_ref[...], preferred_element_type=jnp.float32)
    h = jnp.maximum(h + b1_ref[...], 0.0)                       # (TB, 100)
    o = jnp.dot(h, w2_ref[...], preferred_element_type=jnp.float32) + b2_ref[...]
    o_ref[...] = o.astype(o_ref.dtype)                          # (TB, n_classes)


# ---------------------------------------------------------------------------
# Wrapper (glue: batch padding, layout prep, flatten, optional CE loss)
# ---------------------------------------------------------------------------
def _pick_batch_tile(n):
    for c in (256, 128, 64, 32, 16, 8):
        if n % c == 0:
            return c
    return n


def har_cnn_forward(params, data):
    inputs = data["inputs"]                       # (B, 9, 128) float32
    labels = data.get("labels", None)
    B = inputs.shape[0]

    # Pad batch to a multiple of BB so the features grid divides evenly.
    Bp = ((B + BB - 1) // BB) * BB
    if Bp != B:
        pad = jnp.zeros((Bp - B, N_CHAN, SEQ_LEN), inputs.dtype)
        inputs_p = jnp.concatenate([inputs, pad], axis=0)
    else:
        inputs_p = inputs

    # Lane-stacked layout: x2d[c, b*128 + j] = inputs[b, c, j].
    x2d = inputs_p.transpose(1, 0, 2).reshape(N_CHAN, Bp * SEQ_LEN).astype(jnp.float32)

    # Conv weights: w1k[k] = conv1_w[:, :, k]; w2c[o, k*64 + i] = conv2_w[o, i, k] (im2col order).
    w1k = jnp.transpose(params["conv1_w"], (2, 0, 1))                              # (3, 64, 9)
    w2c = jnp.transpose(params["conv2_w"], (0, 2, 1)).reshape(C_MID, 3 * C_MID)    # (64, 192)
    b1 = params["conv1_b"].reshape(C_MID, 1)
    b2 = params["conv2_b"].reshape(C_MID, 1)

    # Hoisted even-column selection matrix for MaxPool (sel[2l, l] = 1, everything else 0).
    sel_np = np.zeros((SEQ_LEN, LP), np.float32)
    sel_np[2 * np.arange(LP), np.arange(LP)] = 1.0
    sel = jnp.asarray(sel_np)

    pooled = pl.pallas_call(
        _features_kernel,
        out_shape=jax.ShapeDtypeStruct((Bp, C_MID, LP), jnp.float32),
        grid_spec=pltpu.PrefetchScalarGridSpec(
            num_scalar_prefetch=0,
            grid=(Bp // BB,),
            in_specs=[
                pl.BlockSpec((N_CHAN, W_LANES), lambda i: (0, i)),
                pl.BlockSpec((3, C_MID, N_CHAN), lambda i: (0, 0, 0)),
                pl.BlockSpec((C_MID, 1), lambda i: (0, 0)),
                pl.BlockSpec((C_MID, 3 * C_MID), lambda i: (0, 0)),
                pl.BlockSpec((C_MID, 1), lambda i: (0, 0)),
                pl.BlockSpec((SEQ_LEN, LP), lambda i: (0, 0)),
            ],
            out_specs=pl.BlockSpec((BB, C_MID, LP), lambda i: (i, 0, 0)),
        ),
        compiler_params=pltpu.CompilerParams(
            dimension_semantics=("parallel",)),
    )(x2d, w1k, b1, w2c, b2, sel)

    # Flatten: matches torch .view((B, -1)) on a contiguous NCL tensor (channel-major).
    flat = pooled.reshape(Bp, FLAT)

    fc1_wt = params["fc1_w"].T                                  # (3968, 100)
    fc2_wt = params["fc2_w"].T                                  # (100, 6)
    fc1_b = params["fc1_b"].reshape(1, HIDDEN)
    fc2_b = params["fc2_b"].reshape(1, N_CLASSES)

    TB = _pick_batch_tile(Bp)
    logits_p = pl.pallas_call(
        _classifier_kernel,
        out_shape=jax.ShapeDtypeStruct((Bp, N_CLASSES), jnp.float32),
        grid_spec=pltpu.PrefetchScalarGridSpec(
            num_scalar_prefetch=0,
            grid=(Bp // TB,),
            in_specs=[
                pl.BlockSpec((TB, FLAT), lambda i: (i, 0)),
                pl.BlockSpec((FLAT, HIDDEN), lambda i: (0, 0)),
                pl.BlockSpec((1, HIDDEN), lambda i: (0, 0)),
                pl.BlockSpec((HIDDEN, N_CLASSES), lambda i: (0, 0)),
                pl.BlockSpec((1, N_CLASSES), lambda i: (0, 0)),
            ],
            out_specs=pl.BlockSpec((TB, N_CLASSES), lambda i: (i, 0)),
        ),
        compiler_params=pltpu.CompilerParams(
            dimension_semantics=("parallel",)),
    )(flat, fc1_wt, fc1_b, fc2_wt, fc2_b)

    logits = logits_p[:B]

    if labels is not None:
        # CrossEntropyLoss (mean reduction) — plain-JAX glue on the (B, 6) logits.
        logp = jax.nn.log_softmax(logits, axis=-1)
        loss = -jnp.mean(jnp.take_along_axis(logp, labels[:, None], axis=-1))
        return logits, loss
    return logits


# ---------------------------------------------------------------------------
# Deterministic parameter init (PyTorch-style uniform(-1/sqrt(fan_in), 1/sqrt(fan_in)))
# ---------------------------------------------------------------------------
def init_params(key):
    ks = jax.random.split(key, 8)

    def u(k, shape, fan_in):
        bound = 1.0 / np.sqrt(fan_in)
        return jax.random.uniform(k, shape, jnp.float32, -bound, bound)

    return {
        "conv1_w": u(ks[0], (C_MID, N_CHAN, 3), N_CHAN * 3),
        "conv1_b": u(ks[1], (C_MID,), N_CHAN * 3),
        "conv2_w": u(ks[2], (C_MID, C_MID, 3), C_MID * 3),
        "conv2_b": u(ks[3], (C_MID,), C_MID * 3),
        "fc1_w": u(ks[4], (HIDDEN, FLAT), FLAT),
        "fc1_b": u(ks[5], (HIDDEN,), FLAT),
        "fc2_w": u(ks[6], (N_CLASSES, HIDDEN), HIDDEN),
        "fc2_b": u(ks[7], (N_CLASSES,), HIDDEN),
    }


# ---------------------------------------------------------------------------
# Plain-JAX reference (for a sanity check against the Pallas kernels)
# ---------------------------------------------------------------------------
def reference_forward(params, inputs):
    def conv1d(x, w, b):
        out = jax.lax.conv_general_dilated(
            x, w, window_strides=(1,), padding="VALID",
            dimension_numbers=("NCH", "OIH", "NCH"))
        return out + b[None, :, None]

    h = jax.nn.relu(conv1d(inputs, params["conv1_w"], params["conv1_b"]))
    h = jax.nn.relu(conv1d(h, params["conv2_w"], params["conv2_b"]))
    B, C, L = h.shape
    h = jnp.max(h.reshape(B, C, L // 2, 2), axis=-1)
    h = h.reshape(B, -1)
    h = jax.nn.relu(h @ params["fc1_w"].T + params["fc1_b"])
    return h @ params["fc2_w"].T + params["fc2_b"]


if __name__ == "__main__":
    key = jax.random.PRNGKey(0)
    kp, kx, kl = jax.random.split(key, 3)

    params = init_params(kp)
    batch = 2
    inputs = jax.random.normal(kx, (batch, N_CHAN, SEQ_LEN), jnp.float32)
    labels = jax.random.randint(kl, (batch,), 0, N_CLASSES)

    logits, loss = har_cnn_forward(params, {"inputs": inputs, "labels": labels})
    logits = jax.block_until_ready(logits)
    loss = jax.block_until_ready(loss)

    ref = jax.block_until_ready(reference_forward(params, inputs))
    if not np.allclose(np.asarray(logits), np.asarray(ref), rtol=0.1, atol=0.1):
        raise AssertionError("Pallas output deviates from JAX reference")
    if not np.isfinite(float(loss)):
        raise AssertionError("non-finite loss")

    print("KERNEL_OK")
</pallas_src>

<mosaic_0001>
module attributes {stable_mosaic.version = 11 : i64} {
  func.func @_features_kernel(%arg0: i32, %arg1: memref<9x1024xf32, #tpu.memory_space<vmem>>, %arg2: memref<3x64x9xf32, #tpu.memory_space<vmem>>, %arg3: memref<64x1xf32, #tpu.memory_space<vmem>>, %arg4: memref<64x192xf32, #tpu.memory_space<vmem>>, %arg5: memref<64x1xf32, #tpu.memory_space<vmem>>, %arg6: memref<128x62xf32, #tpu.memory_space<vmem>>, %arg7: memref<8x64x62xf32, #tpu.memory_space<vmem>>) attributes {dimension_semantics = [#tpu.dimension_semantics<parallel>], iteration_bounds = array<i64: 1>, scalar_prefetch = 0 : i64, scratch_operands = 0 : i64, tpu.core_type = #tpu.core_type<tc>, window_params = [{transform_indices = @transform_0, window_bounds = array<i64: 9, 1024>}, {pipeline_mode = #tpu.pipeline_mode<synchronous>, transform_indices = @transform_1, window_bounds = array<i64: 3, 64, 9>}, {pipeline_mode = #tpu.pipeline_mode<synchronous>, transform_indices = @transform_2, window_bounds = array<i64: 64, 1>}, {pipeline_mode = #tpu.pipeline_mode<synchronous>, transform_indices = @transform_3, window_bounds = array<i64: 64, 192>}, {pipeline_mode = #tpu.pipeline_mode<synchronous>, transform_indices = @transform_4, window_bounds = array<i64: 64, 1>}, {pipeline_mode = #tpu.pipeline_mode<synchronous>, transform_indices = @transform_5, window_bounds = array<i64: 128, 62>}, {transform_indices = @transform_6, window_bounds = array<i64: 8, 64, 62>}]} {
    %c0 = arith.constant 0 : index
    %c0_0 = arith.constant 0 : index
    %0 = vector.load %arg1[%c0, %c0_0] : memref<9x1024xf32, #tpu.memory_space<vmem>>, vector<9x1024xf32>
    %c1023_i32 = arith.constant 1023 : i32
    %1 = tpu.dynamic_rotate %0 by %c1023_i32 dim 1 : vector<9x1024xf32>, i32 -> vector<9x1024xf32>
    %c1022_i32 = arith.constant 1022 : i32
    %2 = tpu.dynamic_rotate %0 by %c1022_i32 dim 1 : vector<9x1024xf32>, i32 -> vector<9x1024xf32>
    %c0_1 = arith.constant 0 : index
    %c0_2 = arith.constant 0 : index
    %c0_3 = arith.constant 0 : index
    %3 = vector.load %arg2[%c0_1, %c0_2, %c0_3] : memref<3x64x9xf32, #tpu.memory_space<vmem>>, vector<1x64x9xf32>
    %4 = vector.shape_cast %3 : vector<1x64x9xf32> to vector<64x9xf32>
    %cst = arith.constant dense<0.000000e+00> : vector<64x1024xf32>
    %5 = tpu.matmul %4, %0, %cst {dimension_numbers = #tpu.dot_dimension_numbers<[1], [0], [0], [1], [0, 0, 1, 1], [], []>} : vector<64x9xf32>, vector<9x1024xf32>, vector<64x1024xf32> -> vector<64x1024xf32>
    %c1 = arith.constant 1 : index
    %c0_4 = arith.constant 0 : index
    %c0_5 = arith.constant 0 : index
    %6 = vector.load %arg2[%c1, %c0_4, %c0_5] : memref<3x64x9xf32, #tpu.memory_space<vmem>>, vector<1x64x9xf32>
    %7 = vector.shape_cast %6 : vector<1x64x9xf32> to vector<64x9xf32>
    %cst_6 = arith.constant dense<0.000000e+00> : vector<64x1024xf32>
    %8 = tpu.matmul %7, %1, %cst_6 {dimension_numbers = #tpu.dot_dimension_numbers<[1], [0], [0], [1], [0, 0, 1, 1], [], []>} : vector<64x9xf32>, vector<9x1024xf32>, vector<64x1024xf32> -> vector<64x1024xf32>
    %9 = arith.addf %5, %8 : vector<64x1024xf32>
    %c2 = arith.constant 2 : index
    %c0_7 = arith.constant 0 : index
    %c0_8 = arith.constant 0 : index
    %10 = vector.load %arg2[%c2, %c0_7, %c0_8] : memref<3x64x9xf32, #tpu.memory_space<vmem>>, vector<1x64x9xf32>
    %11 = vector.shape_cast %10 : vector<1x64x9xf32> to vector<64x9xf32>
    %cst_9 = arith.constant dense<0.000000e+00> : vector<64x1024xf32>
    %12 = tpu.matmul %11, %2, %cst_9 {dimension_numbers = #tpu.dot_dimension_numbers<[1], [0], [0], [1], [0, 0, 1, 1], [], []>} : vector<64x9xf32>, vector<9x1024xf32>, vector<64x1024xf32> -> vector<64x1024xf32>
    %13 = arith.addf %9, %12 : vector<64x1024xf32>
    %c0_10 = arith.constant 0 : index
    %c0_11 = arith.constant 0 : index
    %14 = vector.load %arg3[%c0_10, %c0_11] : memref<64x1xf32, #tpu.memory_space<vmem>>, vector<64x1xf32>
    %15 = vector.broadcast %14 : vector<64x1xf32> to vector<64x1024xf32>
    %16 = arith.addf %13, %15 : vector<64x1024xf32>
    %cst_12 = arith.constant 0.000000e+00 : f32
    %17 = vector.broadcast %cst_12 : f32 to vector<64x1024xf32>
    %18 = arith.maximumf %16, %17 : vector<64x1024xf32>
    %c1023_i32_13 = arith.constant 1023 : i32
    %19 = tpu.dynamic_rotate %18 by %c1023_i32_13 dim 1 : vector<64x1024xf32>, i32 -> vector<64x1024xf32>
    %c1022_i32_14 = arith.constant 1022 : i32
    %20 = tpu.dynamic_rotate %18 by %c1022_i32_14 dim 1 : vector<64x1024xf32>, i32 -> vector<64x1024xf32>
    %21 = tpu.concatenate %18, %19, %20 in 0 : vector<64x1024xf32>, vector<64x1024xf32>, vector<64x1024xf32> -> vector<192x1024xf32>
    %c0_15 = arith.constant 0 : index
    %c0_16 = arith.constant 0 : index
    %22 = vector.load %arg4[%c0_15, %c0_16] : memref<64x192xf32, #tpu.memory_space<vmem>>, vector<64x192xf32>
    %cst_17 = arith.constant dense<0.000000e+00> : vector<64x1024xf32>
    %23 = tpu.matmul %22, %21, %cst_17 {dimension_numbers = #tpu.dot_dimension_numbers<[1], [0], [0], [1], [0, 0, 1, 1], [], []>} : vector<64x192xf32>, vector<192x1024xf32>, vector<64x1024xf32> -> vector<64x1024xf32>
    %c0_18 = arith.constant 0 : index
    %c0_19 = arith.constant 0 : index
    %24 = vector.load %arg5[%c0_18, %c0_19] : memref<64x1xf32, #tpu.memory_space<vmem>>, vector<64x1xf32>
    %25 = vector.broadcast %24 : vector<64x1xf32> to vector<64x1024xf32>
    %26 = arith.addf %23, %25 : vector<64x1024xf32>
    %cst_20 = arith.constant 0.000000e+00 : f32
    %27 = vector.broadcast %cst_20 : f32 to vector<64x1024xf32>
    %28 = arith.maximumf %26, %27 : vector<64x1024xf32>
    %c1023_i32_21 = arith.constant 1023 : i32
    %29 = tpu.dynamic_rotate %28 by %c1023_i32_21 dim 1 : vector<64x1024xf32>, i32 -> vector<64x1024xf32>
    %30 = arith.maximumf %28, %29 : vector<64x1024xf32>
    %c0_22 = arith.constant 0 : index
    %c0_23 = arith.constant 0 : index
    %31 = vector.load %arg6[%c0_22, %c0_23] : memref<128x62xf32, #tpu.memory_space<vmem>>, vector<128x62xf32>
    %32 = vector.extract_strided_slice %30 {offsets = [0, 0], sizes = [64, 128], strides = [1, 1]} : vector<64x1024xf32> to vector<64x128xf32>
    %cst_24 = arith.constant dense<0.000000e+00> : vector<64x62xf32>
    %33 = tpu.matmul %32, %31, %cst_24 {dimension_numbers = #tpu.dot_dimension_numbers<[1], [0], [0], [1], [0, 0, 1, 1], [], []>} : vector<64x128xf32>, vector<128x62xf32>, vector<64x62xf32> -> vector<64x62xf32>
    %c0_25 = arith.constant 0 : index
    %c0_26 = arith.constant 0 : index
    %c0_27 = arith.constant 0 : index
    %34 = vector.load %arg7[%c0_25, %c0_26, %c0_27] : memref<8x64x62xf32, #tpu.memory_space<vmem>>, vector<1x64x62xf32>
    %35 = vector.shape_cast %34 : vector<1x64x62xf32> to vector<64x62xf32>
    %36 = vector.shape_cast %33 : vector<64x62xf32> to vector<1x64x62xf32>
    tpu.vector_store %arg7[%c0_25, %c0_26, %c0_27], %36 {strides = array<i32>} : memref<8x64x62xf32, #tpu.memory_space<vmem>>, vector<1x64x62xf32>,
    %37 = vector.extract_strided_slice %30 {offsets = [0, 128], sizes = [64, 128], strides = [1, 1]} : vector<64x1024xf32> to vector<64x128xf32>
    %cst_28 = arith.constant dense<0.000000e+00> : vector<64x62xf32>
    %38 = tpu.matmul %37, %31, %cst_28 {dimension_numbers = #tpu.dot_dimension_numbers<[1], [0], [0], [1], [0, 0, 1, 1], [], []>} : vector<64x128xf32>, vector<128x62xf32>, vector<64x62xf32> -> vector<64x62xf32>
    %c1_29 = arith.constant 1 : index
    %c0_30 = arith.constant 0 : index
    %c0_31 = arith.constant 0 : index
    %39 = vector.load %arg7[%c1_29, %c0_30, %c0_31] : memref<8x64x62xf32, #tpu.memory_space<vmem>>, vector<1x64x62xf32>
    %40 = vector.shape_cast %39 : vector<1x64x62xf32> to vector<64x62xf32>
    %41 = vector.shape_cast %38 : vector<64x62xf32> to vector<1x64x62xf32>
    tpu.vector_store %arg7[%c1_29, %c0_30, %c0_31], %41 {strides = array<i32>} : memref<8x64x62xf32, #tpu.memory_space<vmem>>, vector<1x64x62xf32>,
    %42 = vector.extract_strided_slice %30 {offsets = [0, 256], sizes = [64, 128], strides = [1, 1]} : vector<64x1024xf32> to vector<64x128xf32>
    %cst_32 = arith.constant dense<0.000000e+00> : vector<64x62xf32>
    %43 = tpu.matmul %42, %31, %cst_32 {dimension_numbers = #tpu.dot_dimension_numbers<[1], [0], [0], [1], [0, 0, 1, 1], [], []>} : vector<64x128xf32>, vector<128x62xf32>, vector<64x62xf32> -> vector<64x62xf32>
    %c2_33 = arith.constant 2 : index
    %c0_34 = arith.constant 0 : index
    %c0_35 = arith.constant 0 : index
    %44 = vector.load %arg7[%c2_33, %c0_34, %c0_35] : memref<8x64x62xf32, #tpu.memory_space<vmem>>, vector<1x64x62xf32>
    %45 = vector.shape_cast %44 : vector<1x64x62xf32> to vector<64x62xf32>
    %46 = vector.shape_cast %43 : vector<64x62xf32> to vector<1x64x62xf32>
    tpu.vector_store %arg7[%c2_33, %c0_34, %c0_35], %46 {strides = array<i32>} : memref<8x64x62xf32, #tpu.memory_space<vmem>>, vector<1x64x62xf32>,
    %47 = vector.extract_strided_slice %30 {offsets = [0, 384], sizes = [64, 128], strides = [1, 1]} : vector<64x1024xf32> to vector<64x128xf32>
    %cst_36 = arith.constant dense<0.000000e+00> : vector<64x62xf32>
    %48 = tpu.matmul %47, %31, %cst_36 {dimension_numbers = #tpu.dot_dimension_numbers<[1], [0], [0], [1], [0, 0, 1, 1], [], []>} : vector<64x128xf32>, vector<128x62xf32>, vector<64x62xf32> -> vector<64x62xf32>
    %c3 = arith.constant 3 : index
    %c0_37 = arith.constant 0 : index
    %c0_38 = arith.constant 0 : index
    %49 = vector.load %arg7[%c3, %c0_37, %c0_38] : memref<8x64x62xf32, #tpu.memory_space<vmem>>, vector<1x64x62xf32>
    %50 = vector.shape_cast %49 : vector<1x64x62xf32> to vector<64x62xf32>
    %51 = vector.shape_cast %48 : vector<64x62xf32> to vector<1x64x62xf32>
    tpu.vector_store %arg7[%c3, %c0_37, %c0_38], %51 {strides = array<i32>} : memref<8x64x62xf32, #tpu.memory_space<vmem>>, vector<1x64x62xf32>,
    %52 = vector.extract_strided_slice %30 {offsets = [0, 512], sizes = [64, 128], strides = [1, 1]} : vector<64x1024xf32> to vector<64x128xf32>
    %cst_39 = arith.constant dense<0.000000e+00> : vector<64x62xf32>
    %53 = tpu.matmul %52, %31, %cst_39 {dimension_numbers = #tpu.dot_dimension_numbers<[1], [0], [0], [1], [0, 0, 1, 1], [], []>} : vector<64x128xf32>, vector<128x62xf32>, vector<64x62xf32> -> vector<64x62xf32>
    %c4 = arith.constant 4 : index
    %c0_40 = arith.constant 0 : index
    %c0_41 = arith.constant 0 : index
    %54 = vector.load %arg7[%c4, %c0_40, %c0_41] : memref<8x64x62xf32, #tpu.memory_space<vmem>>, vector<1x64x62xf32>
    %55 = vector.shape_cast %54 : vector<1x64x62xf32> to vector<64x62xf32>
    %56 = vector.shape_cast %53 : vector<64x62xf32> to vector<1x64x62xf32>
    tpu.vector_store %arg7[%c4, %c0_40, %c0_41], %56 {strides = array<i32>} : memref<8x64x62xf32, #tpu.memory_space<vmem>>, vector<1x64x62xf32>,
    %57 = vector.extract_strided_slice %30 {offsets = [0, 640], sizes = [64, 128], strides = [1, 1]} : vector<64x1024xf32> to vector<64x128xf32>
    %cst_42 = arith.constant dense<0.000000e+00> : vector<64x62xf32>
    %58 = tpu.matmul %57, %31, %cst_42 {dimension_numbers = #tpu.dot_dimension_numbers<[1], [0], [0], [1], [0, 0, 1, 1], [], []>} : vector<64x128xf32>, vector<128x62xf32>, vector<64x62xf32> -> vector<64x62xf32>
    %c5 = arith.constant 5 : index
    %c0_43 = arith.constant 0 : index
    %c0_44 = arith.constant 0 : index
    %59 = vector.load %arg7[%c5, %c0_43, %c0_44] : memref<8x64x62xf32, #tpu.memory_space<vmem>>, vector<1x64x62xf32>
    %60 = vector.shape_cast %59 : vector<1x64x62xf32> to vector<64x62xf32>
    %61 = vector.shape_cast %58 : vector<64x62xf32> to vector<1x64x62xf32>
    tpu.vector_store %arg7[%c5, %c0_43, %c0_44], %61 {strides = array<i32>} : memref<8x64x62xf32, #tpu.memory_space<vmem>>, vector<1x64x62xf32>,
    %62 = vector.extract_strided_slice %30 {offsets = [0, 768], sizes = [64, 128], strides = [1, 1]} : vector<64x1024xf32> to vector<64x128xf32>
    %cst_45 = arith.constant dense<0.000000e+00> : vector<64x62xf32>
    %63 = tpu.matmul %62, %31, %cst_45 {dimension_numbers = #tpu.dot_dimension_numbers<[1], [0], [0], [1], [0, 0, 1, 1], [], []>} : vector<64x128xf32>, vector<128x62xf32>, vector<64x62xf32> -> vector<64x62xf32>
    %c6 = arith.constant 6 : index
    %c0_46 = arith.constant 0 : index
    %c0_47 = arith.constant 0 : index
    %64 = vector.load %arg7[%c6, %c0_46, %c0_47] : memref<8x64x62xf32, #tpu.memory_space<vmem>>, vector<1x64x62xf32>
    %65 = vector.shape_cast %64 : vector<1x64x62xf32> to vector<64x62xf32>
    %66 = vector.shape_cast %63 : vector<64x62xf32> to vector<1x64x62xf32>
    tpu.vector_store %arg7[%c6, %c0_46, %c0_47], %66 {strides = array<i32>} : memref<8x64x62xf32, #tpu.memory_space<vmem>>, vector<1x64x62xf32>,
    %67 = vector.extract_strided_slice %30 {offsets = [0, 896], sizes = [64, 128], strides = [1, 1]} : vector<64x1024xf32> to vector<64x128xf32>
    %cst_48 = arith.constant dense<0.000000e+00> : vector<64x62xf32>
    %68 = tpu.matmul %67, %31, %cst_48 {dimension_numbers = #tpu.dot_dimension_numbers<[1], [0], [0], [1], [0, 0, 1, 1], [], []>} : vector<64x128xf32>, vector<128x62xf32>, vector<64x62xf32> -> vector<64x62xf32>
    %c7 = arith.constant 7 : index
    %c0_49 = arith.constant 0 : index
    %c0_50 = arith.constant 0 : index
    %69 = vector.load %arg7[%c7, %c0_49, %c0_50] : memref<8x64x62xf32, #tpu.memory_space<vmem>>, vector<1x64x62xf32>
    %70 = vector.shape_cast %69 : vector<1x64x62xf32> to vector<64x62xf32>
    %71 = vector.shape_cast %68 : vector<64x62xf32> to vector<1x64x62xf32>
    tpu.vector_store %arg7[%c7, %c0_49, %c0_50], %71 {strides = array<i32>} : memref<8x64x62xf32, #tpu.memory_space<vmem>>, vector<1x64x62xf32>,
    return
  }
  func.func @transform_0(%arg0: i32) -> (i32, i32) {
    %c0_i32 = arith.constant 0 : i32
    %c0_i32_0 = arith.constant 0 : i32
    return %c0_i32, %arg0 : i32, i32
  }
  func.func @transform_1(%arg0: i32) -> (i32, i32, i32) {
    %c0_i32 = arith.constant 0 : i32
    %c0_i32_0 = arith.constant 0 : i32
    %c0_i32_1 = arith.constant 0 : i32
    %c0_i32_2 = arith.constant 0 : i32
    return %c0_i32, %c0_i32_0, %c0_i32_1 : i32, i32, i32
  }
  func.func @transform_2(%arg0: i32) -> (i32, i32) {
    %c0_i32 = arith.constant 0 : i32
    %c0_i32_0 = arith.constant 0 : i32
    %c0_i32_1 = arith.constant 0 : i32
    return %c0_i32, %c0_i32_0 : i32, i32
  }
  func.func @transform_3(%arg0: i32) -> (i32, i32) {
    %c0_i32 = arith.constant 0 : i32
    %c0_i32_0 = arith.constant 0 : i32
    %c0_i32_1 = arith.constant 0 : i32
    return %c0_i32, %c0_i32_0 : i32, i32
  }
  func.func @transform_4(%arg0: i32) -> (i32, i32) {
    %c0_i32 = arith.constant 0 : i32
    %c0_i32_0 = arith.constant 0 : i32
    %c0_i32_1 = arith.constant 0 : i32
    return %c0_i32, %c0_i32_0 : i32, i32
  }
  func.func @transform_5(%arg0: i32) -> (i32, i32) {
    %c0_i32 = arith.constant 0 : i32
    %c0_i32_0 = arith.constant 0 : i32
    %c0_i32_1 = arith.constant 0 : i32
    return %c0_i32, %c0_i32_0 : i32, i32
  }
  func.func @transform_6(%arg0: i32) -> (i32, i32, i32) {
    %c0_i32 = arith.constant 0 : i32
    %c0_i32_0 = arith.constant 0 : i32
    %c0_i32_1 = arith.constant 0 : i32
    return %arg0, %c0_i32, %c0_i32_0 : i32, i32, i32
  }
}

</mosaic_0001>

<llo_original>
// kernel: tpu_custom_call.1
$region0: #{tpu_custom_call.1}
  #allocation0 [shape = 'u32[]', space=smem, size = 0x4, offset = 0x4, fixed_abs, tag = 'smem constant byte address 0x4 - core index']
  #allocation1 [shape = 'u32[144,128]{1,0:T(1,128)}', space=vmem, size = 0x12000, scoped, tag = 'internal scratch']
  %s0 = inlined_call_operand.vmem [shape: f32[9,1024], index: 0, kind: input, shape index: {}]
  %s1 = inlined_call_operand.vmem [shape: f32[3,64,9], index: 1, kind: input, shape index: {}]
  %s2 = inlined_call_operand.vmem [shape: f32[64,1], index: 2, kind: input, shape index: {}]
  %s3 = inlined_call_operand.vmem [shape: f32[64,192], index: 3, kind: input, shape index: {}]
  %s4 = inlined_call_operand.vmem [shape: f32[64,1], index: 4, kind: input, shape index: {}]
  %s5 = inlined_call_operand.vmem [shape: f32[128,62], index: 5, kind: input, shape index: {}]
  %s6 = inlined_call_operand.vmem [shape: f32[8,64,62], index: 6, kind: output, shape index: {}]
  %s7 = sld [smem:[#allocation0]]
  $region34: #{tpu_custom_call.1} parent=0
    _
  %s9 = ssub.s32 1, %s7
  %s10 = scalar_select 0, %s9, %s7
  // Predicated region
  $region2: #{tpu_custom_call.1} parent=0 // pred_check
    _
  $region3: #{tpu_custom_call.1} parent=0 // pred_check_branch
    %12 = sbr.rel (0) target = $region5
  $region4: #{tpu_custom_call.1} parent=0 // pred_region
    _
  $region5: #{tpu_custom_call.1} parent=0 // pred_fallthru
    _
  // Predicated region
  $region6: #{tpu_custom_call.1} parent=0 // pred_check
    _
  $region7: #{tpu_custom_call.1} parent=0 // pred_check_branch
    %14 = sbr.rel (0) target = $region9
  $region8: #{tpu_custom_call.1} parent=0 // pred_region
    _
  $region9: #{tpu_custom_call.1} parent=0 // pred_fallthru
    _
  // Predicated region
  $region10: #{tpu_custom_call.1} parent=0 // pred_check
    _
  $region11: #{tpu_custom_call.1} parent=0 // pred_check_branch
    %16 = sbr.rel (0) target = $region13
  $region12: #{tpu_custom_call.1} parent=0 // pred_region
    _
  $region13: #{tpu_custom_call.1} parent=0 // pred_fallthru
    _
  // Predicated region
  $region14: #{tpu_custom_call.1} parent=0 // pred_check
    _
  $region15: #{tpu_custom_call.1} parent=0 // pred_check_branch
    %18 = sbr.rel (0) target = $region17
  $region16: #{tpu_custom_call.1} parent=0 // pred_region
    _
  $region17: #{tpu_custom_call.1} parent=0 // pred_fallthru
    _
  // Predicated region
  $region18: #{tpu_custom_call.1} parent=0 // pred_check
    _
  $region19: #{tpu_custom_call.1} parent=0 // pred_check_branch
    %20 = sbr.rel (0) target = $region21
  $region20: #{tpu_custom_call.1} parent=0 // pred_region
    _
  $region21: #{tpu_custom_call.1} parent=0 // pred_fallthru
    _
  // Predicated region
  $region22: #{tpu_custom_call.1} parent=0 // pred_check
    _
  $region23: #{tpu_custom_call.1} parent=0 // pred_check_branch
    %22 = sbr.rel (0) target = $region25
  $region24: #{tpu_custom_call.1} parent=0 // pred_region
    _
  $region25: #{tpu_custom_call.1} parent=0 // pred_fallthru
    _
  %v23 = vld [vmem:[%s0] sm:$0xff]
  %v24 = vld [vmem:[%s0 + $0x8] sm:$0xff]
  %v25 = vld [vmem:[%s0 + $0x10] sm:$0xff]
  %v26 = vld [vmem:[%s0 + $0x18] sm:$0xff]
  %v27 = vld [vmem:[%s0 + $0x20] sm:$0xff]
  %v28 = vld [vmem:[%s0 + $0x28] sm:$0xff]
  %v29 = vld [vmem:[%s0 + $0x30] sm:$0xff]
  %v30 = vld [vmem:[%s0 + $0x38] sm:$0xff]
  %v31 = vld [vmem:[%s0 + $0x40] sm:$0x1]
  %v32 = vld [vmem:[%s0 + $0x48] sm:$0x1]
  %v33 = vld [vmem:[%s0 + $0x50] sm:$0x1]
  %v34 = vld [vmem:[%s0 + $0x58] sm:$0x1]
  %v35 = vld [vmem:[%s0 + $0x60] sm:$0x1]
  %v36 = vld [vmem:[%s0 + $0x68] sm:$0x1]
  %v37 = vld [vmem:[%s0 + $0x70] sm:$0x1]
  %v38 = vld [vmem:[%s0 + $0x78] sm:$0x1]
  %39 = vrot.lane.b32.xlu0 %v23, 127
  %v40 = vpop.permute.xlu0 %39
  %41 = vrot.lane.b32.xlu0 %v31, 127
  %v42 = vpop.permute.xlu0 %41
  %43 = vrot.lane.b32.xlu0 %v24, 127
  %v44 = vpop.permute.xlu0 %43
  %45 = vrot.lane.b32.xlu0 %v32, 127
  %v46 = vpop.permute.xlu0 %45
  %47 = vrot.lane.b32.xlu0 %v25, 127
  %v48 = vpop.permute.xlu0 %47
  %49 = vrot.lane.b32.xlu0 %v33, 127
  %v50 = vpop.permute.xlu0 %49
  %51 = vrot.lane.b32.xlu0 %v26, 127
  %v52 = vpop.permute.xlu0 %51
  %53 = vrot.lane.b32.xlu0 %v34, 127
  %v54 = vpop.permute.xlu0 %53
  %55 = vrot.lane.b32.xlu0 %v27, 127
  %v56 = vpop.permute.xlu0 %55
  %57 = vrot.lane.b32.xlu0 %v35, 127
  %v58 = vpop.permute.xlu0 %57
  %59 = vrot.lane.b32.xlu0 %v28, 127
  %v60 = vpop.permute.xlu0 %59
  %61 = vrot.lane.b32.xlu0 %v36, 127
  %v62 = vpop.permute.xlu0 %61
  %63 = vrot.lane.b32.xlu0 %v29, 127
  %v64 = vpop.permute.xlu0 %63
  %65 = vrot.lane.b32.xlu0 %v37, 127
  %v66 = vpop.permute.xlu0 %65
  %67 = vrot.lane.b32.xlu0 %v30, 127
  %v68 = vpop.permute.xlu0 %67
  %69 = vrot.lane.b32.xlu0 %v38, 127
  %v70 = vpop.permute.xlu0 %69
  %v71 = vlaneseq
  %v72 = vand.u32 %v71, 127
  %vm73 = vcmp.lt.s32.totalorder %v72, 127
  %v74 = vsel %vm73, %v64, %v68
  %v75 = vsel %vm73, %v66, %v70
  %v76 = vsel %vm73, %v60, %v64
  %v77 = vsel %vm73, %v62, %v66
  %v78 = vsel %vm73, %v56, %v60
  %v79 = vsel %vm73, %v58, %v62
  %v80 = vsel %vm73, %v52, %v56
  %v81 = vsel %vm73, %v54, %v58
  %v82 = vsel %vm73, %v48, %v52
  %v83 = vsel %vm73, %v50, %v54
  %v84 = vsel %vm73, %v44, %v48
  %v85 = vsel %vm73, %v46, %v50
  %v86 = vsel %vm73, %v40, %v44
  %v87 = vsel %vm73, %v42, %v46
  %v88 = vsel %vm73, %v68, %v40
  %v89 = vsel %vm73, %v70, %v42
  %90 = vrot.lane.b32.xlu0 %v23, 126
  %v91 = vpop.permute.xlu0 %90
  %92 = vrot.lane.b32.xlu0 %v31, 126
  %v93 = vpop.permute.xlu0 %92
  %94 = vrot.lane.b32.xlu0 %v24, 126
  %v95 = vpop.permute.xlu0 %94
  %96 = vrot.lane.b32.xlu0 %v32, 126
  %v97 = vpop.permute.xlu0 %96
  %98 = vrot.lane.b32.xlu0 %v25, 126
  %v99 = vpop.permute.xlu0 %98
  %100 = vrot.lane.b32.xlu0 %v33, 126
  %v101 = vpop.permute.xlu0 %100
  %102 = vrot.lane.b32.xlu0 %v26, 126
  %v103 = vpop.permute.xlu0 %102
  %104 = vrot.lane.b32.xlu0 %v34, 126
  %v105 = vpop.permute.xlu0 %104
  %106 = vrot.lane.b32.xlu0 %v27, 126
  %v107 = vpop.permute.xlu0 %106
  %108 = vrot.lane.b32.xlu0 %v35, 126
  %v109 = vpop.permute.xlu0 %108
  %110 = vrot.lane.b32.xlu0 %v28, 126
  %v111 = vpop.permute.xlu0 %110
  %112 = vrot.lane.b32.xlu0 %v36, 126
  %v113 = vpop.permute.xlu0 %112
  %114 = vrot.lane.b32.xlu0 %v29, 126
  %v115 = vpop.permute.xlu0 %114
  %116 = vrot.lane.b32.xlu0 %v37, 126
  %v117 = vpop.permute.xlu0 %116
  %118 = vrot.lane.b32.xlu0 %v30, 126
  %v119 = vpop.permute.xlu0 %118
  %120 = vrot.lane.b32.xlu0 %v38, 126
  %v121 = vpop.permute.xlu0 %120
  %vm122 = vcmp.lt.s32.totalorder %v72, 126
  %v123 = vsel %vm122, %v115, %v119
  %v124 = vsel %vm122, %v117, %v121
  %v125 = vsel %vm122, %v111, %v115
  %v126 = vsel %vm122, %v113, %v117
  %v127 = vsel %vm122, %v107, %v111
  %v128 = vsel %vm122, %v109, %v113
  %v129 = vsel %vm122, %v103, %v107
  %v130 = vsel %vm122, %v105, %v109
  %v131 = vsel %vm122, %v99, %v103
  %v132 = vsel %vm122, %v101, %v105
  %v133 = vsel %vm122, %v95, %v99
  %v134 = vsel %vm122, %v97, %v101
  %v135 = vsel %vm122, %v91, %v95
  %v136 = vsel %vm122, %v93, %v97
  %v137 = vsel %vm122, %v119, %v91
  %v138 = vsel %vm122, %v121, %v93
  %v139 = vld [vmem:[%s1] sm:$0xff]
  %v140 = vld [vmem:[%s1 + $0x8] sm:$0xff]
  %v141 = vld [vmem:[%s1 + $0x10] sm:$0xff]
  %v142 = vld [vmem:[%s1 + $0x18] sm:$0xff]
  %v143 = vld [vmem:[%s1 + $0x20] sm:$0xff]
  %v144 = vld [vmem:[%s1 + $0x28] sm:$0xff]
  %v145 = vld [vmem:[%s1 + $0x30] sm:$0xff]
  %v146 = vld [vmem:[%s1 + $0x38] sm:$0xff]
  %s147 = scalar_lea.vmem %s1, 64
  %v148 = vld [vmem:[%s147] sm:$0xff]
  %v149 = vld [vmem:[%s147 + $0x8] sm:$0xff]
  %v150 = vld [vmem:[%s147 + $0x10] sm:$0xff]
  %v151 = vld [vmem:[%s147 + $0x18] sm:$0xff]
  %v152 = vld [vmem:[%s147 + $0x20] sm:$0xff]
  %v153 = vld [vmem:[%s147 + $0x28] sm:$0xff]
  %v154 = vld [vmem:[%s147 + $0x30] sm:$0xff]
  %v155 = vld [vmem:[%s147 + $0x38] sm:$0xff]
  %vm156 = vcmask 72704
  %v158 = vsel %vm156, %v148, 0
  %v161 = vsel %vm156, %v149, 0
  %v164 = vsel %vm156, %v150, 0
  %v167 = vsel %vm156, %v151, 0
  %v170 = vsel %vm156, %v152, 0
  %v173 = vsel %vm156, %v153, 0
  %v176 = vsel %vm156, %v154, 0
  %v179 = vsel %vm156, %v155, 0
  %vm181 = vcmask 1040384
  %v183 = vsel %vm181, %v87, 0
  %v186 = vsel %vm181, %v85, 0
  %v189 = vsel %vm181, %v83, 0
  %v192 = vsel %vm181, %v81, 0
  %v195 = vsel %vm181, %v79, 0
  %v198 = vsel %vm181, %v77, 0
  %v201 = vsel %vm181, %v75, 0
  %v204 = vsel %vm181, %v89, 0
  %206 = vmatprep.subr.mxu0 0.0
  %207 = vmatpush1.msra.mxu0 0.0
  %208 = vmatprep.subr.mxu0 0.0
  %209 = vmatpush1.msra.mxu0 0.0
  %210 = vmatprep.subr.mxu0 0.0
  %211 = vmatpush1.msra.mxu0 0.0
  %212 = vmatprep.subr.mxu0 0.0
  %213 = vmatpush1.msra.mxu0 0.0
  %214 = vmatprep.subr.mxu0 0.0
  %215 = vmatpush1.msra.mxu0 0.0
  %216 = vmatprep.subr.mxu0 0.0
  %217 = vmatpush1.msra.mxu0 0.0
  %218 = vmatprep.subr.mxu0 0.0
  %219 = vmatpush1.msra.mxu0 0.0
  %220 = vmatprep.subr.mxu0 0.0
  %221 = vmatpush1.msra.mxu0 0.0
  %222 = vmatprep.subr.mxu0 0.0
  %223 = vmatpush1.msra.mxu0 0.0
  %224 = vmatprep.subr.mxu0 0.0
  %225 = vmatpush1.msra.mxu0 0.0
  %226 = vmatprep.subr.mxu0 0.0
  %227 = vmatpush1.msra.mxu0 0.0
  %228 = vmatprep.subr.mxu0 0.0
  %229 = vmatpush1.msra.mxu0 0.0
  %230 = vmatprep.subr.mxu0 0.0
  %231 = vmatpush1.msra.mxu0 0.0
  %232 = vmatprep.subr.mxu0 0.0
  %233 = vmatpush1.msra.mxu0 0.0
  %234 = vmatprep.subr.mxu0 %v186
  %235 = vmatpush1.msra.mxu0 %v183
  %236 = vmatprep.subr.mxu0 %v84
  %237 = vmatpush1.msra.mxu0 %v86
  %238 = vmatprep.subr.mxu0 0.0
  %239 = vmatpush2.msra.mxu0 0.0
  %240 = vmatprep.subr.mxu0 0.0
  %241 = vmatpush2.msra.mxu0 0.0
  %242 = vmatprep.subr.mxu0 0.0
  %243 = vmatpush2.msra.mxu0 0.0
  %244 = vmatprep.subr.mxu0 0.0
  %245 = vmatpush2.msra.mxu0 0.0
  %246 = vmatprep.subr.mxu0 0.0
  %247 = vmatpush2.msra.mxu0 0.0
  %248 = vmatprep.subr.mxu0 0.0
  %249 = vmatpush2.msra.mxu0 0.0
  %250 = vmatprep.subr.mxu0 0.0
  %251 = vmatpush2.msra.mxu0 0.0
  %252 = vmatprep.subr.mxu0 0.0
  %253 = vmatpush2.msra.mxu0 0.0
  %254 = vmatprep.subr.mxu0 0.0
  %255 = vmatpush2.msra.mxu0 0.0
  %256 = vmatprep.subr.mxu0 0.0
  %257 = vmatpush2.msra.mxu0 0.0
  %258 = vmatprep.subr.mxu0 0.0
  %259 = vmatpush2.msra.mxu0 0.0
  %260 = vmatprep.subr.mxu0 0.0
  %261 = vmatpush2.msra.mxu0 0.0
  %262 = vmatprep.subr.mxu0 0.0
  %263 = vmatpush2.msra.mxu0 0.0
  %264 = vmatprep.subr.mxu0 0.0
  %265 = vmatpush2.msra.mxu0 0.0
  %266 = vmatprep.subr.mxu0 0.0
  %267 = vmatpush2.msra.mxu0 0.0
  %268 = vmatprep.subr.mxu0 0.0
  %269 = vmatpush2.msra.mxu0 0.0
  %270 = vmatprep.mubr.f32.mxu0 0.0
  %271 = vmatmul.mubr.f32.gmra.mxu0 %v158
  %v272 = vpop.f32.mrf.mxu0
  %v273 = vadd.f32 0.0, %v272
  %v274 = vpop.f32.mrf.mxu0
  %v275 = vadd.f32 0.0, %v274
  %276 = vmatprep.mubr.f32.mxu0 0.0
  %277 = vmatmul.mubr.f32.gmra.mxu0 %v161
  %v278 = vpop.f32.mrf.mxu0
  %v279 = vadd.f32 0.0, %v278
  %v280 = vpop.f32.mrf.mxu0
  %v281 = vadd.f32 0.0, %v280
  %282 = vmatprep.mubr.f32.mxu0 0.0
  %283 = vmatmul.mubr.f32.gmra.mxu0 %v164
  %v284 = vpop.f32.mrf.mxu0
  %v285 = vadd.f32 0.0, %v284
  %v286 = vpop.f32.mrf.mxu0
  %v287 = vadd.f32 0.0, %v286
  %288 = vmatprep.mubr.f32.mxu0 0.0
  %289 = vmatmul.mubr.f32.gmra.mxu0 %v167
  %v290 = vpop.f32.mrf.mxu0
  %v291 = vadd.f32 0.0, %v290
  %v292 = vpop.f32.mrf.mxu0
  %v293 = vadd.f32 0.0, %v292
  %294 = vmatprep.mubr.f32.mxu0 0.0
  %295 = vmatmul.mubr.f32.gmra.mxu0 %v170
  %v296 = vpop.f32.mrf.mxu0
  %v297 = vadd.f32 0.0, %v296
  %v298 = vpop.f32.mrf.mxu0
  %v299 = vadd.f32 0.0, %v298
  %300 = vmatprep.mubr.f32.mxu0 0.0
  %301 = vmatmul.mubr.f32.gmra.mxu0 %v173
  %v302 = vpop.f32.mrf.mxu0
  %v303 = vadd.f32 0.0, %v302
  %v304 = vpop.f32.mrf.mxu0
  %v305 = vadd.f32 0.0, %v304
  %306 = vmatprep.mubr.f32.mxu0 0.0
  %307 = vmatmul.mubr.f32.gmra.mxu0 %v176
  %v308 = vpop.f32.mrf.mxu0
  %v309 = vadd.f32 0.0, %v308
  %v310 = vpop.f32.mrf.mxu0
  %v311 = vadd.f32 0.0, %v310
  %312 = vmatprep.mubr.f32.mxu0 0.0
  %313 = vmatmul.mubr.f32.gmra.mxu0 %v179
  %v314 = vpop.f32.mrf.mxu0
  %v315 = vadd.f32 0.0, %v314
  %v316 = vpop.f32.mrf.mxu0
  %v317 = vadd.f32 0.0, %v316
  %318 = vdwg.mxu0
  %319 = vmatprep.subr.mxu0 0.0
  %320 = vmatpush1.msra.mxu0 0.0
  %321 = vmatprep.subr.mxu0 0.0
  %322 = vmatpush1.msra.mxu0 0.0
  %323 = vmatprep.subr.mxu0 0.0
  %324 = vmatpush1.msra.mxu0 0.0
  %325 = vmatprep.subr.mxu0 0.0
  %326 = vmatpush1.msra.mxu0 0.0
  %327 = vmatprep.subr.mxu0 0.0
  %328 = vmatpush1.msra.mxu0 0.0
  %329 = vmatprep.subr.mxu0 0.0
  %330 = vmatpush1.msra.mxu0 0.0
  %331 = vmatprep.subr.mxu0 0.0
  %332 = vmatpush1.msra.mxu0 0.0
  %333 = vmatprep.subr.mxu0 0.0
  %334 = vmatpush1.msra.mxu0 0.0
  %335 = vmatprep.subr.mxu0 0.0
  %336 = vmatpush1.msra.mxu0 0.0
  %337 = vmatprep.subr.mxu0 0.0
  %338 = vmatpush1.msra.mxu0 0.0
  %339 = vmatprep.subr.mxu0 0.0
  %340 = vmatpush1.msra.mxu0 0.0
  %341 = vmatprep.subr.mxu0 0.0
  %342 = vmatpush1.msra.mxu0 0.0
  %343 = vmatprep.subr.mxu0 0.0
  %344 = vmatpush1.msra.mxu0 0.0
  %345 = vmatprep.subr.mxu0 0.0
  %346 = vmatpush1.msra.mxu0 0.0
  %347 = vmatprep.subr.mxu0 %v192
  %348 = vmatpush1.msra.mxu0 %v189
  %349 = vmatprep.subr.mxu0 %v80
  %350 = vmatpush1.msra.mxu0 %v82
  %351 = vmatprep.subr.mxu0 0.0
  %352 = vmatpush2.msra.mxu0 0.0
  %353 = vmatprep.subr.mxu0 0.0
  %354 = vmatpush2.msra.mxu0 0.0
  %355 = vmatprep.subr.mxu0 0.0
  %356 = vmatpush2.msra.mxu0 0.0
  %357 = vmatprep.subr.mxu0 0.0
  %358 = vmatpush2.msra.mxu0 0.0
  %359 = vmatprep.subr.mxu0 0.0
  %360 = vmatpush2.msra.mxu0 0.0
  %361 = vmatprep.subr.mxu0 0.0
  %362 = vmatpush2.msra.mxu0 0.0
  %363 = vmatprep.subr.mxu0 0.0
  %364 = vmatpush2.msra.mxu0 0.0
  %365 = vmatprep.subr.mxu0 0.0
  %366 = vmatpush2.msra.mxu0 0.0
  %367 = vmatprep.subr.mxu0 0.0
  %368 = vmatpush2.msra.mxu0 0.0
  %369 = vmatprep.subr.mxu0 0.0
  %370 = vmatpush2.msra.mxu0 0.0
  %371 = vmatprep.subr.mxu0 0.0
  %372 = vmatpush2.msra.mxu0 0.0
  %373 = vmatprep.subr.mxu0 0.0
  %374 = vmatpush2.msra.mxu0 0.0
  %375 = vmatprep.subr.mxu0 0.0
  %376 = vmatpush2.msra.mxu0 0.0
  %377 = vmatprep.subr.mxu0 0.0
  %378 = vmatpush2.msra.mxu0 0.0
  %379 = vmatprep.subr.mxu0 0.0
  %380 = vmatpush2.msra.mxu0 0.0
  %381 = vmatprep.subr.mxu0 0.0
  %382 = vmatpush2.msra.mxu0 0.0
  %383 = vmatprep.mubr.f32.mxu0 0.0
  %384 = vmatmul.mubr.f32.gmra.mxu0 %v158
  %v385 = vpop.f32.mrf.mxu0
  %v386 = vadd.f32 0.0, %v385
  %v387 = vpop.f32.mrf.mxu0
  %v388 = vadd.f32 0.0, %v387
  %389 = vmatprep.mubr.f32.mxu0 0.0
  %390 = vmatmul.mubr.f32.gmra.mxu0 %v161
  %v391 = vpop.f32.mrf.mxu0
  %v392 = vadd.f32 0.0, %v391
  %v393 = vpop.f32.mrf.mxu0
  %v394 = vadd.f32 0.0, %v393
  %395 = vmatprep.mubr.f32.mxu0 0.0
  %396 = vmatmul.mubr.f32.gmra.mxu0 %v164
  %v397 = vpop.f32.mrf.mxu0
  %v398 = vadd.f32 0.0, %v397
  %v399 = vpop.f32.mrf.mxu0
  %v400 = vadd.f32 0.0, %v399
  %401 = vmatprep.mubr.f32.mxu0 0.0
  %402 = vmatmul.mubr.f32.gmra.mxu0 %v167
  %v403 = vpop.f32.mrf.mxu0
  %v404 = vadd.f32 0.0, %v403
  %v405 = vpop.f32.mrf.mxu0
  %v406 = vadd.f32 0.0, %v405
  %407 = vmatprep.mubr.f32.mxu0 0.0
  %408 = vmatmul.mubr.f32.gmra.mxu0 %v170
  %v409 = vpop.f32.mrf.mxu0
  %v410 = vadd.f32 0.0, %v409
  %v411 = vpop.f32.mrf.mxu0
  %v412 = vadd.f32 0.0, %v411
  %413 = vmatprep.mubr.f32.mxu0 0.0
  %414 = vmatmul.mubr.f32.gmra.mxu0 %v173
  %v415 = vpop.f32.mrf.mxu0
  %v416 = vadd.f32 0.0, %v415
  %v417 = vpop.f32.mrf.mxu0
  %v418 = vadd.f32 0.0, %v417
  %419 = vmatprep.mubr.f32.mxu0 0.0
  %420 = vmatmul.mubr.f32.gmra.mxu0 %v176
  %v421 = vpop.f32.mrf.mxu0
  %v422 = vadd.f32 0.0, %v421
  %v423 = vpop.f32.mrf.mxu0
  %v424 = vadd.f32 0.0, %v423
  %425 = vmatprep.mubr.f32.mxu0 0.0
  %426 = vmatmul.mubr.f32.gmra.mxu0 %v179
  %v427 = vpop.f32.mrf.mxu0
  %v428 = vadd.f32 0.0, %v427
  %v429 = vpop.f32.mrf.mxu0
  %v430 = vadd.f32 0.0, %v429
  %431 = vdwg.mxu0
  %432 = vmatprep.subr.mxu0 0.0
  %433 = vmatpush1.msra.mxu0 0.0
  %434 = vmatprep.subr.mxu0 0.0
  %435 = vmatpush1.msra.mxu0 0.0
  %436 = vmatprep.subr.mxu0 0.0
  %437 = vmatpush1.msra.mxu0 0.0
  %438 = vmatprep.subr.mxu0 0.0
  %439 = vmatpush1.msra.mxu0 0.0
  %440 = vmatprep.subr.mxu0 0.0
  %441 = vmatpush1.msra.mxu0 0.0
  %442 = vmatprep.subr.mxu0 0.0
  %443 = vmatpush1.msra.mxu0 0.0
  %444 = vmatprep.subr.mxu0 0.0
  %445 = vmatpush1.msra.mxu0 0.0
  %446 = vmatprep.subr.mxu0 0.0
  %447 = vmatpush1.msra.mxu0 0.0
  %448 = vmatprep.subr.mxu0 0.0
  %449 = vmatpush1.msra.mxu0 0.0
  %450 = vmatprep.subr.mxu0 0.0
  %451 = vmatpush1.msra.mxu0 0.0
  %452 = vmatprep.subr.mxu0 0.0
  %453 = vmatpush1.msra.mxu0 0.0
  %454 = vmatprep.subr.mxu0 0.0
  %455 = vmatpush1.msra.mxu0 0.0
  %456 = vmatprep.subr.mxu0 0.0
  %457 = vmatpush1.msra.mxu0 0.0
  %458 = vmatprep.subr.mxu0 0.0
  %459 = vmatpush1.msra.mxu0 0.0
  %460 = vmatprep.subr.mxu0 %v198
  %461 = vmatpush1.msra.mxu0 %v195
  %462 = vmatprep.subr.mxu0 %v76
  %463 = vmatpush1.msra.mxu0 %v78
  %464 = vmatprep.subr.mxu0 0.0
  %465 = vmatpush2.msra.mxu0 0.0
  %466 = vmatprep.subr.mxu0 0.0
  %467 = vmatpush2.msra.mxu0 0.0
  %468 = vmatprep.subr.mxu0 0.0
  %469 = vmatpush2.msra.mxu0 0.0
  %470 = vmatprep.subr.mxu0 0.0
  %471 = vmatpush2.msra.mxu0 0.0
  %472 = vmatprep.subr.mxu0 0.0
  %473 = vmatpush2.msra.mxu0 0.0
  %474 = vmatprep.subr.mxu0 0.0
  %475 = vmatpush2.msra.mxu0 0.0
  %476 = vmatprep.subr.mxu0 0.0
  %477 = vmatpush2.msra.mxu0 0.0
  %478 = vmatprep.subr.mxu0 0.0
  %479 = vmatpush2.msra.mxu0 0.0
  %480 = vmatprep.subr.mxu0 0.0
  %481 = vmatpush2.msra.mxu0 0.0
  %482 = vmatprep.subr.mxu0 0.0
  %483 = vmatpush2.msra.mxu0 0.0
  %484 = vmatprep.subr.mxu0 0.0
  %485 = vmatpush2.msra.mxu0 0.0
  %486 = vmatprep.subr.mxu0 0.0
  %487 = vmatpush2.msra.mxu0 0.0
  %488 = vmatprep.subr.mxu0 0.0
  %489 = vmatpush2.msra.mxu0 0.0
  %490 = vmatprep.subr.mxu0 0.0
  %491 = vmatpush2.msra.mxu0 0.0
  %492 = vmatprep.subr.mxu0 0.0
  %493 = vmatpush2.msra.mxu0 0.0
  %494 = vmatprep.subr.mxu0 0.0
  %495 = vmatpush2.msra.mxu0 0.0
  %496 = vmatprep.mubr.f32.mxu0 0.0
  %497 = vmatmul.mubr.f32.gmra.mxu0 %v158
  %v498 = vpop.f32.mrf.mxu0
  %v499 = vadd.f32 0.0, %v498
  %v500 = vpop.f32.mrf.mxu0
  %v501 = vadd.f32 0.0, %v500
  %502 = vmatprep.mubr.f32.mxu0 0.0
  %503 = vmatmul.mubr.f32.gmra.mxu0 %v161
  %v504 = vpop.f32.mrf.mxu0
  %v505 = vadd.f32 0.0, %v504
  %v506 = vpop.f32.mrf.mxu0
  %v507 = vadd.f32 0.0, %v506
  %508 = vmatprep.mubr.f32.mxu0 0.0
  %509 = vmatmul.mubr.f32.gmra.mxu0 %v164
  %v510 = vpop.f32.mrf.mxu0
  %v511 = vadd.f32 0.0, %v510
  %v512 = vpop.f32.mrf.mxu0
  %v513 = vadd.f32 0.0, %v512
  %514 = vmatprep.mubr.f32.mxu0 0.0
  %515 = vmatmul.mubr.f32.gmra.mxu0 %v167
  %v516 = vpop.f32.mrf.mxu0
  %v517 = vadd.f32 0.0, %v516
  %v518 = vpop.f32.mrf.mxu0
  %v519 = vadd.f32 0.0, %v518
  %520 = vmatprep.mubr.f32.mxu0 0.0
  %521 = vmatmul.mubr.f32.gmra.mxu0 %v170
  %v522 = vpop.f32.mrf.mxu0
  %v523 = vadd.f32 0.0, %v522
  %v524 = vpop.f32.mrf.mxu0
  %v525 = vadd.f32 0.0, %v524
  %526 = vmatprep.mubr.f32.mxu0 0.0
  %527 = vmatmul.mubr.f32.gmra.mxu0 %v173
  %v528 = vpop.f32.mrf.mxu0
  %v529 = vadd.f32 0.0, %v528
  %v530 = vpop.f32.mrf.mxu0
  %v531 = vadd.f32 0.0, %v530
  %532 = vmatprep.mubr.f32.mxu0 0.0
  %533 = vmatmul.mubr.f32.gmra.mxu0 %v176
  %v534 = vpop.f32.mrf.mxu0
  %v535 = vadd.f32 0.0, %v534
  %v536 = vpop.f32.mrf.mxu0
  %v537 = vadd.f32 0.0, %v536
  %538 = vmatprep.mubr.f32.mxu0 0.0
  %539 = vmatmul.mubr.f32.gmra.mxu0 %v179
  %v540 = vpop.f32.mrf.mxu0
  %v541 = vadd.f32 0.0, %v540
  %v542 = vpop.f32.mrf.mxu0
  %v543 = vadd.f32 0.0, %v542
  %544 = vdwg.mxu0
  %545 = vmatprep.subr.mxu0 0.0
  %546 = vmatpush1.msra.mxu0 0.0
  %547 = vmatprep.subr.mxu0 0.0
  %548 = vmatpush1.msra.mxu0 0.0
  %549 = vmatprep.subr.mxu0 0.0
  %550 = vmatpush1.msra.mxu0 0.0
  %551 = vmatprep.subr.mxu0 0.0
  %552 = vmatpush1.msra.mxu0 0.0
  %553 = vmatprep.subr.mxu0 0.0
  %554 = vmatpush1.msra.mxu0 0.0
  %555 = vmatprep.subr.mxu0 0.0
  %556 = vmatpush1.msra.mxu0 0.0
  %557 = vmatprep.subr.mxu0 0.0
  %558 = vmatpush1.msra.mxu0 0.0
  %559 = vmatprep.subr.mxu0 0.0
  %560 = vmatpush1.msra.mxu0 0.0
  %561 = vmatprep.subr.mxu0 0.0
  %562 = vmatpush1.msra.mxu0 0.0
  %563 = vmatprep.subr.mxu0 0.0
  %564 = vmatpush1.msra.mxu0 0.0
  %565 = vmatprep.subr.mxu0 0.0
  %566 = vmatpush1.msra.mxu0 0.0
  %567 = vmatprep.subr.mxu0 0.0
  %568 = vmatpush1.msra.mxu0 0.0
  %569 = vmatprep.subr.mxu0 0.0
  %570 = vmatpush1.msra.mxu0 0.0
  %571 = vmatprep.subr.mxu0 0.0
  %572 = vmatpush1.msra.mxu0 0.0
  %573 = vmatprep.subr.mxu0 %v204
  %574 = vmatpush1.msra.mxu0 %v201
  %575 = vmatprep.subr.mxu0 %v88
  %576 = vmatpush1.msra.mxu0 %v74
  %577 = vmatprep.subr.mxu0 0.0
  %578 = vmatpush2.msra.mxu0 0.0
  %579 = vmatprep.subr.mxu0 0.0
  %580 = vmatpush2.msra.mxu0 0.0
  %581 = vmatprep.subr.mxu0 0.0
  %582 = vmatpush2.msra.mxu0 0.0
  %583 = vmatprep.subr.mxu0 0.0
  %584 = vmatpush2.msra.mxu0 0.0
  %585 = vmatprep.subr.mxu0 0.0
  %586 = vmatpush2.msra.mxu0 0.0
  %587 = vmatprep.subr.mxu0 0.0
  %588 = vmatpush2.msra.mxu0 0.0
  %589 = vmatprep.subr.mxu0 0.0
  %590 = vmatpush2.msra.mxu0 0.0
  %591 = vmatprep.subr.mxu0 0.0
  %592 = vmatpush2.msra.mxu0 0.0
  %593 = vmatprep.subr.mxu0 0.0
  %594 = vmatpush2.msra.mxu0 0.0
  %595 = vmatprep.subr.mxu0 0.0
  %596 = vmatpush2.msra.mxu0 0.0
  %597 = vmatprep.subr.mxu0 0.0
  %598 = vmatpush2.msra.mxu0 0.0
  %599 = vmatprep.subr.mxu0 0.0
  %600 = vmatpush2.msra.mxu0 0.0
  %601 = vmatprep.subr.mxu0 0.0
  %602 = vmatpush2.msra.mxu0 0.0
  %603 = vmatprep.subr.mxu0 0.0
  %604 = vmatpush2.msra.mxu0 0.0
  %605 = vmatprep.subr.mxu0 0.0
  %606 = vmatpush2.msra.mxu0 0.0
  %607 = vmatprep.subr.mxu0 0.0
  %608 = vmatpush2.msra.mxu0 0.0
  %609 = vmatprep.mubr.f32.mxu0 0.0
  %610 = vmatmul.mubr.f32.gmra.mxu0 %v158
  %v611 = vpop.f32.mrf.mxu0
  %v612 = vadd.f32 0.0, %v611
  %v613 = vpop.f32.mrf.mxu0
  %v614 = vadd.f32 0.0, %v613
  %615 = vmatprep.mubr.f32.mxu0 0.0
  %616 = vmatmul.mubr.f32.gmra.mxu0 %v161
  %v617 = vpop.f32.mrf.mxu0
  %v618 = vadd.f32 0.0, %v617
  %v619 = vpop.f32.mrf.mxu0
  %v620 = vadd.f32 0.0, %v619
  %621 = vmatprep.mubr.f32.mxu0 0.0
  %622 = vmatmul.mubr.f32.gmra.mxu0 %v164
  %v623 = vpop.f32.mrf.mxu0
  %v624 = vadd.f32 0.0, %v623
  %v625 = vpop.f32.mrf.mxu0
  %v626 = vadd.f32 0.0, %v625
  %627 = vmatprep.mubr.f32.mxu0 0.0
  %628 = vmatmul.mubr.f32.gmra.mxu0 %v167
  %v629 = vpop.f32.mrf.mxu0
  %v630 = vadd.f32 0.0, %v629
  %v631 = vpop.f32.mrf.mxu0
  %v632 = vadd.f32 0.0, %v631
  %633 = vmatprep.mubr.f32.mxu0 0.0
  %634 = vmatmul.mubr.f32.gmra.mxu0 %v170
  %v635 = vpop.f32.mrf.mxu0
  %v636 = vadd.f32 0.0, %v635
  %v637 = vpop.f32.mrf.mxu0
  %v638 = vadd.f32 0.0, %v637
  %639 = vmatprep.mubr.f32.mxu0 0.0
  %640 = vmatmul.mubr.f32.gmra.mxu0 %v173
  %v641 = vpop.f32.mrf.mxu0
  %v642 = vadd.f32 0.0, %v641
  %v643 = vpop.f32.mrf.mxu0
  %v644 = vadd.f32 0.0, %v643
  %645 = vmatprep.mubr.f32.mxu0 0.0
  %646 = vmatmul.mubr.f32.gmra.mxu0 %v176
  %v647 = vpop.f32.mrf.mxu0
  %v648 = vadd.f32 0.0, %v647
  %v649 = vpop.f32.mrf.mxu0
  %v650 = vadd.f32 0.0, %v649
  %651 = vmatprep.mubr.f32.mxu0 0.0
  %652 = vmatmul.mubr.f32.gmra.mxu0 %v179
  %v653 = vpop.f32.mrf.mxu0
  %v654 = vadd.f32 0.0, %v653
  %v655 = vpop.f32.mrf.mxu0
  %v656 = vadd.f32 0.0, %v655
  %657 = vdwg.mxu0
  %v659 = vsel %vm156, %v139, 0
  %v662 = vsel %vm156, %v140, 0
  %v665 = vsel %vm156, %v141, 0
  %v668 = vsel %vm156, %v142, 0
  %v671 = vsel %vm156, %v143, 0
  %v674 = vsel %vm156, %v144, 0
  %v677 = vsel %vm156, %v145, 0
  %v680 = vsel %vm156, %v146, 0
  %v683 = vsel %vm181, %v31, 0
  %v686 = vsel %vm181, %v32, 0
  %v689 = vsel %vm181, %v33, 0
  %v692 = vsel %vm181, %v34, 0
  %v695 = vsel %vm181, %v35, 0
  %v698 = vsel %vm181, %v36, 0
  %v701 = vsel %vm181, %v37, 0
  %v704 = vsel %vm181, %v38, 0
  %706 = vmatprep.subr.mxu0 0.0
  %707 = vmatpush1.msra.mxu0 0.0
  %708 = vmatprep.subr.mxu0 0.0
  %709 = vmatpush1.msra.mxu0 0.0
  %710 = vmatprep.subr.mxu0 0.0
  %711 = vmatpush1.msra.mxu0 0.0
  %712 = vmatprep.subr.mxu0 0.0
  %713 = vmatpush1.msra.mxu0 0.0
  %714 = vmatprep.subr.mxu0 0.0
  %715 = vmatpush1.msra.mxu0 0.0
  %716 = vmatprep.subr.mxu0 0.0
  %717 = vmatpush1.msra.mxu0 0.0
  %718 = vmatprep.subr.mxu0 0.0
  %719 = vmatpush1.msra.mxu0 0.0
  %720 = vmatprep.subr.mxu0 0.0
  %721 = vmatpush1.msra.mxu0 0.0
  %722 = vmatprep.subr.mxu0 0.0
  %723 = vmatpush1.msra.mxu0 0.0
  %724 = vmatprep.subr.mxu0 0.0
  %725 = vmatpush1.msra.mxu0 0.0
  %726 = vmatprep.subr.mxu0 0.0
  %727 = vmatpush1.msra.mxu0 0.0
  %728 = vmatprep.subr.mxu0 0.0
  %729 = vmatpush1.msra.mxu0 0.0
  %730 = vmatprep.subr.mxu0 0.0
  %731 = vmatpush1.msra.mxu0 0.0
  %732 = vmatprep.subr.mxu0 0.0
  %733 = vmatpush1.msra.mxu0 0.0
  %734 = vmatprep.subr.mxu0 %v686
  %735 = vmatpush1.msra.mxu0 %v683
  %736 = vmatprep.subr.mxu0 %v24
  %737 = vmatpush1.msra.mxu0 %v23
  %738 = vmatprep.subr.mxu0 0.0
  %739 = vmatpush2.msra.mxu0 0.0
  %740 = vmatprep.subr.mxu0 0.0
  %741 = vmatpush2.msra.mxu0 0.0
  %742 = vmatprep.subr.mxu0 0.0
  %743 = vmatpush2.msra.mxu0 0.0
  %744 = vmatprep.subr.mxu0 0.0
  %745 = vmatpush2.msra.mxu0 0.0
  %746 = vmatprep.subr.mxu0 0.0
  %747 = vmatpush2.msra.mxu0 0.0
  %748 = vmatprep.subr.mxu0 0.0
  %749 = vmatpush2.msra.mxu0 0.0
  %750 = vmatprep.subr.mxu0 0.0
  %751 = vmatpush2.msra.mxu0 0.0
  %752 = vmatprep.subr.mxu0 0.0
  %753 = vmatpush2.msra.mxu0 0.0
  %754 = vmatprep.subr.mxu0 0.0
  %755 = vmatpush2.msra.mxu0 0.0
  %756 = vmatprep.subr.mxu0 0.0
  %757 = vmatpush2.msra.mxu0 0.0
  %758 = vmatprep.subr.mxu0 0.0
  %759 = vmatpush2.msra.mxu0 0.0
  %760 = vmatprep.subr.mxu0 0.0
  %761 = vmatpush2.msra.mxu0 0.0
  %762 = vmatprep.subr.mxu0 0.0
  %763 = vmatpush2.msra.mxu0 0.0
  %764 = vmatprep.subr.mxu0 0.0
  %765 = vmatpush2.msra.mxu0 0.0
  %766 = vmatprep.subr.mxu0 0.0
  %767 = vmatpush2.msra.mxu0 0.0
  %768 = vmatprep.subr.mxu0 0.0
  %769 = vmatpush2.msra.mxu0 0.0
  %770 = vmatprep.mubr.f32.mxu0 0.0
  %771 = vmatmul.mubr.f32.gmra.mxu0 %v659
  %v772 = vpop.f32.mrf.mxu0
  %v773 = vadd.f32 %v273, %v772
  %v774 = vpop.f32.mrf.mxu0
  %v775 = vadd.f32 %v275, %v774
  %776 = vmatprep.mubr.f32.mxu0 0.0
  %777 = vmatmul.mubr.f32.gmra.mxu0 %v662
  %v778 = vpop.f32.mrf.mxu0
  %v779 = vadd.f32 %v279, %v778
  %v780 = vpop.f32.mrf.mxu0
  %v781 = vadd.f32 %v281, %v780
  %782 = vmatprep.mubr.f32.mxu0 0.0
  %783 = vmatmul.mubr.f32.gmra.mxu0 %v665
  %v784 = vpop.f32.mrf.mxu0
  %v785 = vadd.f32 %v285, %v784
  %v786 = vpop.f32.mrf.mxu0
  %v787 = vadd.f32 %v287, %v786
  %788 = vmatprep.mubr.f32.mxu0 0.0
  %789 = vmatmul.mubr.f32.gmra.mxu0 %v668
  %v790 = vpop.f32.mrf.mxu0
  %v791 = vadd.f32 %v291, %v790
  %v792 = vpop.f32.mrf.mxu0
  %v793 = vadd.f32 %v293, %v792
  %794 = vmatprep.mubr.f32.mxu0 0.0
  %795 = vmatmul.mubr.f32.gmra.mxu0 %v671
  %v796 = vpop.f32.mrf.mxu0
  %v797 = vadd.f32 %v297, %v796
  %v798 = vpop.f32.mrf.mxu0
  %v799 = vadd.f32 %v299, %v798
  %800 = vmatprep.mubr.f32.mxu0 0.0
  %801 = vmatmul.mubr.f32.gmra.mxu0 %v674
  %v802 = vpop.f32.mrf.mxu0
  %v803 = vadd.f32 %v303, %v802
  %v804 = vpop.f32.mrf.mxu0
  %v805 = vadd.f32 %v305, %v804
  %806 = vmatprep.mubr.f32.mxu0 0.0
  %807 = vmatmul.mubr.f32.gmra.mxu0 %v677
  %v808 = vpop.f32.mrf.mxu0
  %v809 = vadd.f32 %v309, %v808
  %v810 = vpop.f32.mrf.mxu0
  %v811 = vadd.f32 %v311, %v810
  %812 = vmatprep.mubr.f32.mxu0 0.0
  %813 = vmatmul.mubr.f32.gmra.mxu0 %v680
  %v814 = vpop.f32.mrf.mxu0
  %v815 = vadd.f32 %v315, %v814
  %v816 = vpop.f32.mrf.mxu0
  %v817 = vadd.f32 %v317, %v816
  %818 = vdwg.mxu0
  %819 = vmatprep.subr.mxu0 0.0
  %820 = vmatpush1.msra.mxu0 0.0
  %821 = vmatprep.subr.mxu0 0.0
  %822 = vmatpush1.msra.mxu0 0.0
  %823 = vmatprep.subr.mxu0 0.0
  %824 = vmatpush1.msra.mxu0 0.0
  %825 = vmatprep.subr.mxu0 0.0
  %826 = vmatpush1.msra.mxu0 0.0
  %827 = vmatprep.subr.mxu0 0.0
  %828 = vmatpush1.msra.mxu0 0.0
  %829 = vmatprep.subr.mxu0 0.0
  %830 = vmatpush1.msra.mxu0 0.0
  %831 = vmatprep.subr.mxu0 0.0
  %832 = vmatpush1.msra.mxu0 0.0
  %833 = vmatprep.subr.mxu0 0.0
  %834 = vmatpush1.msra.mxu0 0.0
  %835 = vmatprep.subr.mxu0 0.0
  %836 = vmatpush1.msra.mxu0 0.0
  %837 = vmatprep.subr.mxu0 0.0
  %838 = vmatpush1.msra.mxu0 0.0
  %839 = vmatprep.subr.mxu0 0.0
  %840 = vmatpush1.msra.mxu0 0.0
  %841 = vmatprep.subr.mxu0 0.0
  %842 = vmatpush1.msra.mxu0 0.0
  %843 = vmatprep.subr.mxu0 0.0
  %844 = vmatpush1.msra.mxu0 0.0
  %845 = vmatprep.subr.mxu0 0.0
  %846 = vmatpush1.msra.mxu0 0.0
  %847 = vmatprep.subr.mxu0 %v692
  %848 = vmatpush1.msra.mxu0 %v689
  %849 = vmatprep.subr.mxu0 %v26
  %850 = vmatpush1.msra.mxu0 %v25
  %851 = vmatprep.subr.mxu0 0.0
  %852 = vmatpush2.msra.mxu0 0.0
  %853 = vmatprep.subr.mxu0 0.0
  %854 = vmatpush2.msra.mxu0 0.0
  %855 = vmatprep.subr.mxu0 0.0
  %856 = vmatpush2.msra.mxu0 0.0
  %857 = vmatprep.subr.mxu0 0.0
  %858 = vmatpush2.msra.mxu0 0.0
  %859 = vmatprep.subr.mxu0 0.0
  %860 = vmatpush2.msra.mxu0 0.0
  %861 = vmatprep.subr.mxu0 0.0
  %862 = vmatpush2.msra.mxu0 0.0
  %863 = vmatprep.subr.mxu0 0.0
  %864 = vmatpush2.msra.mxu0 0.0
  %865 = vmatprep.subr.mxu0 0.0
  %866 = vmatpush2.msra.mxu0 0.0
  %867 = vmatprep.subr.mxu0 0.0
  %868 = vmatpush2.msra.mxu0 0.0
  %869 = vmatprep.subr.mxu0 0.0
  %870 = vmatpush2.msra.mxu0 0.0
  %871 = vmatprep.subr.mxu0 0.0
  %872 = vmatpush2.msra.mxu0 0.0
  %873 = vmatprep.subr.mxu0 0.0
  %874 = vmatpush2.msra.mxu0 0.0
  %875 = vmatprep.subr.mxu0 0.0
  %876 = vmatpush2.msra.mxu0 0.0
  %877 = vmatprep.subr.mxu0 0.0
  %878 = vmatpush2.msra.mxu0 0.0
  %879 = vmatprep.subr.mxu0 0.0
  %880 = vmatpush2.msra.mxu0 0.0
  %881 = vmatprep.subr.mxu0 0.0
  %882 = vmatpush2.msra.mxu0 0.0
  %883 = vmatprep.mubr.f32.mxu0 0.0
  %884 = vmatmul.mubr.f32.gmra.mxu0 %v659
  %v885 = vpop.f32.mrf.mxu0
  %v886 = vadd.f32 %v386, %v885
  %v887 = vpop.f32.mrf.mxu0
  %v888 = vadd.f32 %v388, %v887
  %889 = vmatprep.mubr.f32.mxu0 0.0
  %890 = vmatmul.mubr.f32.gmra.mxu0 %v662
  %v891 = vpop.f32.mrf.mxu0
  %v892 = vadd.f32 %v392, %v891
  %v893 = vpop.f32.mrf.mxu0
  %v894 = vadd.f32 %v394, %v893
  %895 = vmatprep.mubr.f32.mxu0 0.0
  %896 = vmatmul.mubr.f32.gmra.mxu0 %v665
  %v897 = vpop.f32.mrf.mxu0
  %v898 = vadd.f32 %v398, %v897
  %v899 = vpop.f32.mrf.mxu0
  %v900 = vadd.f32 %v400, %v899
  %901 = vmatprep.mubr.f32.mxu0 0.0
  %902 = vmatmul.mubr.f32.gmra.mxu0 %v668
  %v903 = vpop.f32.mrf.mxu0
  %v904 = vadd.f32 %v404, %v903
  %v905 = vpop.f32.mrf.mxu0
  %v906 = vadd.f32 %v406, %v905
  %907 = vmatprep.mubr.f32.mxu0 0.0
  %908 = vmatmul.mubr.f32.gmra.mxu0 %v671
  %v909 = vpop.f32.mrf.mxu0
  %v910 = vadd.f32 %v410, %v909
  %v911 = vpop.f32.mrf.mxu0
  %v912 = vadd.f32 %v412, %v911
  %913 = vmatprep.mubr.f32.mxu0 0.0
  %914 = vmatmul.mubr.f32.gmra.mxu0 %v674
  %v915 = vpop.f32.mrf.mxu0
  %v916 = vadd.f32 %v416, %v915
  %v917 = vpop.f32.mrf.mxu0
  %v918 = vadd.f32 %v418, %v917
  %919 = vmatprep.mubr.f32.mxu0 0.0
  %920 = vmatmul.mubr.f32.gmra.mxu0 %v677
  %v921 = vpop.f32.mrf.mxu0
  %v922 = vadd.f32 %v422, %v921
  %v923 = vpop.f32.mrf.mxu0
  %v924 = vadd.f32 %v424, %v923
  %925 = vmatprep.mubr.f32.mxu0 0.0
  %926 = vmatmul.mubr.f32.gmra.mxu0 %v680
  %v927 = vpop.f32.mrf.mxu0
  %v928 = vadd.f32 %v428, %v927
  %v929 = vpop.f32.mrf.mxu0
  %v930 = vadd.f32 %v430, %v929
  %931 = vdwg.mxu0
  %932 = vmatprep.subr.mxu0 0.0
  %933 = vmatpush1.msra.mxu0 0.0
  %934 = vmatprep.subr.mxu0 0.0
  %935 = vmatpush1.msra.mxu0 0.0
  %936 = vmatprep.subr.mxu0 0.0
  %937 = vmatpush1.msra.mxu0 0.0
  %938 = vmatprep.subr.mxu0 0.0
  %939 = vmatpush1.msra.mxu0 0.0
  %940 = vmatprep.subr.mxu0 0.0
  %941 = vmatpush1.msra.mxu0 0.0
  %942 = vmatprep.subr.mxu0 0.0
  %943 = vmatpush1.msra.mxu0 0.0
  %944 = vmatprep.subr.mxu0 0.0
  %945 = vmatpush1.msra.mxu0 0.0
  %946 = vmatprep.subr.mxu0 0.0
  %947 = vmatpush1.msra.mxu0 0.0
  %948 = vmatprep.subr.mxu0 0.0
  %949 = vmatpush1.msra.mxu0 0.0
  %950 = vmatprep.subr.mxu0 0.0
  %951 = vmatpush1.msra.mxu0 0.0
  %952 = vmatprep.subr.mxu0 0.0
  %953 = vmatpush1.msra.mxu0 0.0
  %954 = vmatprep.subr.mxu0 0.0
  %955 = vmatpush1.msra.mxu0 0.0
  %956 = vmatprep.subr.mxu0 0.0
  %957 = vmatpush1.msra.mxu0 0.0
  %958 = vmatprep.subr.mxu0 0.0
  %959 = vmatpush1.msra.mxu0 0.0
  %960 = vmatprep.subr.mxu0 %v698
  %961 = vmatpush1.msra.mxu0 %v695
  %962 = vmatprep.subr.mxu0 %v28
  %963 = vmatpush1.msra.mxu0 %v27
  %964 = vmatprep.subr.mxu0 0.0
  %965 = vmatpush2.msra.mxu0 0.0
  %966 = vmatprep.subr.mxu0 0.0
  %967 = vmatpush2.msra.mxu0 0.0
  %968 = vmatprep.subr.mxu0 0.0
  %969 = vmatpush2.msra.mxu0 0.0
  %970 = vmatprep.subr.mxu0 0.0
  %971 = vmatpush2.msra.mxu0 0.0
  %972 = vmatprep.subr.mxu0 0.0
  %973 = vmatpush2.msra.mxu0 0.0
  %974 = vmatprep.subr.mxu0 0.0
  %975 = vmatpush2.msra.mxu0 0.0
  %976 = vmatprep.subr.mxu0 0.0
  %977 = vmatpush2.msra.mxu0 0.0
  %978 = vmatprep.subr.mxu0 0.0
  %979 = vmatpush2.msra.mxu0 0.0
  %980 = vmatprep.subr.mxu0 0.0
  %981 = vmatpush2.msra.mxu0 0.0
  %982 = vmatprep.subr.mxu0 0.0
  %983 = vmatpush2.msra.mxu0 0.0
  %984 = vmatprep.subr.mxu0 0.0
  %985 = vmatpush2.msra.mxu0 0.0
  %986 = vmatprep.subr.mxu0 0.0
  %987 = vmatpush2.msra.mxu0 0.0
  %988 = vmatprep.subr.mxu0 0.0
  %989 = vmatpush2.msra.mxu0 0.0
  %990 = vmatprep.subr.mxu0 0.0
  %991 = vmatpush2.msra.mxu0 0.0
  %992 = vmatprep.subr.mxu0 0.0
  %993 = vmatpush2.msra.mxu0 0.0
  %994 = vmatprep.subr.mxu0 0.0
  %995 = vmatpush2.msra.mxu0 0.0
  %996 = vmatprep.mubr.f32.mxu0 0.0
  %997 = vmatmul.mubr.f32.gmra.mxu0 %v659
  %v998 = vpop.f32.mrf.mxu0
  %v999 = vadd.f32 %v499, %v998
  %v1000 = vpop.f32.mrf.mxu0
  %v1001 = vadd.f32 %v501, %v1000
  %1002 = vmatprep.mubr.f32.mxu0 0.0
  %1003 = vmatmul.mubr.f32.gmra.mxu0 %v662
  %v1004 = vpop.f32.mrf.mxu0
  %v1005 = vadd.f32 %v505, %v1004
  %v1006 = vpop.f32.mrf.mxu0
  %v1007 = vadd.f32 %v507, %v1006
  %1008 = vmatprep.mubr.f32.mxu0 0.0
  %1009 = vmatmul.mubr.f32.gmra.mxu0 %v665
  %v1010 = vpop.f32.mrf.mxu0
  %v1011 = vadd.f32 %v511, %v1010
  %v1012 = vpop.f32.mrf.mxu0
  %v1013 = vadd.f32 %v513, %v1012
  %1014 = vmatprep.mubr.f32.mxu0 0.0
  %1015 = vmatmul.mubr.f32.gmra.mxu0 %v668
  %v1016 = vpop.f32.mrf.mxu0
  %v1017 = vadd.f32 %v517, %v1016
  %v1018 = vpop.f32.mrf.mxu0
  %v1019 = vadd.f32 %v519, %v1018
  %1020 = vmatprep.mubr.f32.mxu0 0.0
  %1021 = vmatmul.mubr.f32.gmra.mxu0 %v671
  %v1022 = vpop.f32.mrf.mxu0
  %v1023 = vadd.f32 %v523, %v1022
  %v1024 = vpop.f32.mrf.mxu0
  %v1025 = vadd.f32 %v525, %v1024
  %1026 = vmatprep.mubr.f32.mxu0 0.0
  %1027 = vmatmul.mubr.f32.gmra.mxu0 %v674
  %v1028 = vpop.f32.mrf.mxu0
  %v1029 = vadd.f32 %v529, %v1028
  %v1030 = vpop.f32.mrf.mxu0
  %v1031 = vadd.f32 %v531, %v1030
  %1032 = vmatprep.mubr.f32.mxu0 0.0
  %1033 = vmatmul.mubr.f32.gmra.mxu0 %v677
  %v1034 = vpop.f32.mrf.mxu0
  %v1035 = vadd.f32 %v535, %v1034
  %v1036 = vpop.f32.mrf.mxu0
  %v1037 = vadd.f32 %v537, %v1036
  %1038 = vmatprep.mubr.f32.mxu0 0.0
  %1039 = vmatmul.mubr.f32.gmra.mxu0 %v680
  %v1040 = vpop.f32.mrf.mxu0
  %v1041 = vadd.f32 %v541, %v1040
  %v1042 = vpop.f32.mrf.mxu0
  %v1043 = vadd.f32 %v543, %v1042
  %1044 = vdwg.mxu0
  %1045 = vmatprep.subr.mxu0 0.0
  %1046 = vmatpush1.msra.mxu0 0.0
  %1047 = vmatprep.subr.mxu0 0.0
  %1048 = vmatpush1.msra.mxu0 0.0
  %1049 = vmatprep.subr.mxu0 0.0
  %1050 = vmatpush1.msra.mxu0 0.0
  %1051 = vmatprep.subr.mxu0 0.0
  %1052 = vmatpush1.msra.mxu0 0.0
  %1053 = vmatprep.subr.mxu0 0.0
  %1054 = vmatpush1.msra.mxu0 0.0
  %1055 = vmatprep.subr.mxu0 0.0
  %1056 = vmatpush1.msra.mxu0 0.0
  %1057 = vmatprep.subr.mxu0 0.0
  %1058 = vmatpush1.msra.mxu0 0.0
  %1059 = vmatprep.subr.mxu0 0.0
  %1060 = vmatpush1.msra.mxu0 0.0
  %1061 = vmatprep.subr.mxu0 0.0
  %1062 = vmatpush1.msra.mxu0 0.0
  %1063 = vmatprep.subr.mxu0 0.0
  %1064 = vmatpush1.msra.mxu0 0.0
  %1065 = vmatprep.subr.mxu0 0.0
  %1066 = vmatpush1.msra.mxu0 0.0
  %1067 = vmatprep.subr.mxu0 0.0
  %1068 = vmatpush1.msra.mxu0 0.0
  %1069 = vmatprep.subr.mxu0 0.0
  %1070 = vmatpush1.msra.mxu0 0.0
  %1071 = vmatprep.subr.mxu0 0.0
  %1072 = vmatpush1.msra.mxu0 0.0
  %1073 = vmatprep.subr.mxu0 %v704
  %1074 = vmatpush1.msra.mxu0 %v701
  %1075 = vmatprep.subr.mxu0 %v30
  %1076 = vmatpush1.msra.mxu0 %v29
  %1077 = vmatprep.subr.mxu0 0.0
  %1078 = vmatpush2.msra.mxu0 0.0
  %1079 = vmatprep.subr.mxu0 0.0
  %1080 = vmatpush2.msra.mxu0 0.0
  %1081 = vmatprep.subr.mxu0 0.0
  %1082 = vmatpush2.msra.mxu0 0.0
  %1083 = vmatprep.subr.mxu0 0.0
  %1084 = vmatpush2.msra.mxu0 0.0
  %1085 = vmatprep.subr.mxu0 0.0
  %1086 = vmatpush2.msra.mxu0 0.0
  %1087 = vmatprep.subr.mxu0 0.0
  %1088 = vmatpush2.msra.mxu0 0.0
  %1089 = vmatprep.subr.mxu0 0.0
  %1090 = vmatpush2.msra.mxu0 0.0
  %1091 = vmatprep.subr.mxu0 0.0
  %1092 = vmatpush2.msra.mxu0 0.0
  %1093 = vmatprep.subr.mxu0 0.0
  %1094 = vmatpush2.msra.mxu0 0.0
  %1095 = vmatprep.subr.mxu0 0.0
  %1096 = vmatpush2.msra.mxu0 0.0
  %1097 = vmatprep.subr.mxu0 0.0
  %1098 = vmatpush2.msra.mxu0 0.0
  %1099 = vmatprep.subr.mxu0 0.0
  %1100 = vmatpush2.msra.mxu0 0.0
  %1101 = vmatprep.subr.mxu0 0.0
  %1102 = vmatpush2.msra.mxu0 0.0
  %1103 = vmatprep.subr.mxu0 0.0
  %1104 = vmatpush2.msra.mxu0 0.0
  %1105 = vmatprep.subr.mxu0 0.0
  %1106 = vmatpush2.msra.mxu0 0.0
  %1107 = vmatprep.subr.mxu0 0.0
  %1108 = vmatpush2.msra.mxu0 0.0
  %1109 = vmatprep.mubr.f32.mxu0 0.0
  %1110 = vmatmul.mubr.f32.gmra.mxu0 %v659
  %v1111 = vpop.f32.mrf.mxu0
  %v1112 = vadd.f32 %v612, %v1111
  %v1113 = vpop.f32.mrf.mxu0
  %v1114 = vadd.f32 %v614, %v1113
  %1115 = vmatprep.mubr.f32.mxu0 0.0
  %1116 = vmatmul.mubr.f32.gmra.mxu0 %v662
  %v1117 = vpop.f32.mrf.mxu0
  %v1118 = vadd.f32 %v618, %v1117
  %v1119 = vpop.f32.mrf.mxu0
  %v1120 = vadd.f32 %v620, %v1119
  %1121 = vmatprep.mubr.f32.mxu0 0.0
  %1122 = vmatmul.mubr.f32.gmra.mxu0 %v665
  %v1123 = vpop.f32.mrf.mxu0
  %v1124 = vadd.f32 %v624, %v1123
  %v1125 = vpop.f32.mrf.mxu0
  %v1126 = vadd.f32 %v626, %v1125
  %1127 = vmatprep.mubr.f32.mxu0 0.0
  %1128 = vmatmul.mubr.f32.gmra.mxu0 %v668
  %v1129 = vpop.f32.mrf.mxu0
  %v1130 = vadd.f32 %v630, %v1129
  %v1131 = vpop.f32.mrf.mxu0
  %v1132 = vadd.f32 %v632, %v1131
  %1133 = vmatprep.mubr.f32.mxu0 0.0
  %1134 = vmatmul.mubr.f32.gmra.mxu0 %v671
  %v1135 = vpop.f32.mrf.mxu0
  %v1136 = vadd.f32 %v636, %v1135
  %v1137 = vpop.f32.mrf.mxu0
  %v1138 = vadd.f32 %v638, %v1137
  %1139 = vmatprep.mubr.f32.mxu0 0.0
  %1140 = vmatmul.mubr.f32.gmra.mxu0 %v674
  %v1141 = vpop.f32.mrf.mxu0
  %v1142 = vadd.f32 %v642, %v1141
  %v1143 = vpop.f32.mrf.mxu0
  %v1144 = vadd.f32 %v644, %v1143
  %1145 = vmatprep.mubr.f32.mxu0 0.0
  %1146 = vmatmul.mubr.f32.gmra.mxu0 %v677
  %v1147 = vpop.f32.mrf.mxu0
  %v1148 = vadd.f32 %v648, %v1147
  %v1149 = vpop.f32.mrf.mxu0
  %v1150 = vadd.f32 %v650, %v1149
  %1151 = vmatprep.mubr.f32.mxu0 0.0
  %1152 = vmatmul.mubr.f32.gmra.mxu0 %v680
  %v1153 = vpop.f32.mrf.mxu0
  %v1154 = vadd.f32 %v654, %v1153
  %v1155 = vpop.f32.mrf.mxu0
  %v1156 = vadd.f32 %v656, %v1155
  %1157 = vdwg.mxu0
  %s1158 = scalar_lea.vmem %s1, 128
  %v1159 = vld [vmem:[%s1158] sm:$0xff]
  %v1160 = vld [vmem:[%s1158 + $0x8] sm:$0xff]
  %v1161 = vld [vmem:[%s1158 + $0x10] sm:$0xff]
  %v1162 = vld [vmem:[%s1158 + $0x18] sm:$0xff]
  %v1163 = vld [vmem:[%s1158 + $0x20] sm:$0xff]
  %v1164 = vld [vmem:[%s1158 + $0x28] sm:$0xff]
  %v1165 = vld [vmem:[%s1158 + $0x30] sm:$0xff]
  %v1166 = vld [vmem:[%s1158 + $0x38] sm:$0xff]
  %v1168 = vsel %vm156, %v1159, 0
  %v1171 = vsel %vm156, %v1160, 0
  %v1174 = vsel %vm156, %v1161, 0
  %v1177 = vsel %vm156, %v1162, 0
  %v1180 = vsel %vm156, %v1163, 0
  %v1183 = vsel %vm156, %v1164, 0
  %v1186 = vsel %vm156, %v1165, 0
  %v1189 = vsel %vm156, %v1166, 0
  %v1192 = vsel %vm181, %v136, 0
  %v1195 = vsel %vm181, %v134, 0
  %v1198 = vsel %vm181, %v132, 0
  %v1201 = vsel %vm181, %v130, 0
  %v1204 = vsel %vm181, %v128, 0
  %v1207 = vsel %vm181, %v126, 0
  %v1210 = vsel %vm181, %v124, 0
  %v1213 = vsel %vm181, %v138, 0
  %1215 = vmatprep.subr.mxu0 0.0
  %1216 = vmatpush1.msra.mxu0 0.0
  %1217 = vmatprep.subr.mxu0 0.0
  %1218 = vmatpush1.msra.mxu0 0.0
  %1219 = vmatprep.subr.mxu0 0.0
  %1220 = vmatpush1.msra.mxu0 0.0
  %1221 = vmatprep.subr.mxu0 0.0
  %1222 = vmatpush1.msra.mxu0 0.0
  %1223 = vmatprep.subr.mxu0 0.0
  %1224 = vmatpush1.msra.mxu0 0.0
  %1225 = vmatprep.subr.mxu0 0.0
  %1226 = vmatpush1.msra.mxu0 0.0
  %1227 = vmatprep.subr.mxu0 0.0
  %1228 = vmatpush1.msra.mxu0 0.0
  %1229 = vmatprep.subr.mxu0 0.0
  %1230 = vmatpush1.msra.mxu0 0.0
  %1231 = vmatprep.subr.mxu0 0.0
  %1232 = vmatpush1.msra.mxu0 0.0
  %1233 = vmatprep.subr.mxu0 0.0
  %1234 = vmatpush1.msra.mxu0 0.0
  %1235 = vmatprep.subr.mxu0 0.0
  %1236 = vmatpush1.msra.mxu0 0.0
  %1237 = vmatprep.subr.mxu0 0.0
  %1238 = vmatpush1.msra.mxu0 0.0
  %1239 = vmatprep.subr.mxu0 0.0
  %1240 = vmatpush1.msra.mxu0 0.0
  %1241 = vmatprep.subr.mxu0 0.0
  %1242 = vmatpush1.msra.mxu0 0.0
  %1243 = vmatprep.subr.mxu0 %v1195
  %1244 = vmatpush1.msra.mxu0 %v1192
  %1245 = vmatprep.subr.mxu0 %v133
  %1246 = vmatpush1.msra.mxu0 %v135
  %1247 = vmatprep.subr.mxu0 0.0
  %1248 = vmatpush2.msra.mxu0 0.0
  %1249 = vmatprep.subr.mxu0 0.0
  %1250 = vmatpush2.msra.mxu0 0.0
  %1251 = vmatprep.subr.mxu0 0.0
  %1252 = vmatpush2.msra.mxu0 0.0
  %1253 = vmatprep.subr.mxu0 0.0
  %1254 = vmatpush2.msra.mxu0 0.0
  %1255 = vmatprep.subr.mxu0 0.0
  %1256 = vmatpush2.msra.mxu0 0.0
  %1257 = vmatprep.subr.mxu0 0.0
  %1258 = vmatpush2.msra.mxu0 0.0
  %1259 = vmatprep.subr.mxu0 0.0
  %1260 = vmatpush2.msra.mxu0 0.0
  %1261 = vmatprep.subr.mxu0 0.0
  %1262 = vmatpush2.msra.mxu0 0.0
  %1263 = vmatprep.subr.mxu0 0.0
  %1264 = vmatpush2.msra.mxu0 0.0
  %1265 = vmatprep.subr.mxu0 0.0
  %1266 = vmatpush2.msra.mxu0 0.0
  %1267 = vmatprep.subr.mxu0 0.0
  %1268 = vmatpush2.msra.mxu0 0.0
  %1269 = vmatprep.subr.mxu0 0.0
  %1270 = vmatpush2.msra.mxu0 0.0
  %1271 = vmatprep.subr.mxu0 0.0
  %1272 = vmatpush2.msra.mxu0 0.0
  %1273 = vmatprep.subr.mxu0 0.0
  %1274 = vmatpush2.msra.mxu0 0.0
  %1275 = vmatprep.subr.mxu0 0.0
  %1276 = vmatpush2.msra.mxu0 0.0
  %1277 = vmatprep.subr.mxu0 0.0
  %1278 = vmatpush2.msra.mxu0 0.0
  %1279 = vmatprep.mubr.f32.mxu0 0.0
  %1280 = vmatmul.mubr.f32.gmra.mxu0 %v1168
  %v1281 = vpop.f32.mrf.mxu0
  %v1282 = vadd.f32 0.0, %v1281
  %v1283 = vpop.f32.mrf.mxu0
  %v1284 = vadd.f32 0.0, %v1283
  %1285 = vmatprep.mubr.f32.mxu0 0.0
  %1286 = vmatmul.mubr.f32.gmra.mxu0 %v1171
  %v1287 = vpop.f32.mrf.mxu0
  %v1288 = vadd.f32 0.0, %v1287
  %v1289 = vpop.f32.mrf.mxu0
  %v1290 = vadd.f32 0.0, %v1289
  %1291 = vmatprep.mubr.f32.mxu0 0.0
  %1292 = vmatmul.mubr.f32.gmra.mxu0 %v1174
  %v1293 = vpop.f32.mrf.mxu0
  %v1294 = vadd.f32 0.0, %v1293
  %v1295 = vpop.f32.mrf.mxu0
  %v1296 = vadd.f32 0.0, %v1295
  %1297 = vmatprep.mubr.f32.mxu0 0.0
  %1298 = vmatmul.mubr.f32.gmra.mxu0 %v1177
  %v1299 = vpop.f32.mrf.mxu0
  %v1300 = vadd.f32 0.0, %v1299
  %v1301 = vpop.f32.mrf.mxu0
  %v1302 = vadd.f32 0.0, %v1301
  %1303 = vmatprep.mubr.f32.mxu0 0.0
  %1304 = vmatmul.mubr.f32.gmra.mxu0 %v1180
  %v1305 = vpop.f32.mrf.mxu0
  %v1306 = vadd.f32 0.0, %v1305
  %v1307 = vpop.f32.mrf.mxu0
  %v1308 = vadd.f32 0.0, %v1307
  %1309 = vmatprep.mubr.f32.mxu0 0.0
  %1310 = vmatmul.mubr.f32.gmra.mxu0 %v1183
  %v1311 = vpop.f32.mrf.mxu0
  %v1312 = vadd.f32 0.0, %v1311
  %v1313 = vpop.f32.mrf.mxu0
  %v1314 = vadd.f32 0.0, %v1313
  %1315 = vmatprep.mubr.f32.mxu0 0.0
  %1316 = vmatmul.mubr.f32.gmra.mxu0 %v1186
  %v1317 = vpop.f32.mrf.mxu0
  %v1318 = vadd.f32 0.0, %v1317
  %v1319 = vpop.f32.mrf.mxu0
  %v1320 = vadd.f32 0.0, %v1319
  %1321 = vmatprep.mubr.f32.mxu0 0.0
  %1322 = vmatmul.mubr.f32.gmra.mxu0 %v1189
  %v1323 = vpop.f32.mrf.mxu0
  %v1324 = vadd.f32 0.0, %v1323
  %v1325 = vpop.f32.mrf.mxu0
  %v1326 = vadd.f32 0.0, %v1325
  %1327 = vdwg.mxu0
  %1328 = vmatprep.subr.mxu0 0.0
  %1329 = vmatpush1.msra.mxu0 0.0
  %1330 = vmatprep.subr.mxu0 0.0
  %1331 = vmatpush1.msra.mxu0 0.0
  %1332 = vmatprep.subr.mxu0 0.0
  %1333 = vmatpush1.msra.mxu0 0.0
  %1334 = vmatprep.subr.mxu0 0.0
  %1335 = vmatpush1.msra.mxu0 0.0
  %1336 = vmatprep.subr.mxu0 0.0
  %1337 = vmatpush1.msra.mxu0 0.0
  %1338 = vmatprep.subr.mxu0 0.0
  %1339 = vmatpush1.msra.mxu0 0.0
  %1340 = vmatprep.subr.mxu0 0.0
  %1341 = vmatpush1.msra.mxu0 0.0
  %1342 = vmatprep.subr.mxu0 0.0
  %1343 = vmatpush1.msra.mxu0 0.0
  %1344 = vmatprep.subr.mxu0 0.0
  %1345 = vmatpush1.msra.mxu0 0.0
  %1346 = vmatprep.subr.mxu0 0.0
  %1347 = vmatpush1.msra.mxu0 0.0
  %1348 = vmatprep.subr.mxu0 0.0
  %1349 = vmatpush1.msra.mxu0 0.0
  %1350 = vmatprep.subr.mxu0 0.0
  %1351 = vmatpush1.msra.mxu0 0.0
  %1352 = vmatprep.subr.mxu0 0.0
  %1353 = vmatpush1.msra.mxu0 0.0
  %1354 = vmatprep.subr.mxu0 0.0
  %1355 = vmatpush1.msra.mxu0 0.0
  %1356 = vmatprep.subr.mxu0 %v1201
  %1357 = vmatpush1.msra.mxu0 %v1198
  %1358 = vmatprep.subr.mxu0 %v129
  %1359 = vmatpush1.msra.mxu0 %v131
  %1360 = vmatprep.subr.mxu0 0.0
  %1361 = vmatpush2.msra.mxu0 0.0
  %1362 = vmatprep.subr.mxu0 0.0
  %1363 = vmatpush2.msra.mxu0 0.0
  %1364 = vmatprep.subr.mxu0 0.0
  %1365 = vmatpush2.msra.mxu0 0.0
  %1366 = vmatprep.subr.mxu0 0.0
  %1367 = vmatpush2.msra.mxu0 0.0
  %1368 = vmatprep.subr.mxu0 0.0
  %1369 = vmatpush2.msra.mxu0 0.0
  %1370 = vmatprep.subr.mxu0 0.0
  %1371 = vmatpush2.msra.mxu0 0.0
  %1372 = vmatprep.subr.mxu0 0.0
  %1373 = vmatpush2.msra.mxu0 0.0
  %1374 = vmatprep.subr.mxu0 0.0
  %1375 = vmatpush2.msra.mxu0 0.0
  %1376 = vmatprep.subr.mxu0 0.0
  %1377 = vmatpush2.msra.mxu0 0.0
  %1378 = vmatprep.subr.mxu0 0.0
  %1379 = vmatpush2.msra.mxu0 0.0
  %1380 = vmatprep.subr.mxu0 0.0
  %1381 = vmatpush2.msra.mxu0 0.0
  %1382 = vmatprep.subr.mxu0 0.0
  %1383 = vmatpush2.msra.mxu0 0.0
  %1384 = vmatprep.subr.mxu0 0.0
  %1385 = vmatpush2.msra.mxu0 0.0
  %1386 = vmatprep.subr.mxu0 0.0
  %1387 = vmatpush2.msra.mxu0 0.0
  %1388 = vmatprep.subr.mxu0 0.0
  %1389 = vmatpush2.msra.mxu0 0.0
  %1390 = vmatprep.subr.mxu0 0.0
  %1391 = vmatpush2.msra.mxu0 0.0
  %1392 = vmatprep.mubr.f32.mxu0 0.0
  %1393 = vmatmul.mubr.f32.gmra.mxu0 %v1168
  %v1394 = vpop.f32.mrf.mxu0
  %v1395 = vadd.f32 0.0, %v1394
  %v1396 = vpop.f32.mrf.mxu0
  %v1397 = vadd.f32 0.0, %v1396
  %1398 = vmatprep.mubr.f32.mxu0 0.0
  %1399 = vmatmul.mubr.f32.gmra.mxu0 %v1171
  %v1400 = vpop.f32.mrf.mxu0
  %v1401 = vadd.f32 0.0, %v1400
  %v1402 = vpop.f32.mrf.mxu0
  %v1403 = vadd.f32 0.0, %v1402
  %1404 = vmatprep.mubr.f32.mxu0 0.0
  %1405 = vmatmul.mubr.f32.gmra.mxu0 %v1174
  %v1406 = vpop.f32.mrf.mxu0
  %v1407 = vadd.f32 0.0, %v1406
  %v1408 = vpop.f32.mrf.mxu0
  %v1409 = vadd.f32 0.0, %v1408
  %1410 = vmatprep.mubr.f32.mxu0 0.0
  %1411 = vmatmul.mubr.f32.gmra.mxu0 %v1177
  %v1412 = vpop.f32.mrf.mxu0
  %v1413 = vadd.f32 0.0, %v1412
  %v1414 = vpop.f32.mrf.mxu0
  %v1415 = vadd.f32 0.0, %v1414
  %1416 = vmatprep.mubr.f32.mxu0 0.0
  %1417 = vmatmul.mubr.f32.gmra.mxu0 %v1180
  %v1418 = vpop.f32.mrf.mxu0
  %v1419 = vadd.f32 0.0, %v1418
  %v1420 = vpop.f32.mrf.mxu0
  %v1421 = vadd.f32 0.0, %v1420
  %1422 = vmatprep.mubr.f32.mxu0 0.0
  %1423 = vmatmul.mubr.f32.gmra.mxu0 %v1183
  %v1424 = vpop.f32.mrf.mxu0
  %v1425 = vadd.f32 0.0, %v1424
  %v1426 = vpop.f32.mrf.mxu0
  %v1427 = vadd.f32 0.0, %v1426
  %1428 = vmatprep.mubr.f32.mxu0 0.0
  %1429 = vmatmul.mubr.f32.gmra.mxu0 %v1186
  %v1430 = vpop.f32.mrf.mxu0
  %v1431 = vadd.f32 0.0, %v1430
  %v1432 = vpop.f32.mrf.mxu0
  %v1433 = vadd.f32 0.0, %v1432
  %1434 = vmatprep.mubr.f32.mxu0 0.0
  %1435 = vmatmul.mubr.f32.gmra.mxu0 %v1189
  %v1436 = vpop.f32.mrf.mxu0
  %v1437 = vadd.f32 0.0, %v1436
  %v1438 = vpop.f32.mrf.mxu0
  %v1439 = vadd.f32 0.0, %v1438
  %1440 = vdwg.mxu0
  %1441 = vmatprep.subr.mxu0 0.0
  %1442 = vmatpush1.msra.mxu0 0.0
  %1443 = vmatprep.subr.mxu0 0.0
  %1444 = vmatpush1.msra.mxu0 0.0
  %1445 = vmatprep.subr.mxu0 0.0
  %1446 = vmatpush1.msra.mxu0 0.0
  %1447 = vmatprep.subr.mxu0 0.0
  %1448 = vmatpush1.msra.mxu0 0.0
  %1449 = vmatprep.subr.mxu0 0.0
  %1450 = vmatpush1.msra.mxu0 0.0
  %1451 = vmatprep.subr.mxu0 0.0
  %1452 = vmatpush1.msra.mxu0 0.0
  %1453 = vmatprep.subr.mxu0 0.0
  %1454 = vmatpush1.msra.mxu0 0.0
  %1455 = vmatprep.subr.mxu0 0.0
  %1456 = vmatpush1.msra.mxu0 0.0
  %1457 = vmatprep.subr.mxu0 0.0
  %1458 = vmatpush1.msra.mxu0 0.0
  %1459 = vmatprep.subr.mxu0 0.0
  %1460 = vmatpush1.msra.mxu0 0.0
  %1461 = vmatprep.subr.mxu0 0.0
  %1462 = vmatpush1.msra.mxu0 0.0
  %1463 = vmatprep.subr.mxu0 0.0
  %1464 = vmatpush1.msra.mxu0 0.0
  %1465 = vmatprep.subr.mxu0 0.0
  %1466 = vmatpush1.msra.mxu0 0.0
  %1467 = vmatprep.subr.mxu0 0.0
  %1468 = vmatpush1.msra.mxu0 0.0
  %1469 = vmatprep.subr.mxu0 %v1207
  %1470 = vmatpush1.msra.mxu0 %v1204
  %1471 = vmatprep.subr.mxu0 %v125
  %1472 = vmatpush1.msra.mxu0 %v127
  %1473 = vmatprep.subr.mxu0 0.0
  %1474 = vmatpush2.msra.mxu0 0.0
  %1475 = vmatprep.subr.mxu0 0.0
  %1476 = vmatpush2.msra.mxu0 0.0
  %1477 = vmatprep.subr.mxu0 0.0
  %1478 = vmatpush2.msra.mxu0 0.0
  %1479 = vmatprep.subr.mxu0 0.0
  %1480 = vmatpush2.msra.mxu0 0.0
  %1481 = vmatprep.subr.mxu0 0.0
  %1482 = vmatpush2.msra.mxu0 0.0
  %1483 = vmatprep.subr.mxu0 0.0
  %1484 = vmatpush2.msra.mxu0 0.0
  %1485 = vmatprep.subr.mxu0 0.0
  %1486 = vmatpush2.msra.mxu0 0.0
  %1487 = vmatprep.subr.mxu0 0.0
  %1488 = vmatpush2.msra.mxu0 0.0
  %1489 = vmatprep.subr.mxu0 0.0
  %1490 = vmatpush2.msra.mxu0 0.0
  %1491 = vmatprep.subr.mxu0 0.0
  %1492 = vmatpush2.msra.mxu0 0.0
  %1493 = vmatprep.subr.mxu0 0.0
  %1494 = vmatpush2.msra.mxu0 0.0
  %1495 = vmatprep.subr.mxu0 0.0
  %1496 = vmatpush2.msra.mxu0 0.0
  %1497 = vmatprep.subr.mxu0 0.0
  %1498 = vmatpush2.msra.mxu0 0.0
  %1499 = vmatprep.subr.mxu0 0.0
  %1500 = vmatpush2.msra.mxu0 0.0
  %1501 = vmatprep.subr.mxu0 0.0
  %1502 = vmatpush2.msra.mxu0 0.0
  %1503 = vmatprep.subr.mxu0 0.0
  %1504 = vmatpush2.msra.mxu0 0.0
  %1505 = vmatprep.mubr.f32.mxu0 0.0
  %1506 = vmatmul.mubr.f32.gmra.mxu0 %v1168
  %v1507 = vpop.f32.mrf.mxu0
  %v1508 = vadd.f32 0.0, %v1507
  %v1509 = vpop.f32.mrf.mxu0
  %v1510 = vadd.f32 0.0, %v1509
  %1511 = vmatprep.mubr.f32.mxu0 0.0
  %1512 = vmatmul.mubr.f32.gmra.mxu0 %v1171
  %v1513 = vpop.f32.mrf.mxu0
  %v1514 = vadd.f32 0.0, %v1513
  %v1515 = vpop.f32.mrf.mxu0
  %v1516 = vadd.f32 0.0, %v1515
  %1517 = vmatprep.mubr.f32.mxu0 0.0
  %1518 = vmatmul.mubr.f32.gmra.mxu0 %v1174
  %v1519 = vpop.f32.mrf.mxu0
  %v1520 = vadd.f32 0.0, %v1519
  %v1521 = vpop.f32.mrf.mxu0
  %v1522 = vadd.f32 0.0, %v1521
  %1523 = vmatprep.mubr.f32.mxu0 0.0
  %1524 = vmatmul.mubr.f32.gmra.mxu0 %v1177
  %v1525 = vpop.f32.mrf.mxu0
  %v1526 = vadd.f32 0.0, %v1525
  %v1527 = vpop.f32.mrf.mxu0
  %v1528 = vadd.f32 0.0, %v1527
  %1529 = vmatprep.mubr.f32.mxu0 0.0
  %1530 = vmatmul.mubr.f32.gmra.mxu0 %v1180
  %v1531 = vpop.f32.mrf.mxu0
  %v1532 = vadd.f32 0.0, %v1531
  %v1533 = vpop.f32.mrf.mxu0
  %v1534 = vadd.f32 0.0, %v1533
  %1535 = vmatprep.mubr.f32.mxu0 0.0
  %1536 = vmatmul.mubr.f32.gmra.mxu0 %v1183
  %v1537 = vpop.f32.mrf.mxu0
  %v1538 = vadd.f32 0.0, %v1537
  %v1539 = vpop.f32.mrf.mxu0
  %v1540 = vadd.f32 0.0, %v1539
  %1541 = vmatprep.mubr.f32.mxu0 0.0
  %1542 = vmatmul.mubr.f32.gmra.mxu0 %v1186
  %v1543 = vpop.f32.mrf.mxu0
  %v1544 = vadd.f32 0.0, %v1543
  %v1545 = vpop.f32.mrf.mxu0
  %v1546 = vadd.f32 0.0, %v1545
  %1547 = vmatprep.mubr.f32.mxu0 0.0
  %1548 = vmatmul.mubr.f32.gmra.mxu0 %v1189
  %v1549 = vpop.f32.mrf.mxu0
  %v1550 = vadd.f32 0.0, %v1549
  %v1551 = vpop.f32.mrf.mxu0
  %v1552 = vadd.f32 0.0, %v1551
  %1553 = vdwg.mxu0
  %1554 = vmatprep.subr.mxu0 0.0
  %1555 = vmatpush1.msra.mxu0 0.0
  %1556 = vmatprep.subr.mxu0 0.0
  %1557 = vmatpush1.msra.mxu0 0.0
  %1558 = vmatprep.subr.mxu0 0.0
  %1559 = vmatpush1.msra.mxu0 0.0
  %1560 = vmatprep.subr.mxu0 0.0
  %1561 = vmatpush1.msra.mxu0 0.0
  %1562 = vmatprep.subr.mxu0 0.0
  %1563 = vmatpush1.msra.mxu0 0.0
  %1564 = vmatprep.subr.mxu0 0.0
  %1565 = vmatpush1.msra.mxu0 0.0
  %1566 = vmatprep.subr.mxu0 0.0
  %1567 = vmatpush1.msra.mxu0 0.0
  %1568 = vmatprep.subr.mxu0 0.0
  %1569 = vmatpush1.msra.mxu0 0.0
  %1570 = vmatprep.subr.mxu0 0.0
  %1571 = vmatpush1.msra.mxu0 0.0
  %1572 = vmatprep.subr.mxu0 0.0
  %1573 = vmatpush1.msra.mxu0 0.0
  %1574 = vmatprep.subr.mxu0 0.0
  %1575 = vmatpush1.msra.mxu0 0.0
  %1576 = vmatprep.subr.mxu0 0.0
  %1577 = vmatpush1.msra.mxu0 0.0
  %1578 = vmatprep.subr.mxu0 0.0
  %1579 = vmatpush1.msra.mxu0 0.0
  %1580 = vmatprep.subr.mxu0 0.0
  %1581 = vmatpush1.msra.mxu0 0.0
  %1582 = vmatprep.subr.mxu0 %v1213
  %1583 = vmatpush1.msra.mxu0 %v1210
  %1584 = vmatprep.subr.mxu0 %v137
  %1585 = vmatpush1.msra.mxu0 %v123
  %1586 = vmatprep.subr.mxu0 0.0
  %1587 = vmatpush2.msra.mxu0 0.0
  %1588 = vmatprep.subr.mxu0 0.0
  %1589 = vmatpush2.msra.mxu0 0.0
  %1590 = vmatprep.subr.mxu0 0.0
  %1591 = vmatpush2.msra.mxu0 0.0
  %1592 = vmatprep.subr.mxu0 0.0
  %1593 = vmatpush2.msra.mxu0 0.0
  %1594 = vmatprep.subr.mxu0 0.0
  %1595 = vmatpush2.msra.mxu0 0.0
  %1596 = vmatprep.subr.mxu0 0.0
  %1597 = vmatpush2.msra.mxu0 0.0
  %1598 = vmatprep.subr.mxu0 0.0
  %1599 = vmatpush2.msra.mxu0 0.0
  %1600 = vmatprep.subr.mxu0 0.0
  %1601 = vmatpush2.msra.mxu0 0.0
  %1602 = vmatprep.subr.mxu0 0.0
  %1603 = vmatpush2.msra.mxu0 0.0
  %1604 = vmatprep.subr.mxu0 0.0
  %1605 = vmatpush2.msra.mxu0 0.0
  %1606 = vmatprep.subr.mxu0 0.0
  %1607 = vmatpush2.msra.mxu0 0.0
  %1608 = vmatprep.subr.mxu0 0.0
  %1609 = vmatpush2.msra.mxu0 0.0
  %1610 = vmatprep.subr.mxu0 0.0
  %1611 = vmatpush2.msra.mxu0 0.0
  %1612 = vmatprep.subr.mxu0 0.0
  %1613 = vmatpush2.msra.mxu0 0.0
  %1614 = vmatprep.subr.mxu0 0.0
  %1615 = vmatpush2.msra.mxu0 0.0
  %1616 = vmatprep.subr.mxu0 0.0
  %1617 = vmatpush2.msra.mxu0 0.0
  %1618 = vmatprep.mubr.f32.mxu0 0.0
  %1619 = vmatmul.mubr.f32.gmra.mxu0 %v1168
  %v1620 = vpop.f32.mrf.mxu0
  %v1621 = vadd.f32 0.0, %v1620
  %v1622 = vpop.f32.mrf.mxu0
  %v1623 = vadd.f32 0.0, %v1622
  %1624 = vmatprep.mubr.f32.mxu0 0.0
  %1625 = vmatmul.mubr.f32.gmra.mxu0 %v1171
  %v1626 = vpop.f32.mrf.mxu0
  %v1627 = vadd.f32 0.0, %v1626
  %v1628 = vpop.f32.mrf.mxu0
  %v1629 = vadd.f32 0.0, %v1628
  %1630 = vmatprep.mubr.f32.mxu0 0.0
  %1631 = vmatmul.mubr.f32.gmra.mxu0 %v1174
  %v1632 = vpop.f32.mrf.mxu0
  %v1633 = vadd.f32 0.0, %v1632
  %v1634 = vpop.f32.mrf.mxu0
  %v1635 = vadd.f32 0.0, %v1634
  %1636 = vmatprep.mubr.f32.mxu0 0.0
  %1637 = vmatmul.mubr.f32.gmra.mxu0 %v1177
  %v1638 = vpop.f32.mrf.mxu0
  %v1639 = vadd.f32 0.0, %v1638
  %v1640 = vpop.f32.mrf.mxu0
  %v1641 = vadd.f32 0.0, %v1640
  %1642 = vmatprep.mubr.f32.mxu0 0.0
  %1643 = vmatmul.mubr.f32.gmra.mxu0 %v1180
  %v1644 = vpop.f32.mrf.mxu0
  %v1645 = vadd.f32 0.0, %v1644
  %v1646 = vpop.f32.mrf.mxu0
  %v1647 = vadd.f32 0.0, %v1646
  %1648 = vmatprep.mubr.f32.mxu0 0.0
  %1649 = vmatmul.mubr.f32.gmra.mxu0 %v1183
  %v1650 = vpop.f32.mrf.mxu0
  %v1651 = vadd.f32 0.0, %v1650
  %v1652 = vpop.f32.mrf.mxu0
  %v1653 = vadd.f32 0.0, %v1652
  %1654 = vmatprep.mubr.f32.mxu0 0.0
  %1655 = vmatmul.mubr.f32.gmra.mxu0 %v1186
  %v1656 = vpop.f32.mrf.mxu0
  %v1657 = vadd.f32 0.0, %v1656
  %v1658 = vpop.f32.mrf.mxu0
  %v1659 = vadd.f32 0.0, %v1658
  %1660 = vmatprep.mubr.f32.mxu0 0.0
  %1661 = vmatmul.mubr.f32.gmra.mxu0 %v1189
  %v1662 = vpop.f32.mrf.mxu0
  %v1663 = vadd.f32 0.0, %v1662
  %v1664 = vpop.f32.mrf.mxu0
  %v1665 = vadd.f32 0.0, %v1664
  %1666 = vdwg.mxu0
  %v1667 = vadd.f32 %v773, %v1282
  %v1668 = vadd.f32 %v775, %v1284
  %v1669 = vadd.f32 %v886, %v1395
  %v1670 = vadd.f32 %v888, %v1397
  %v1671 = vadd.f32 %v999, %v1508
  %v1672 = vadd.f32 %v1001, %v1510
  %v1673 = vadd.f32 %v1112, %v1621
  %v1674 = vadd.f32 %v1114, %v1623
  %v1675 = vadd.f32 %v779, %v1288
  %v1676 = vadd.f32 %v781, %v1290
  %v1677 = vadd.f32 %v892, %v1401
  %v1678 = vadd.f32 %v894, %v1403
  %v1679 = vadd.f32 %v1005, %v1514
  %v1680 = vadd.f32 %v1007, %v1516
  %v1681 = vadd.f32 %v1118, %v1627
  %v1682 = vadd.f32 %v1120, %v1629
  %v1683 = vadd.f32 %v785, %v1294
  %v1684 = vadd.f32 %v787, %v1296
  %v1685 = vadd.f32 %v898, %v1407
  %v1686 = vadd.f32 %v900, %v1409
  %v1687 = vadd.f32 %v1011, %v1520
  %v1688 = vadd.f32 %v1013, %v1522
  %v1689 = vadd.f32 %v1124, %v1633
  %v1690 = vadd.f32 %v1126, %v1635
  %v1691 = vadd.f32 %v791, %v1300
  %v1692 = vadd.f32 %v793, %v1302
  %v1693 = vadd.f32 %v904, %v1413
  %v1694 = vadd.f32 %v906, %v1415
  %v1695 = vadd.f32 %v1017, %v1526
  %v1696 = vadd.f32 %v1019, %v1528
  %v1697 = vadd.f32 %v1130, %v1639
  %v1698 = vadd.f32 %v1132, %v1641
  %v1699 = vadd.f32 %v797, %v1306
  %v1700 = vadd.f32 %v799, %v1308
  %v1701 = vadd.f32 %v910, %v1419
  %v1702 = vadd.f32 %v912, %v1421
  %v1703 = vadd.f32 %v1023, %v1532
  %v1704 = vadd.f32 %v1025, %v1534
  %v1705 = vadd.f32 %v1136, %v1645
  %v1706 = vadd.f32 %v1138, %v1647
  %v1707 = vadd.f32 %v803, %v1312
  %v1708 = vadd.f32 %v805, %v1314
  %v1709 = vadd.f32 %v916, %v1425
  %v1710 = vadd.f32 %v918, %v1427
  %v1711 = vadd.f32 %v1029, %v1538
  %v1712 = vadd.f32 %v1031, %v1540
  %v1713 = vadd.f32 %v1142, %v1651
  %v1714 = vadd.f32 %v1144, %v1653
  %v1715 = vadd.f32 %v809, %v1318
  %v1716 = vadd.f32 %v811, %v1320
  %v1717 = vadd.f32 %v922, %v1431
  %v1718 = vadd.f32 %v924, %v1433
  %v1719 = vadd.f32 %v1035, %v1544
  %v1720 = vadd.f32 %v1037, %v1546
  %v1721 = vadd.f32 %v1148, %v1657
  %v1722 = vadd.f32 %v1150, %v1659
  %v1723 = vadd.f32 %v815, %v1324
  %v1724 = vadd.f32 %v817, %v1326
  %v1725 = vadd.f32 %v928, %v1437
  %v1726 = vadd.f32 %v930, %v1439
  %v1727 = vadd.f32 %v1041, %v1550
  %v1728 = vadd.f32 %v1043, %v1552
  %v1729 = vadd.f32 %v1154, %v1663
  %v1730 = vadd.f32 %v1156, %v1665
  %v1731 = vld [vmem:[%s2] sm:$0xff]
  %v1732 = vld [vmem:[%s2 + $0x8] sm:$0xff]
  %v1733 = vld [vmem:[%s2 + $0x10] sm:$0xff]
  %v1734 = vld [vmem:[%s2 + $0x18] sm:$0xff]
  %v1735 = vld [vmem:[%s2 + $0x20] sm:$0xff]
  %v1736 = vld [vmem:[%s2 + $0x28] sm:$0xff]
  %v1737 = vld [vmem:[%s2 + $0x30] sm:$0xff]
  %v1738 = vld [vmem:[%s2 + $0x38] sm:$0xff]
  %1740 = vset.pattern.permute.xlu0 0
  %1741 = vperm.xlu0 %1740, %v1731
  %v1742 = vpop.permute.xlu0 %1741
  %1745 = vset.pattern.permute.xlu0 0
  %1746 = vperm.xlu0 %1745, %v1732
  %v1747 = vpop.permute.xlu0 %1746
  %1750 = vset.pattern.permute.xlu0 0
  %1751 = vperm.xlu0 %1750, %v1733
  %v1752 = vpop.permute.xlu0 %1751
  %1755 = vset.pattern.permute.xlu0 0
  %1756 = vperm.xlu0 %1755, %v1734
  %v1757 = vpop.permute.xlu0 %1756
  %1760 = vset.pattern.permute.xlu0 0
  %1761 = vperm.xlu0 %1760, %v1735
  %v1762 = vpop.permute.xlu0 %1761
  %1765 = vset.pattern.permute.xlu0 0
  %1766 = vperm.xlu0 %1765, %v1736
  %v1767 = vpop.permute.xlu0 %1766
  %1770 = vset.pattern.permute.xlu0 0
  %1771 = vperm.xlu0 %1770, %v1737
  %v1772 = vpop.permute.xlu0 %1771
  %1775 = vset.pattern.permute.xlu0 0
  %1776 = vperm.xlu0 %1775, %v1738
  %v1777 = vpop.permute.xlu0 %1776
  %v1779 = vadd.f32 %v1667, %v1742
  %v1780 = vadd.f32 %v1668, %v1742
  %v1781 = vadd.f32 %v1669, %v1742
  %v1782 = vadd.f32 %v1670, %v1742
  %v1783 = vadd.f32 %v1671, %v1742
  %v1784 = vadd.f32 %v1672, %v1742
  %v1785 = vadd.f32 %v1673, %v1742
  %v1786 = vadd.f32 %v1674, %v1742
  %v1787 = vadd.f32 %v1675, %v1747
  %v1788 = vadd.f32 %v1676, %v1747
  %v1789 = vadd.f32 %v1677, %v1747
  %v1790 = vadd.f32 %v1678, %v1747
  %v1791 = vadd.f32 %v1679, %v1747
  %v1792 = vadd.f32 %v1680, %v1747
  %v1793 = vadd.f32 %v1681, %v1747
  %v1794 = vadd.f32 %v1682, %v1747
  %v1795 = vadd.f32 %v1683, %v1752
  %v1796 = vadd.f32 %v1684, %v1752
  %v1797 = vadd.f32 %v1685, %v1752
  %v1798 = vadd.f32 %v1686, %v1752
  %v1799 = vadd.f32 %v1687, %v1752
  %v1800 = vadd.f32 %v1688, %v1752
  %v1801 = vadd.f32 %v1689, %v1752
  %v1802 = vadd.f32 %v1690, %v1752
  %v1803 = vadd.f32 %v1691, %v1757
  %v1804 = vadd.f32 %v1692, %v1757
  %v1805 = vadd.f32 %v1693, %v1757
  %v1806 = vadd.f32 %v1694, %v1757
  %v1807 = vadd.f32 %v1695, %v1757
  %v1808 = vadd.f32 %v1696, %v1757
  %v1809 = vadd.f32 %v1697, %v1757
  %v1810 = vadd.f32 %v1698, %v1757
  %v1811 = vadd.f32 %v1699, %v1762
  %v1812 = vadd.f32 %v1700, %v1762
  %v1813 = vadd.f32 %v1701, %v1762
  %v1814 = vadd.f32 %v1702, %v1762
  %v1815 = vadd.f32 %v1703, %v1762
  %v1816 = vadd.f32 %v1704, %v1762
  %v1817 = vadd.f32 %v1705, %v1762
  %v1818 = vadd.f32 %v1706, %v1762
  %v1819 = vadd.f32 %v1707, %v1767
  %v1820 = vadd.f32 %v1708, %v1767
  %v1821 = vadd.f32 %v1709, %v1767
  %v1822 = vadd.f32 %v1710, %v1767
  %v1823 = vadd.f32 %v1711, %v1767
  %v1824 = vadd.f32 %v1712, %v1767
  %v1825 = vadd.f32 %v1713, %v1767
  %v1826 = vadd.f32 %v1714, %v1767
  %v1827 = vadd.f32 %v1715, %v1772
  %v1828 = vadd.f32 %v1716, %v1772
  %v1829 = vadd.f32 %v1717, %v1772
  %v1830 = vadd.f32 %v1718, %v1772
  %v1831 = vadd.f32 %v1719, %v1772
  %v1832 = vadd.f32 %v1720, %v1772
  %v1833 = vadd.f32 %v1721, %v1772
  %v1834 = vadd.f32 %v1722, %v1772
  %v1835 = vadd.f32 %v1723, %v1777
  %v1836 = vadd.f32 %v1724, %v1777
  %v1837 = vadd.f32 %v1725, %v1777
  %v1838 = vadd.f32 %v1726, %v1777
  %v1839 = vadd.f32 %v1727, %v1777
  %v1840 = vadd.f32 %v1728, %v1777
  %v1841 = vadd.f32 %v1729, %v1777
  %v1842 = vadd.f32 %v1730, %v1777
  %v1843 = vmax.f32 %v1779, 0.0
  %v1844 = vmax.f32 %v1780, 0.0
  %v1845 = vmax.f32 %v1781, 0.0
  %v1846 = vmax.f32 %v1782, 0.0
  %v1847 = vmax.f32 %v1783, 0.0
  %v1848 = vmax.f32 %v1784, 0.0
  %v1849 = vmax.f32 %v1785, 0.0
  %v1850 = vmax.f32 %v1786, 0.0
  %v1851 = vmax.f32 %v1787, 0.0
  %v1852 = vmax.f32 %v1788, 0.0
  %v1853 = vmax.f32 %v1789, 0.0
  %v1854 = vmax.f32 %v1790, 0.0
  %v1855 = vmax.f32 %v1791, 0.0
  %v1856 = vmax.f32 %v1792, 0.0
  %v1857 = vmax.f32 %v1793, 0.0
  %v1858 = vmax.f32 %v1794, 0.0
  %v1859 = vmax.f32 %v1795, 0.0
  %v1860 = vmax.f32 %v1796, 0.0
  %v1861 = vmax.f32 %v1797, 0.0
  %v1862 = vmax.f32 %v1798, 0.0
  %v1863 = vmax.f32 %v1799, 0.0
  %v1864 = vmax.f32 %v1800, 0.0
  %v1865 = vmax.f32 %v1801, 0.0
  %v1866 = vmax.f32 %v1802, 0.0
  %v1867 = vmax.f32 %v1803, 0.0
  %v1868 = vmax.f32 %v1804, 0.0
  %v1869 = vmax.f32 %v1805, 0.0
  %v1870 = vmax.f32 %v1806, 0.0
  %v1871 = vmax.f32 %v1807, 0.0
  %v1872 = vmax.f32 %v1808, 0.0
  %v1873 = vmax.f32 %v1809, 0.0
  %v1874 = vmax.f32 %v1810, 0.0
  %v1875 = vmax.f32 %v1811, 0.0
  %v1876 = vmax.f32 %v1812, 0.0
  %v1877 = vmax.f32 %v1813, 0.0
  %v1878 = vmax.f32 %v1814, 0.0
  %v1879 = vmax.f32 %v1815, 0.0
  %v1880 = vmax.f32 %v1816, 0.0
  %v1881 = vmax.f32 %v1817, 0.0
  %v1882 = vmax.f32 %v1818, 0.0
  %v1883 = vmax.f32 %v1819, 0.0
  %v1884 = vmax.f32 %v1820, 0.0
  %v1885 = vmax.f32 %v1821, 0.0
  %v1886 = vmax.f32 %v1822, 0.0
  %v1887 = vmax.f32 %v1823, 0.0
  %v1888 = vmax.f32 %v1824, 0.0
  %v1889 = vmax.f32 %v1825, 0.0
  %v1890 = vmax.f32 %v1826, 0.0
  %v1891 = vmax.f32 %v1827, 0.0
  %v1892 = vmax.f32 %v1828, 0.0
  %v1893 = vmax.f32 %v1829, 0.0
  %v1894 = vmax.f32 %v1830, 0.0
  %v1895 = vmax.f32 %v1831, 0.0
  %v1896 = vmax.f32 %v1832, 0.0
  %v1897 = vmax.f32 %v1833, 0.0
  %v1898 = vmax.f32 %v1834, 0.0
  %v1899 = vmax.f32 %v1835, 0.0
  %v1900 = vmax.f32 %v1836, 0.0
  %v1901 = vmax.f32 %v1837, 0.0
  %v1902 = vmax.f32 %v1838, 0.0
  %v1903 = vmax.f32 %v1839, 0.0
  %v1904 = vmax.f32 %v1840, 0.0
  %v1905 = vmax.f32 %v1841, 0.0
  %v1906 = vmax.f32 %v1842, 0.0
  %1907 = vrot.lane.b32.xlu0 %v1843, 127
  %v1908 = vpop.permute.xlu0 %1907
  %1909 = vrot.lane.b32.xlu0 %v1851, 127
  %v1910 = vpop.permute.xlu0 %1909
  %1911 = vrot.lane.b32.xlu0 %v1859, 127
  %v1912 = vpop.permute.xlu0 %1911
  %1913 = vrot.lane.b32.xlu0 %v1867, 127
  %v1914 = vpop.permute.xlu0 %1913
  %1915 = vrot.lane.b32.xlu0 %v1875, 127
  %v1916 = vpop.permute.xlu0 %1915
  %1917 = vrot.lane.b32.xlu0 %v1883, 127
  %v1918 = vpop.permute.xlu0 %1917
  %1919 = vrot.lane.b32.xlu0 %v1891, 127
  %v1920 = vpop.permute.xlu0 %1919
  %1921 = vrot.lane.b32.xlu0 %v1899, 127
  %v1922 = vpop.permute.xlu0 %1921
  %1923 = vrot.lane.b32.xlu0 %v1844, 127
  %v1924 = vpop.permute.xlu0 %1923
  %1925 = vrot.lane.b32.xlu0 %v1852, 127
  %v1926 = vpop.permute.xlu0 %1925
  %1927 = vrot.lane.b32.xlu0 %v1860, 127
  %v1928 = vpop.permute.xlu0 %1927
  %1929 = vrot.lane.b32.xlu0 %v1868, 127
  %v1930 = vpop.permute.xlu0 %1929
  %1931 = vrot.lane.b32.xlu0 %v1876, 127
  %v1932 = vpop.permute.xlu0 %1931
  %1933 = vrot.lane.b32.xlu0 %v1884, 127
  %v1934 = vpop.permute.xlu0 %1933
  %1935 = vrot.lane.b32.xlu0 %v1892, 127
  %v1936 = vpop.permute.xlu0 %1935
  %1937 = vrot.lane.b32.xlu0 %v1900, 127
  %v1938 = vpop.permute.xlu0 %1937
  %1939 = vrot.lane.b32.xlu0 %v1845, 127
  %v1940 = vpop.permute.xlu0 %1939
  %1941 = vrot.lane.b32.xlu0 %v1853, 127
  %v1942 = vpop.permute.xlu0 %1941
  %1943 = vrot.lane.b32.xlu0 %v1861, 127
  %v1944 = vpop.permute.xlu0 %1943
  %1945 = vrot.lane.b32.xlu0 %v1869, 127
  %v1946 = vpop.permute.xlu0 %1945
  %1947 = vrot.lane.b32.xlu0 %v1877, 127
  %v1948 = vpop.permute.xlu0 %1947
  %1949 = vrot.lane.b32.xlu0 %v1885, 127
  %v1950 = vpop.permute.xlu0 %1949
  %1951 = vrot.lane.b32.xlu0 %v1893, 127
  %v1952 = vpop.permute.xlu0 %1951
  %1953 = vrot.lane.b32.xlu0 %v1901, 127
  %v1954 = vpop.permute.xlu0 %1953
  %1955 = vrot.lane.b32.xlu0 %v1846, 127
  %v1956 = vpop.permute.xlu0 %1955
  %1957 = vrot.lane.b32.xlu0 %v1854, 127
  %v1958 = vpop.permute.xlu0 %1957
  %1959 = vrot.lane.b32.xlu0 %v1862, 127
  %v1960 = vpop.permute.xlu0 %1959
  %1961 = vrot.lane.b32.xlu0 %v1870, 127
  %v1962 = vpop.permute.xlu0 %1961
  %1963 = vrot.lane.b32.xlu0 %v1878, 127
  %v1964 = vpop.permute.xlu0 %1963
  %1965 = vrot.lane.b32.xlu0 %v1886, 127
  %v1966 = vpop.permute.xlu0 %1965
  %1967 = vrot.lane.b32.xlu0 %v1894, 127
  %v1968 = vpop.permute.xlu0 %1967
  %1969 = vrot.lane.b32.xlu0 %v1902, 127
  %v1970 = vpop.permute.xlu0 %1969
  %1971 = vrot.lane.b32.xlu0 %v1847, 127
  %v1972 = vpop.permute.xlu0 %1971
  %1973 = vrot.lane.b32.xlu0 %v1855, 127
  %v1974 = vpop.permute.xlu0 %1973
  %1975 = vrot.lane.b32.xlu0 %v1863, 127
  %v1976 = vpop.permute.xlu0 %1975
  %1977 = vrot.lane.b32.xlu0 %v1871, 127
  %v1978 = vpop.permute.xlu0 %1977
  %1979 = vrot.lane.b32.xlu0 %v1879, 127
  %v1980 = vpop.permute.xlu0 %1979
  %1981 = vrot.lane.b32.xlu0 %v1887, 127
  %v1982 = vpop.permute.xlu0 %1981
  %1983 = vrot.lane.b32.xlu0 %v1895, 127
  %v1984 = vpop.permute.xlu0 %1983
  %1985 = vrot.lane.b32.xlu0 %v1903, 127
  %v1986 = vpop.permute.xlu0 %1985
  %1987 = vrot.lane.b32.xlu0 %v1848, 127
  %v1988 = vpop.permute.xlu0 %1987
  %1989 = vrot.lane.b32.xlu0 %v1856, 127
  %v1990 = vpop.permute.xlu0 %1989
  %1991 = vrot.lane.b32.xlu0 %v1864, 127
  %v1992 = vpop.permute.xlu0 %1991
  %1993 = vrot.lane.b32.xlu0 %v1872, 127
  %v1994 = vpop.permute.xlu0 %1993
  %1995 = vrot.lane.b32.xlu0 %v1880, 127
  %v1996 = vpop.permute.xlu0 %1995
  %1997 = vrot.lane.b32.xlu0 %v1888, 127
  %v1998 = vpop.permute.xlu0 %1997
  %1999 = vrot.lane.b32.xlu0 %v1896, 127
  %v2000 = vpop.permute.xlu0 %1999
  %2001 = vrot.lane.b32.xlu0 %v1904, 127
  %v2002 = vpop.permute.xlu0 %2001
  %2003 = vrot.lane.b32.xlu0 %v1849, 127
  %v2004 = vpop.permute.xlu0 %2003
  %2005 = vrot.lane.b32.xlu0 %v1857, 127
  %v2006 = vpop.permute.xlu0 %2005
  %2007 = vrot.lane.b32.xlu0 %v1865, 127
  %v2008 = vpop.permute.xlu0 %2007
  %2009 = vrot.lane.b32.xlu0 %v1873, 127
  %v2010 = vpop.permute.xlu0 %2009
  %2011 = vrot.lane.b32.xlu0 %v1881, 127
  %v2012 = vpop.permute.xlu0 %2011
  %2013 = vrot.lane.b32.xlu0 %v1889, 127
  %v2014 = vpop.permute.xlu0 %2013
  %2015 = vrot.lane.b32.xlu0 %v1897, 127
  %v2016 = vpop.permute.xlu0 %2015
  %2017 = vrot.lane.b32.xlu0 %v1905, 127
  %v2018 = vpop.permute.xlu0 %2017
  %2019 = vrot.lane.b32.xlu0 %v1850, 127
  %v2020 = vpop.permute.xlu0 %2019
  %2021 = vrot.lane.b32.xlu0 %v1858, 127
  %v2022 = vpop.permute.xlu0 %2021
  %2023 = vrot.lane.b32.xlu0 %v1866, 127
  %v2024 = vpop.permute.xlu0 %2023
  %2025 = vrot.lane.b32.xlu0 %v1874, 127
  %v2026 = vpop.permute.xlu0 %2025
  %2027 = vrot.lane.b32.xlu0 %v1882, 127
  %v2028 = vpop.permute.xlu0 %2027
  %2029 = vrot.lane.b32.xlu0 %v1890, 127
  %v2030 = vpop.permute.xlu0 %2029
  %2031 = vrot.lane.b32.xlu0 %v1898, 127
  %v2032 = vpop.permute.xlu0 %2031
  %2033 = vrot.lane.b32.xlu0 %v1906, 127
  %v2034 = vpop.permute.xlu0 %2033
  %v2035 = vsel %vm73, %v2004, %v2020
  %v2036 = vsel %vm73, %v2006, %v2022
  %v2037 = vsel %vm73, %v2008, %v2024
  %v2038 = vsel %vm73, %v2010, %v2026
  %v2039 = vsel %vm73, %v2012, %v2028
  %v2040 = vsel %vm73, %v2014, %v2030
  %v2041 = vsel %vm73, %v2016, %v2032
  %v2042 = vsel %vm73, %v2018, %v2034
  %v2043 = vsel %vm73, %v1988, %v2004
  %v2044 = vsel %vm73, %v1990, %v2006
  %v2045 = vsel %vm73, %v1992, %v2008
  %v2046 = vsel %vm73, %v1994, %v2010
  %v2047 = vsel %vm73, %v1996, %v2012
  %v2048 = vsel %vm73, %v1998, %v2014
  %v2049 = vsel %vm73, %v2000, %v2016
  %v2050 = vsel %vm73, %v2002, %v2018
  %v2051 = vsel %vm73, %v1972, %v1988
  %v2052 = vsel %vm73, %v1974, %v1990
  %v2053 = vsel %vm73, %v1976, %v1992
  %v2054 = vsel %vm73, %v1978, %v1994
  %v2055 = vsel %vm73, %v1980, %v1996
  %v2056 = vsel %vm73, %v1982, %v1998
  %v2057 = vsel %vm73, %v1984, %v2000
  %v2058 = vsel %vm73, %v1986, %v2002
  %v2059 = vsel %vm73, %v1956, %v1972
  %v2060 = vsel %vm73, %v1958, %v1974
  %v2061 = vsel %vm73, %v1960, %v1976
  %v2062 = vsel %vm73, %v1962, %v1978
  %v2063 = vsel %vm73, %v1964, %v1980
  %v2064 = vsel %vm73, %v1966, %v1982
  %v2065 = vsel %vm73, %v1968, %v1984
  %v2066 = vsel %vm73, %v1970, %v1986
  %v2067 = vsel %vm73, %v1940, %v1956
  %v2068 = vsel %vm73, %v1942, %v1958
  %v2069 = vsel %vm73, %v1944, %v1960
  %v2070 = vsel %vm73, %v1946, %v1962
  %v2071 = vsel %vm73, %v1948, %v1964
  %v2072 = vsel %vm73, %v1950, %v1966
  %v2073 = vsel %vm73, %v1952, %v1968
  %v2074 = vsel %vm73, %v1954, %v1970
  %v2075 = vsel %vm73, %v1924, %v1940
  %v2076 = vsel %vm73, %v1926, %v1942
  %v2077 = vsel %vm73, %v1928, %v1944
  %v2078 = vsel %vm73, %v1930, %v1946
  %v2079 = vsel %vm73, %v1932, %v1948
  %v2080 = vsel %vm73, %v1934, %v1950
  %v2081 = vsel %vm73, %v1936, %v1952
  %v2082 = vsel %vm73, %v1938, %v1954
  %v2083 = vsel %vm73, %v1908, %v1924
  %v2084 = vsel %vm73, %v1910, %v1926
  %v2085 = vsel %vm73, %v1912, %v1928
  %v2086 = vsel %vm73, %v1914, %v1930
  %v2087 = vsel %vm73, %v1916, %v1932
  %v2088 = vsel %vm73, %v1918, %v1934
  %v2089 = vsel %vm73, %v1920, %v1936
  %v2090 = vsel %vm73, %v1922, %v1938
  %v2091 = vsel %vm73, %v2020, %v1908
  %v2092 = vsel %vm73, %v2022, %v1910
  %v2093 = vsel %vm73, %v2024, %v1912
  %v2094 = vsel %vm73, %v2026, %v1914
  %v2095 = vsel %vm73, %v2028, %v1916
  %v2096 = vsel %vm73, %v2030, %v1918
  %v2097 = vsel %vm73, %v2032, %v1920
  %v2098 = vsel %vm73, %v2034, %v1922
  %2099 = vrot.lane.b32.xlu0 %v1843, 126
  %v2100 = vpop.permute.xlu0 %2099
  %2101 = vrot.lane.b32.xlu0 %v1851, 126
  %v2102 = vpop.permute.xlu0 %2101
  %2103 = vrot.lane.b32.xlu0 %v1859, 126
  %v2104 = vpop.permute.xlu0 %2103
  %2105 = vrot.lane.b32.xlu0 %v1867, 126
  %v2106 = vpop.permute.xlu0 %2105
  %2107 = vrot.lane.b32.xlu0 %v1875, 126
  %v2108 = vpop.permute.xlu0 %2107
  %2109 = vrot.lane.b32.xlu0 %v1883, 126
  %v2110 = vpop.permute.xlu0 %2109
  %2111 = vrot.lane.b32.xlu0 %v1891, 126
  %v2112 = vpop.permute.xlu0 %2111
  %2113 = vrot.lane.b32.xlu0 %v1899, 126
  %v2114 = vpop.permute.xlu0 %2113
  %2115 = vrot.lane.b32.xlu0 %v1844, 126
  %v2116 = vpop.permute.xlu0 %2115
  %2117 = vrot.lane.b32.xlu0 %v1852, 126
  %v2118 = vpop.permute.xlu0 %2117
  %2119 = vrot.lane.b32.xlu0 %v1860, 126
  %v2120 = vpop.permute.xlu0 %2119
  %2121 = vrot.lane.b32.xlu0 %v1868, 126
  %v2122 = vpop.permute.xlu0 %2121
  %2123 = vrot.lane.b32.xlu0 %v1876, 126
  %v2124 = vpop.permute.xlu0 %2123
  %2125 = vrot.lane.b32.xlu0 %v1884, 126
  %v2126 = vpop.permute.xlu0 %2125
  %2127 = vrot.lane.b32.xlu0 %v1892, 126
  %v2128 = vpop.permute.xlu0 %2127
  %2129 = vrot.lane.b32.xlu0 %v1900, 126
  %v2130 = vpop.permute.xlu0 %2129
  %2131 = vrot.lane.b32.xlu0 %v1845, 126
  %v2132 = vpop.permute.xlu0 %2131
  %2133 = vrot.lane.b32.xlu0 %v1853, 126
  %v2134 = vpop.permute.xlu0 %2133
  %2135 = vrot.lane.b32.xlu0 %v1861, 126
  %v2136 = vpop.permute.xlu0 %2135
  %2137 = vrot.lane.b32.xlu0 %v1869, 126
  %v2138 = vpop.permute.xlu0 %2137
  %2139 = vrot.lane.b32.xlu0 %v1877, 126
  %v2140 = vpop.permute.xlu0 %2139
  %2141 = vrot.lane.b32.xlu0 %v1885, 126
  %v2142 = vpop.permute.xlu0 %2141
  %2143 = vrot.lane.b32.xlu0 %v1893, 126
  %v2144 = vpop.permute.xlu0 %2143
  %2145 = vrot.lane.b32.xlu0 %v1901, 126
  %v2146 = vpop.permute.xlu0 %2145
  %2147 = vrot.lane.b32.xlu0 %v1846, 126
  %v2148 = vpop.permute.xlu0 %2147
  %2149 = vrot.lane.b32.xlu0 %v1854, 126
  %v2150 = vpop.permute.xlu0 %2149
  %2151 = vrot.lane.b32.xlu0 %v1862, 126
  %v2152 = vpop.permute.xlu0 %2151
  %2153 = vrot.lane.b32.xlu0 %v1870, 126
  %v2154 = vpop.permute.xlu0 %2153
  %2155 = vrot.lane.b32.xlu0 %v1878, 126
  %v2156 = vpop.permute.xlu0 %2155
  %2157 = vrot.lane.b32.xlu0 %v1886, 126
  %v2158 = vpop.permute.xlu0 %2157
  %2159 = vrot.lane.b32.xlu0 %v1894, 126
  %v2160 = vpop.permute.xlu0 %2159
  %2161 = vrot.lane.b32.xlu0 %v1902, 126
  %v2162 = vpop.permute.xlu0 %2161
  %2163 = vrot.lane.b32.xlu0 %v1847, 126
  %v2164 = vpop.permute.xlu0 %2163
  %2165 = vrot.lane.b32.xlu0 %v1855, 126
  %v2166 = vpop.permute.xlu0 %2165
  %2167 = vrot.lane.b32.xlu0 %v1863, 126
  %v2168 = vpop.permute.xlu0 %2167
  %2169 = vrot.lane.b32.xlu0 %v1871, 126
  %v2170 = vpop.permute.xlu0 %2169
  %2171 = vrot.lane.b32.xlu0 %v1879, 126
  %v2172 = vpop.permute.xlu0 %2171
  %2173 = vrot.lane.b32.xlu0 %v1887, 126
  %v2174 = vpop.permute.xlu0 %2173
  %2175 = vrot.lane.b32.xlu0 %v1895, 126
  %v2176 = vpop.permute.xlu0 %2175
  %2177 = vrot.lane.b32.xlu0 %v1903, 126
  %v2178 = vpop.permute.xlu0 %2177
  %2179 = vrot.lane.b32.xlu0 %v1848, 126
  %v2180 = vpop.permute.xlu0 %2179
  %2181 = vrot.lane.b32.xlu0 %v1856, 126
  %v2182 = vpop.permute.xlu0 %2181
  %2183 = vrot.lane.b32.xlu0 %v1864, 126
  %v2184 = vpop.permute.xlu0 %2183
  %2185 = vrot.lane.b32.xlu0 %v1872, 126
  %v2186 = vpop.permute.xlu0 %2185
  %2187 = vrot.lane.b32.xlu0 %v1880, 126
  %v2188 = vpop.permute.xlu0 %2187
  %2189 = vrot.lane.b32.xlu0 %v1888, 126
  %v2190 = vpop.permute.xlu0 %2189
  %2191 = vrot.lane.b32.xlu0 %v1896, 126
  %v2192 = vpop.permute.xlu0 %2191
  %2193 = vrot.lane.b32.xlu0 %v1904, 126
  %v2194 = vpop.permute.xlu0 %2193
  %2195 = vrot.lane.b32.xlu0 %v1849, 126
  %v2196 = vpop.permute.xlu0 %2195
  %2197 = vrot.lane.b32.xlu0 %v1857, 126
  %v2198 = vpop.permute.xlu0 %2197
  %2199 = vrot.lane.b32.xlu0 %v1865, 126
  %v2200 = vpop.permute.xlu0 %2199
  %2201 = vrot.lane.b32.xlu0 %v1873, 126
  %v2202 = vpop.permute.xlu0 %2201
  %2203 = vrot.lane.b32.xlu0 %v1881, 126
  %v2204 = vpop.permute.xlu0 %2203
  %2205 = vrot.lane.b32.xlu0 %v1889, 126
  %v2206 = vpop.permute.xlu0 %2205
  %2207 = vrot.lane.b32.xlu0 %v1897, 126
  %v2208 = vpop.permute.xlu0 %2207
  %2209 = vrot.lane.b32.xlu0 %v1905, 126
  %v2210 = vpop.permute.xlu0 %2209
  %2211 = vrot.lane.b32.xlu0 %v1850, 126
  %v2212 = vpop.permute.xlu0 %2211
  %2213 = vrot.lane.b32.xlu0 %v1858, 126
  %v2214 = vpop.permute.xlu0 %2213
  %2215 = vrot.lane.b32.xlu0 %v1866, 126
  %v2216 = vpop.permute.xlu0 %2215
  %2217 = vrot.lane.b32.xlu0 %v1874, 126
  %v2218 = vpop.permute.xlu0 %2217
  %2219 = vrot.lane.b32.xlu0 %v1882, 126
  %v2220 = vpop.permute.xlu0 %2219
  %2221 = vrot.lane.b32.xlu0 %v1890, 126
  %v2222 = vpop.permute.xlu0 %2221
  %2223 = vrot.lane.b32.xlu0 %v1898, 126
  %v2224 = vpop.permute.xlu0 %2223
  %2225 = vrot.lane.b32.xlu0 %v1906, 126
  %v2226 = vpop.permute.xlu0 %2225
  %v2227 = vsel %vm122, %v2196, %v2212
  %v2228 = vsel %vm122, %v2198, %v2214
  %v2229 = vsel %vm122, %v2200, %v2216
  %v2230 = vsel %vm122, %v2202, %v2218
  %v2231 = vsel %vm122, %v2204, %v2220
  %v2232 = vsel %vm122, %v2206, %v2222
  %v2233 = vsel %vm122, %v2208, %v2224
  %v2234 = vsel %vm122, %v2210, %v2226
  %v2235 = vsel %vm122, %v2180, %v2196
  %v2236 = vsel %vm122, %v2182, %v2198
  %v2237 = vsel %vm122, %v2184, %v2200
  %v2238 = vsel %vm122, %v2186, %v2202
  %v2239 = vsel %vm122, %v2188, %v2204
  %v2240 = vsel %vm122, %v2190, %v2206
  %v2241 = vsel %vm122, %v2192, %v2208
  %v2242 = vsel %vm122, %v2194, %v2210
  %v2243 = vsel %vm122, %v2164, %v2180
  %v2244 = vsel %vm122, %v2166, %v2182
  %v2245 = vsel %vm122, %v2168, %v2184
  %v2246 = vsel %vm122, %v2170, %v2186
  %v2247 = vsel %vm122, %v2172, %v2188
  %v2248 = vsel %vm122, %v2174, %v2190
  %v2249 = vsel %vm122, %v2176, %v2192
  %v2250 = vsel %vm122, %v2178, %v2194
  %v2251 = vsel %vm122, %v2148, %v2164
  %v2252 = vsel %vm122, %v2150, %v2166
  %v2253 = vsel %vm122, %v2152, %v2168
  %v2254 = vsel %vm122, %v2154, %v2170
  %v2255 = vsel %vm122, %v2156, %v2172
  %v2256 = vsel %vm122, %v2158, %v2174
  %v2257 = vsel %vm122, %v2160, %v2176
  %v2258 = vsel %vm122, %v2162, %v2178
  %v2259 = vsel %vm122, %v2132, %v2148
  %v2260 = vsel %vm122, %v2134, %v2150
  %v2261 = vsel %vm122, %v2136, %v2152
  %v2262 = vsel %vm122, %v2138, %v2154
  %v2263 = vsel %vm122, %v2140, %v2156
  %v2264 = vsel %vm122, %v2142, %v2158
  %v2265 = vsel %vm122, %v2144, %v2160
  %v2266 = vsel %vm122, %v2146, %v2162
  %v2267 = vsel %vm122, %v2116, %v2132
  %v2268 = vsel %vm122, %v2118, %v2134
  %v2269 = vsel %vm122, %v2120, %v2136
  %v2270 = vsel %vm122, %v2122, %v2138
  %v2271 = vsel %vm122, %v2124, %v2140
  %v2272 = vsel %vm122, %v2126, %v2142
  %v2273 = vsel %vm122, %v2128, %v2144
  %v2274 = vsel %vm122, %v2130, %v2146
  %v2275 = vsel %vm122, %v2100, %v2116
  %v2276 = vsel %vm122, %v2102, %v2118
  %v2277 = vsel %vm122, %v2104, %v2120
  %v2278 = vsel %vm122, %v2106, %v2122
  %v2279 = vsel %vm122, %v2108, %v2124
  %v2280 = vsel %vm122, %v2110, %v2126
  %v2281 = vsel %vm122, %v2112, %v2128
  %v2282 = vsel %vm122, %v2114, %v2130
  %v2283 = vsel %vm122, %v2212, %v2100
  %v2284 = vsel %vm122, %v2214, %v2102
  %v2285 = vsel %vm122, %v2216, %v2104
  %v2286 = vsel %vm122, %v2218, %v2106
  %v2287 = vsel %vm122, %v2220, %v2108
  %v2288 = vsel %vm122, %v2222, %v2110
  %v2289 = vsel %vm122, %v2224, %v2112
  %v2290 = vsel %vm122, %v2226, %v2114
  %v2291 = vld [vmem:[%s3] sm:$0xff]
  %v2292 = vld [vmem:[%s3 + $0x8] sm:$0xff]
  %v2293 = vld [vmem:[%s3 + $0x10] sm:$0xff]
  %v2294 = vld [vmem:[%s3 + $0x18] sm:$0xff]
  %v2295 = vld [vmem:[%s3 + $0x20] sm:$0xff]
  %v2296 = vld [vmem:[%s3 + $0x28] sm:$0xff]
  %v2297 = vld [vmem:[%s3 + $0x30] sm:$0xff]
  %v2298 = vld [vmem:[%s3 + $0x38] sm:$0xff]
  %v2299 = vld [vmem:[%s3 + $0x40] sm:$0xff]
  %v2300 = vld [vmem:[%s3 + $0x48] sm:$0xff]
  %v2301 = vld [vmem:[%s3 + $0x50] sm:$0xff]
  %v2302 = vld [vmem:[%s3 + $0x58] sm:$0xff]
  %v2303 = vld [vmem:[%s3 + $0x60] sm:$0xff]
  %v2304 = vld [vmem:[%s3 + $0x68] sm:$0xff]
  %v2305 = vld [vmem:[%s3 + $0x70] sm:$0xff]
  %v2306 = vld [vmem:[%s3 + $0x78] sm:$0xff]
  %v2307 = vld [vmem:[%s4] sm:$0xff]
  %v2308 = vld [vmem:[%s4 + $0x8] sm:$0xff]
  %v2309 = vld [vmem:[%s4 + $0x10] sm:$0xff]
  %v2310 = vld [vmem:[%s4 + $0x18] sm:$0xff]
  %v2311 = vld [vmem:[%s4 + $0x20] sm:$0xff]
  %v2312 = vld [vmem:[%s4 + $0x28] sm:$0xff]
  %v2313 = vld [vmem:[%s4 + $0x30] sm:$0xff]
  %v2314 = vld [vmem:[%s4 + $0x38] sm:$0xff]
  %2316 = vset.pattern.permute.xlu0 0
  %2317 = vperm.xlu0 %2316, %v2307
  %v2318 = vpop.permute.xlu0 %2317
  %2321 = vset.pattern.permute.xlu0 0
  %2322 = vperm.xlu0 %2321, %v2308
  %v2323 = vpop.permute.xlu0 %2322
  %2326 = vset.pattern.permute.xlu0 0
  %2327 = vperm.xlu0 %2326, %v2309
  %v2328 = vpop.permute.xlu0 %2327
  %2331 = vset.pattern.permute.xlu0 0
  %2332 = vperm.xlu0 %2331, %v2310
  %v2333 = vpop.permute.xlu0 %2332
  %2336 = vset.pattern.permute.xlu0 0
  %2337 = vperm.xlu0 %2336, %v2311
  %v2338 = vpop.permute.xlu0 %2337
  %2341 = vset.pattern.permute.xlu0 0
  %2342 = vperm.xlu0 %2341, %v2312
  %v2343 = vpop.permute.xlu0 %2342
  %2346 = vset.pattern.permute.xlu0 0
  %2347 = vperm.xlu0 %2346, %v2313
  %v2348 = vpop.permute.xlu0 %2347
  %2351 = vset.pattern.permute.xlu0 0
  %2352 = vperm.xlu0 %2351, %v2314
  %v2353 = vpop.permute.xlu0 %2352
  %vm2355 = vcmask 523264
  %v2357 = vsel %vm2355, %v2292, 0
  %v2360 = vsel %vm2355, %v2294, 0
  %v2363 = vsel %vm2355, %v2296, 0
  %v2366 = vsel %vm2355, %v2298, 0
  %v2369 = vsel %vm2355, %v2300, 0
  %v2372 = vsel %vm2355, %v2302, 0
  %v2375 = vsel %vm2355, %v2304, 0
  %v2378 = vsel %vm2355, %v2306, 0
  %2380 = vmatprep.subr.mxu0 %v2082
  %2381 = vmatpush1.msra.mxu0 %v2090
  %2382 = vmatprep.subr.mxu0 %v2081
  %2383 = vmatpush1.msra.mxu0 %v2089
  %2384 = vmatprep.subr.mxu0 %v2080
  %2385 = vmatpush1.msra.mxu0 %v2088
  %2386 = vmatprep.subr.mxu0 %v2079
  %2387 = vmatpush1.msra.mxu0 %v2087
  %2388 = vmatprep.subr.mxu0 %v2078
  %2389 = vmatpush1.msra.mxu0 %v2086
  %2390 = vmatprep.subr.mxu0 %v2077
  %2391 = vmatpush1.msra.mxu0 %v2085
  %2392 = vmatprep.subr.mxu0 %v2076
  %2393 = vmatpush1.msra.mxu0 %v2084
  %2394 = vmatprep.subr.mxu0 %v2075
  %2395 = vmatpush1.msra.mxu0 %v2083
  %2396 = vmatprep.subr.mxu0 %v1900
  %2397 = vmatpush1.msra.mxu0 %v1899
  %2398 = vmatprep.subr.mxu0 %v1892
  %2399 = vmatpush1.msra.mxu0 %v1891
  %2400 = vmatprep.subr.mxu0 %v1884
  %2401 = vmatpush1.msra.mxu0 %v1883
  %2402 = vmatprep.subr.mxu0 %v1876
  %2403 = vmatpush1.msra.mxu0 %v1875
  %2404 = vmatprep.subr.mxu0 %v1868
  %2405 = vmatpush1.msra.mxu0 %v1867
  %2406 = vmatprep.subr.mxu0 %v1860
  %2407 = vmatpush1.msra.mxu0 %v1859
  %2408 = vmatprep.subr.mxu0 %v1852
  %2409 = vmatpush1.msra.mxu0 %v1851
  %2410 = vmatprep.subr.mxu0 %v1844
  %2411 = vmatpush1.msra.mxu0 %v1843
  %2412 = vmatprep.subr.mxu0 0.0
  %2413 = vmatpush2.msra.mxu0 0.0
  %2414 = vmatprep.subr.mxu0 0.0
  %2415 = vmatpush2.msra.mxu0 0.0
  %2416 = vmatprep.subr.mxu0 0.0
  %2417 = vmatpush2.msra.mxu0 0.0
  %2418 = vmatprep.subr.mxu0 0.0
  %2419 = vmatpush2.msra.mxu0 0.0
  %2420 = vmatprep.subr.mxu0 0.0
  %2421 = vmatpush2.msra.mxu0 0.0
  %2422 = vmatprep.subr.mxu0 0.0
  %2423 = vmatpush2.msra.mxu0 0.0
  %2424 = vmatprep.subr.mxu0 0.0
  %2425 = vmatpush2.msra.mxu0 0.0
  %2426 = vmatprep.subr.mxu0 0.0
  %2427 = vmatpush2.msra.mxu0 0.0
  %2428 = vmatprep.subr.mxu0 %v2274
  %2429 = vmatpush2.msra.mxu0 %v2282
  %2430 = vmatprep.subr.mxu0 %v2273
  %2431 = vmatpush2.msra.mxu0 %v2281
  %2432 = vmatprep.subr.mxu0 %v2272
  %2433 = vmatpush2.msra.mxu0 %v2280
  %2434 = vmatprep.subr.mxu0 %v2271
  %2435 = vmatpush2.msra.mxu0 %v2279
  %2436 = vmatprep.subr.mxu0 %v2270
  %2437 = vmatpush2.msra.mxu0 %v2278
  %2438 = vmatprep.subr.mxu0 %v2269
  %2439 = vmatpush2.msra.mxu0 %v2277
  %2440 = vmatprep.subr.mxu0 %v2268
  %2441 = vmatpush2.msra.mxu0 %v2276
  %2442 = vmatprep.subr.mxu0 %v2267
  %2443 = vmatpush2.msra.mxu0 %v2275
  %2444 = vmatprep.mubr.f32.mxu0 %v2357
  %2445 = vmatmul.mubr.f32.gmra.mxu0 %v2291
  %v2446 = vpop.f32.mrf.mxu0
  %v2447 = vadd.f32 %v2318, %v2446
  %v2448 = vpop.f32.mrf.mxu0
  %v2449 = vadd.f32 %v2318, %v2448
  %2450 = vmatprep.mubr.f32.mxu0 %v2360
  %2451 = vmatmul.mubr.f32.gmra.mxu0 %v2293
  %v2452 = vpop.f32.mrf.mxu0
  %v2453 = vadd.f32 %v2323, %v2452
  %v2454 = vpop.f32.mrf.mxu0
  %v2455 = vadd.f32 %v2323, %v2454
  %2456 = vmatprep.mubr.f32.mxu0 %v2363
  %2457 = vmatmul.mubr.f32.gmra.mxu0 %v2295
  %v2458 = vpop.f32.mrf.mxu0
  %v2459 = vadd.f32 %v2328, %v2458
  %v2460 = vpop.f32.mrf.mxu0
  %v2461 = vadd.f32 %v2328, %v2460
  %2462 = vmatprep.mubr.f32.mxu0 %v2366
  %2463 = vmatmul.mubr.f32.gmra.mxu0 %v2297
  %v2464 = vpop.f32.mrf.mxu0
  %v2465 = vadd.f32 %v2333, %v2464
  %v2466 = vpop.f32.mrf.mxu0
  %v2467 = vadd.f32 %v2333, %v2466
  %2468 = vmatprep.mubr.f32.mxu0 %v2369
  %2469 = vmatmul.mubr.f32.gmra.mxu0 %v2299
  %v2470 = vpop.f32.mrf.mxu0
  %v2471 = vadd.f32 %v2338, %v2470
  %v2472 = vpop.f32.mrf.mxu0
  %v2473 = vadd.f32 %v2338, %v2472
  %2474 = vmatprep.mubr.f32.mxu0 %v2372
  %2475 = vmatmul.mubr.f32.gmra.mxu0 %v2301
  %v2476 = vpop.f32.mrf.mxu0
  %v2477 = vadd.f32 %v2343, %v2476
  %v2478 = vpop.f32.mrf.mxu0
  %v2479 = vadd.f32 %v2343, %v2478
  %2480 = vmatprep.mubr.f32.mxu0 %v2375
  %2481 = vmatmul.mubr.f32.gmra.mxu0 %v2303
  %v2482 = vpop.f32.mrf.mxu0
  %v2483 = vadd.f32 %v2348, %v2482
  %v2484 = vpop.f32.mrf.mxu0
  %v2485 = vadd.f32 %v2348, %v2484
  %2486 = vmatprep.mubr.f32.mxu0 %v2378
  %2487 = vmatmul.mubr.f32.gmra.mxu0 %v2305
  %v2488 = vpop.f32.mrf.mxu0
  %v2489 = vadd.f32 %v2353, %v2488
  %v2490 = vpop.f32.mrf.mxu0
  %v2491 = vadd.f32 %v2353, %v2490
  %2492 = vdwg.mxu0
  %2493 = vmatprep.subr.mxu0 %v2066
  %2494 = vmatpush1.msra.mxu0 %v2074
  %2495 = vmatprep.subr.mxu0 %v2065
  %2496 = vmatpush1.msra.mxu0 %v2073
  %2497 = vmatprep.subr.mxu0 %v2064
  %2498 = vmatpush1.msra.mxu0 %v2072
  %2499 = vmatprep.subr.mxu0 %v2063
  %2500 = vmatpush1.msra.mxu0 %v2071
  %2501 = vmatprep.subr.mxu0 %v2062
  %2502 = vmatpush1.msra.mxu0 %v2070
  %2503 = vmatprep.subr.mxu0 %v2061
  %2504 = vmatpush1.msra.mxu0 %v2069
  %2505 = vmatprep.subr.mxu0 %v2060
  %2506 = vmatpush1.msra.mxu0 %v2068
  %2507 = vmatprep.subr.mxu0 %v2059
  %2508 = vmatpush1.msra.mxu0 %v2067
  %2509 = vmatprep.subr.mxu0 %v1902
  %2510 = vmatpush1.msra.mxu0 %v1901
  %2511 = vmatprep.subr.mxu0 %v1894
  %2512 = vmatpush1.msra.mxu0 %v1893
  %2513 = vmatprep.subr.mxu0 %v1886
  %2514 = vmatpush1.msra.mxu0 %v1885
  %2515 = vmatprep.subr.mxu0 %v1878
  %2516 = vmatpush1.msra.mxu0 %v1877
  %2517 = vmatprep.subr.mxu0 %v1870
  %2518 = vmatpush1.msra.mxu0 %v1869
  %2519 = vmatprep.subr.mxu0 %v1862
  %2520 = vmatpush1.msra.mxu0 %v1861
  %2521 = vmatprep.subr.mxu0 %v1854
  %2522 = vmatpush1.msra.mxu0 %v1853
  %2523 = vmatprep.subr.mxu0 %v1846
  %2524 = vmatpush1.msra.mxu0 %v1845
  %2525 = vmatprep.subr.mxu0 0.0
  %2526 = vmatpush2.msra.mxu0 0.0
  %2527 = vmatprep.subr.mxu0 0.0
  %2528 = vmatpush2.msra.mxu0 0.0
  %2529 = vmatprep.subr.mxu0 0.0
  %2530 = vmatpush2.msra.mxu0 0.0
  %2531 = vmatprep.subr.mxu0 0.0
  %2532 = vmatpush2.msra.mxu0 0.0
  %2533 = vmatprep.subr.mxu0 0.0
  %2534 = vmatpush2.msra.mxu0 0.0
  %2535 = vmatprep.subr.mxu0 0.0
  %2536 = vmatpush2.msra.mxu0 0.0
  %2537 = vmatprep.subr.mxu0 0.0
  %2538 = vmatpush2.msra.mxu0 0.0
  %2539 = vmatprep.subr.mxu0 0.0
  %2540 = vmatpush2.msra.mxu0 0.0
  %2541 = vmatprep.subr.mxu0 %v2258
  %2542 = vmatpush2.msra.mxu0 %v2266
  %2543 = vmatprep.subr.mxu0 %v2257
  %2544 = vmatpush2.msra.mxu0 %v2265
  %2545 = vmatprep.subr.mxu0 %v2256
  %2546 = vmatpush2.msra.mxu0 %v2264
  %2547 = vmatprep.subr.mxu0 %v2255
  %2548 = vmatpush2.msra.mxu0 %v2263
  %2549 = vmatprep.subr.mxu0 %v2254
  %2550 = vmatpush2.msra.mxu0 %v2262
  %2551 = vmatprep.subr.mxu0 %v2253
  %2552 = vmatpush2.msra.mxu0 %v2261
  %2553 = vmatprep.subr.mxu0 %v2252
  %2554 = vmatpush2.msra.mxu0 %v2260
  %2555 = vmatprep.subr.mxu0 %v2251
  %2556 = vmatpush2.msra.mxu0 %v2259
  %2557 = vmatprep.mubr.f32.mxu0 %v2357
  %2558 = vmatmul.mubr.f32.gmra.mxu0 %v2291
  %v2559 = vpop.f32.mrf.mxu0
  %v2560 = vadd.f32 %v2318, %v2559
  %v2561 = vpop.f32.mrf.mxu0
  %v2562 = vadd.f32 %v2318, %v2561
  %2563 = vmatprep.mubr.f32.mxu0 %v2360
  %2564 = vmatmul.mubr.f32.gmra.mxu0 %v2293
  %v2565 = vpop.f32.mrf.mxu0
  %v2566 = vadd.f32 %v2323, %v2565
  %v2567 = vpop.f32.mrf.mxu0
  %v2568 = vadd.f32 %v2323, %v2567
  %2569 = vmatprep.mubr.f32.mxu0 %v2363
  %2570 = vmatmul.mubr.f32.gmra.mxu0 %v2295
  %v2571 = vpop.f32.mrf.mxu0
  %v2572 = vadd.f32 %v2328, %v2571
  %v2573 = vpop.f32.mrf.mxu0
  %v2574 = vadd.f32 %v2328, %v2573
  %2575 = vmatprep.mubr.f32.mxu0 %v2366
  %2576 = vmatmul.mubr.f32.gmra.mxu0 %v2297
  %v2577 = vpop.f32.mrf.mxu0
  %v2578 = vadd.f32 %v2333, %v2577
  %v2579 = vpop.f32.mrf.mxu0
  %v2580 = vadd.f32 %v2333, %v2579
  %2581 = vmatprep.mubr.f32.mxu0 %v2369
  %2582 = vmatmul.mubr.f32.gmra.mxu0 %v2299
  %v2583 = vpop.f32.mrf.mxu0
  %v2584 = vadd.f32 %v2338, %v2583
  %v2585 = vpop.f32.mrf.mxu0
  %v2586 = vadd.f32 %v2338, %v2585
  %2587 = vmatprep.mubr.f32.mxu0 %v2372
  %2588 = vmatmul.mubr.f32.gmra.mxu0 %v2301
  %v2589 = vpop.f32.mrf.mxu0
  %v2590 = vadd.f32 %v2343, %v2589
  %v2591 = vpop.f32.mrf.mxu0
  %v2592 = vadd.f32 %v2343, %v2591
  %2593 = vmatprep.mubr.f32.mxu0 %v2375
  %2594 = vmatmul.mubr.f32.gmra.mxu0 %v2303
  %v2595 = vpop.f32.mrf.mxu0
  %v2596 = vadd.f32 %v2348, %v2595
  %v2597 = vpop.f32.mrf.mxu0
  %v2598 = vadd.f32 %v2348, %v2597
  %2599 = vmatprep.mubr.f32.mxu0 %v2378
  %2600 = vmatmul.mubr.f32.gmra.mxu0 %v2305
  %v2601 = vpop.f32.mrf.mxu0
  %v2602 = vadd.f32 %v2353, %v2601
  %v2603 = vpop.f32.mrf.mxu0
  %v2604 = vadd.f32 %v2353, %v2603
  %2605 = vdwg.mxu0
  %2606 = vmatprep.subr.mxu0 %v2050
  %2607 = vmatpush1.msra.mxu0 %v2058
  %2608 = vmatprep.subr.mxu0 %v2049
  %2609 = vmatpush1.msra.mxu0 %v2057
  %2610 = vmatprep.subr.mxu0 %v2048
  %2611 = vmatpush1.msra.mxu0 %v2056
  %2612 = vmatprep.subr.mxu0 %v2047
  %2613 = vmatpush1.msra.mxu0 %v2055
  %2614 = vmatprep.subr.mxu0 %v2046
  %2615 = vmatpush1.msra.mxu0 %v2054
  %2616 = vmatprep.subr.mxu0 %v2045
  %2617 = vmatpush1.msra.mxu0 %v2053
  %2618 = vmatprep.subr.mxu0 %v2044
  %2619 = vmatpush1.msra.mxu0 %v2052
  %2620 = vmatprep.subr.mxu0 %v2043
  %2621 = vmatpush1.msra.mxu0 %v2051
  %2622 = vmatprep.subr.mxu0 %v1904
  %2623 = vmatpush1.msra.mxu0 %v1903
  %2624 = vmatprep.subr.mxu0 %v1896
  %2625 = vmatpush1.msra.mxu0 %v1895
  %2626 = vmatprep.subr.mxu0 %v1888
  %2627 = vmatpush1.msra.mxu0 %v1887
  %2628 = vmatprep.subr.mxu0 %v1880
  %2629 = vmatpush1.msra.mxu0 %v1879
  %2630 = vmatprep.subr.mxu0 %v1872
  %2631 = vmatpush1.msra.mxu0 %v1871
  %2632 = vmatprep.subr.mxu0 %v1864
  %2633 = vmatpush1.msra.mxu0 %v1863
  %2634 = vmatprep.subr.mxu0 %v1856
  %2635 = vmatpush1.msra.mxu0 %v1855
  %2636 = vmatprep.subr.mxu0 %v1848
  %2637 = vmatpush1.msra.mxu0 %v1847
  %2638 = vmatprep.subr.mxu0 0.0
  %2639 = vmatpush2.msra.mxu0 0.0
  %2640 = vmatprep.subr.mxu0 0.0
  %2641 = vmatpush2.msra.mxu0 0.0
  %2642 = vmatprep.subr.mxu0 0.0
  %2643 = vmatpush2.msra.mxu0 0.0
  %2644 = vmatprep.subr.mxu0 0.0
  %2645 = vmatpush2.msra.mxu0 0.0
  %2646 = vmatprep.subr.mxu0 0.0
  %2647 = vmatpush2.msra.mxu0 0.0
  %2648 = vmatprep.subr.mxu0 0.0
  %2649 = vmatpush2.msra.mxu0 0.0
  %2650 = vmatprep.subr.mxu0 0.0
  %2651 = vmatpush2.msra.mxu0 0.0
  %2652 = vmatprep.subr.mxu0 0.0
  %2653 = vmatpush2.msra.mxu0 0.0
  %2654 = vmatprep.subr.mxu0 %v2242
  %2655 = vmatpush2.msra.mxu0 %v2250
  %2656 = vmatprep.subr.mxu0 %v2241
  %2657 = vmatpush2.msra.mxu0 %v2249
  %2658 = vmatprep.subr.mxu0 %v2240
  %2659 = vmatpush2.msra.mxu0 %v2248
  %2660 = vmatprep.subr.mxu0 %v2239
  %2661 = vmatpush2.msra.mxu0 %v2247
  %2662 = vmatprep.subr.mxu0 %v2238
  %2663 = vmatpush2.msra.mxu0 %v2246
  %2664 = vmatprep.subr.mxu0 %v2237
  %2665 = vmatpush2.msra.mxu0 %v2245
  %2666 = vmatprep.subr.mxu0 %v2236
  %2667 = vmatpush2.msra.mxu0 %v2244
  %2668 = vmatprep.subr.mxu0 %v2235
  %2669 = vmatpush2.msra.mxu0 %v2243
  %2670 = vmatprep.mubr.f32.mxu0 %v2357
  %2671 = vmatmul.mubr.f32.gmra.mxu0 %v2291
  %v2672 = vpop.f32.mrf.mxu0
  %v2673 = vadd.f32 %v2318, %v2672
  %v2674 = vpop.f32.mrf.mxu0
  %v2675 = vadd.f32 %v2318, %v2674
  %2676 = vmatprep.mubr.f32.mxu0 %v2360
  %2677 = vmatmul.mubr.f32.gmra.mxu0 %v2293
  %v2678 = vpop.f32.mrf.mxu0
  %v2679 = vadd.f32 %v2323, %v2678
  %v2680 = vpop.f32.mrf.mxu0
  %v2681 = vadd.f32 %v2323, %v2680
  %2682 = vmatprep.mubr.f32.mxu0 %v2363
  %2683 = vmatmul.mubr.f32.gmra.mxu0 %v2295
  %v2684 = vpop.f32.mrf.mxu0
  %v2685 = vadd.f32 %v2328, %v2684
  %v2686 = vpop.f32.mrf.mxu0
  %v2687 = vadd.f32 %v2328, %v2686
  %2688 = vmatprep.mubr.f32.mxu0 %v2366
  %2689 = vmatmul.mubr.f32.gmra.mxu0 %v2297
  %v2690 = vpop.f32.mrf.mxu0
  %v2691 = vadd.f32 %v2333, %v2690
  %v2692 = vpop.f32.mrf.mxu0
  %v2693 = vadd.f32 %v2333, %v2692
  %2694 = vmatprep.mubr.f32.mxu0 %v2369
  %2695 = vmatmul.mubr.f32.gmra.mxu0 %v2299
  %v2696 = vpop.f32.mrf.mxu0
  %v2697 = vadd.f32 %v2338, %v2696
  %v2698 = vpop.f32.mrf.mxu0
  %v2699 = vadd.f32 %v2338, %v2698
  %2700 = vmatprep.mubr.f32.mxu0 %v2372
  %2701 = vmatmul.mubr.f32.gmra.mxu0 %v2301
  %v2702 = vpop.f32.mrf.mxu0
  %v2703 = vadd.f32 %v2343, %v2702
  %v2704 = vpop.f32.mrf.mxu0
  %v2705 = vadd.f32 %v2343, %v2704
  %2706 = vmatprep.mubr.f32.mxu0 %v2375
  %2707 = vmatmul.mubr.f32.gmra.mxu0 %v2303
  %v2708 = vpop.f32.mrf.mxu0
  %v2709 = vadd.f32 %v2348, %v2708
  %v2710 = vpop.f32.mrf.mxu0
  %v2711 = vadd.f32 %v2348, %v2710
  %2712 = vmatprep.mubr.f32.mxu0 %v2378
  %2713 = vmatmul.mubr.f32.gmra.mxu0 %v2305
  %v2714 = vpop.f32.mrf.mxu0
  %v2715 = vadd.f32 %v2353, %v2714
  %v2716 = vpop.f32.mrf.mxu0
  %v2717 = vadd.f32 %v2353, %v2716
  %2718 = vdwg.mxu0
  %2719 = vmatprep.subr.mxu0 %v2098
  %2720 = vmatpush1.msra.mxu0 %v2042
  %2721 = vmatprep.subr.mxu0 %v2097
  %2722 = vmatpush1.msra.mxu0 %v2041
  %2723 = vmatprep.subr.mxu0 %v2096
  %2724 = vmatpush1.msra.mxu0 %v2040
  %2725 = vmatprep.subr.mxu0 %v2095
  %2726 = vmatpush1.msra.mxu0 %v2039
  %2727 = vmatprep.subr.mxu0 %v2094
  %2728 = vmatpush1.msra.mxu0 %v2038
  %2729 = vmatprep.subr.mxu0 %v2093
  %2730 = vmatpush1.msra.mxu0 %v2037
  %2731 = vmatprep.subr.mxu0 %v2092
  %2732 = vmatpush1.msra.mxu0 %v2036
  %2733 = vmatprep.subr.mxu0 %v2091
  %2734 = vmatpush1.msra.mxu0 %v2035
  %2735 = vmatprep.subr.mxu0 %v1906
  %2736 = vmatpush1.msra.mxu0 %v1905
  %2737 = vmatprep.subr.mxu0 %v1898
  %2738 = vmatpush1.msra.mxu0 %v1897
  %2739 = vmatprep.subr.mxu0 %v1890
  %2740 = vmatpush1.msra.mxu0 %v1889
  %2741 = vmatprep.subr.mxu0 %v1882
  %2742 = vmatpush1.msra.mxu0 %v1881
  %2743 = vmatprep.subr.mxu0 %v1874
  %2744 = vmatpush1.msra.mxu0 %v1873
  %2745 = vmatprep.subr.mxu0 %v1866
  %2746 = vmatpush1.msra.mxu0 %v1865
  %2747 = vmatprep.subr.mxu0 %v1858
  %2748 = vmatpush1.msra.mxu0 %v1857
  %2749 = vmatprep.subr.mxu0 %v1850
  %2750 = vmatpush1.msra.mxu0 %v1849
  %2751 = vmatprep.subr.mxu0 0.0
  %2752 = vmatpush2.msra.mxu0 0.0
  %2753 = vmatprep.subr.mxu0 0.0
  %2754 = vmatpush2.msra.mxu0 0.0
  %2755 = vmatprep.subr.mxu0 0.0
  %2756 = vmatpush2.msra.mxu0 0.0
  %2757 = vmatprep.subr.mxu0 0.0
  %2758 = vmatpush2.msra.mxu0 0.0
  %2759 = vmatprep.subr.mxu0 0.0
  %2760 = vmatpush2.msra.mxu0 0.0
  %2761 = vmatprep.subr.mxu0 0.0
  %2762 = vmatpush2.msra.mxu0 0.0
  %2763 = vmatprep.subr.mxu0 0.0
  %2764 = vmatpush2.msra.mxu0 0.0
  %2765 = vmatprep.subr.mxu0 0.0
  %2766 = vmatpush2.msra.mxu0 0.0
  %2767 = vmatprep.subr.mxu0 %v2290
  %2768 = vmatpush2.msra.mxu0 %v2234
  %2769 = vmatprep.subr.mxu0 %v2289
  %2770 = vmatpush2.msra.mxu0 %v2233
  %2771 = vmatprep.subr.mxu0 %v2288
  %2772 = vmatpush2.msra.mxu0 %v2232
  %2773 = vmatprep.subr.mxu0 %v2287
  %2774 = vmatpush2.msra.mxu0 %v2231
  %2775 = vmatprep.subr.mxu0 %v2286
  %2776 = vmatpush2.msra.mxu0 %v2230
  %2777 = vmatprep.subr.mxu0 %v2285
  %2778 = vmatpush2.msra.mxu0 %v2229
  %2779 = vmatprep.subr.mxu0 %v2284
  %2780 = vmatpush2.msra.mxu0 %v2228
  %2781 = vmatprep.subr.mxu0 %v2283
  %2782 = vmatpush2.msra.mxu0 %v2227
  %2783 = vmatprep.mubr.f32.mxu0 %v2357
  %2784 = vmatmul.mubr.f32.gmra.mxu0 %v2291
  %v2785 = vpop.f32.mrf.mxu0
  %v2786 = vadd.f32 %v2318, %v2785
  %v2787 = vpop.f32.mrf.mxu0
  %v2788 = vadd.f32 %v2318, %v2787
  %2789 = vmatprep.mubr.f32.mxu0 %v2360
  %2790 = vmatmul.mubr.f32.gmra.mxu0 %v2293
  %v2791 = vpop.f32.mrf.mxu0
  %v2792 = vadd.f32 %v2323, %v2791
  %v2793 = vpop.f32.mrf.mxu0
  %v2794 = vadd.f32 %v2323, %v2793
  %2795 = vmatprep.mubr.f32.mxu0 %v2363
  %2796 = vmatmul.mubr.f32.gmra.mxu0 %v2295
  %v2797 = vpop.f32.mrf.mxu0
  %v2798 = vadd.f32 %v2328, %v2797
  %v2799 = vpop.f32.mrf.mxu0
  %v2800 = vadd.f32 %v2328, %v2799
  %2801 = vmatprep.mubr.f32.mxu0 %v2366
  %2802 = vmatmul.mubr.f32.gmra.mxu0 %v2297
  %v2803 = vpop.f32.mrf.mxu0
  %v2804 = vadd.f32 %v2333, %v2803
  %v2805 = vpop.f32.mrf.mxu0
  %v2806 = vadd.f32 %v2333, %v2805
  %2807 = vmatprep.mubr.f32.mxu0 %v2369
  %2808 = vmatmul.mubr.f32.gmra.mxu0 %v2299
  %v2809 = vpop.f32.mrf.mxu0
  %v2810 = vadd.f32 %v2338, %v2809
  %v2811 = vpop.f32.mrf.mxu0
  %v2812 = vadd.f32 %v2338, %v2811
  %2813 = vmatprep.mubr.f32.mxu0 %v2372
  %2814 = vmatmul.mubr.f32.gmra.mxu0 %v2301
  %v2815 = vpop.f32.mrf.mxu0
  %v2816 = vadd.f32 %v2343, %v2815
  %v2817 = vpop.f32.mrf.mxu0
  %v2818 = vadd.f32 %v2343, %v2817
  %2819 = vmatprep.mubr.f32.mxu0 %v2375
  %2820 = vmatmul.mubr.f32.gmra.mxu0 %v2303
  %v2821 = vpop.f32.mrf.mxu0
  %v2822 = vadd.f32 %v2348, %v2821
  %v2823 = vpop.f32.mrf.mxu0
  %v2824 = vadd.f32 %v2348, %v2823
  %2825 = vmatprep.mubr.f32.mxu0 %v2378
  %2826 = vmatmul.mubr.f32.gmra.mxu0 %v2305
  %v2827 = vpop.f32.mrf.mxu0
  %v2828 = vadd.f32 %v2353, %v2827
  %v2829 = vpop.f32.mrf.mxu0
  %v2830 = vadd.f32 %v2353, %v2829
  %2831 = vdwg.mxu0
  %v2832 = vmax.f32 %v2447, 0.0
  %v2833 = vmax.f32 %v2449, 0.0
  %v2834 = vmax.f32 %v2560, 0.0
  %v2835 = vmax.f32 %v2562, 0.0
  %v2836 = vmax.f32 %v2673, 0.0
  %v2837 = vmax.f32 %v2675, 0.0
  %v2838 = vmax.f32 %v2786, 0.0
  %v2839 = vmax.f32 %v2788, 0.0
  %v2840 = vmax.f32 %v2453, 0.0
  %v2841 = vmax.f32 %v2455, 0.0
  %v2842 = vmax.f32 %v2566, 0.0
  %v2843 = vmax.f32 %v2568, 0.0
  %v2844 = vmax.f32 %v2679, 0.0
  %v2845 = vmax.f32 %v2681, 0.0
  %v2846 = vmax.f32 %v2792, 0.0
  %v2847 = vmax.f32 %v2794, 0.0
  %v2848 = vmax.f32 %v2459, 0.0
  %v2849 = vmax.f32 %v2461, 0.0
  %v2850 = vmax.f32 %v2572, 0.0
  %v2851 = vmax.f32 %v2574, 0.0
  %v2852 = vmax.f32 %v2685, 0.0
  %v2853 = vmax.f32 %v2687, 0.0
  %v2854 = vmax.f32 %v2798, 0.0
  %v2855 = vmax.f32 %v2800, 0.0
  %v2856 = vmax.f32 %v2465, 0.0
  %v2857 = vmax.f32 %v2467, 0.0
  %v2858 = vmax.f32 %v2578, 0.0
  %v2859 = vmax.f32 %v2580, 0.0
  %v2860 = vmax.f32 %v2691, 0.0
  %v2861 = vmax.f32 %v2693, 0.0
  %v2862 = vmax.f32 %v2804, 0.0
  %v2863 = vmax.f32 %v2806, 0.0
  %v2864 = vmax.f32 %v2471, 0.0
  %v2865 = vmax.f32 %v2473, 0.0
  %v2866 = vmax.f32 %v2584, 0.0
  %v2867 = vmax.f32 %v2586, 0.0
  %v2868 = vmax.f32 %v2697, 0.0
  %v2869 = vmax.f32 %v2699, 0.0
  %v2870 = vmax.f32 %v2810, 0.0
  %v2871 = vmax.f32 %v2812, 0.0
  %v2872 = vmax.f32 %v2477, 0.0
  %v2873 = vmax.f32 %v2479, 0.0
  %v2874 = vmax.f32 %v2590, 0.0
  %v2875 = vmax.f32 %v2592, 0.0
  %v2876 = vmax.f32 %v2703, 0.0
  %v2877 = vmax.f32 %v2705, 0.0
  %v2878 = vmax.f32 %v2816, 0.0
  %v2879 = vmax.f32 %v2818, 0.0
  %v2880 = vmax.f32 %v2483, 0.0
  %v2881 = vmax.f32 %v2485, 0.0
  %v2882 = vmax.f32 %v2596, 0.0
  %v2883 = vmax.f32 %v2598, 0.0
  %v2884 = vmax.f32 %v2709, 0.0
  %v2885 = vmax.f32 %v2711, 0.0
  %v2886 = vmax.f32 %v2822, 0.0
  %v2887 = vmax.f32 %v2824, 0.0
  %v2888 = vmax.f32 %v2489, 0.0
  %v2889 = vmax.f32 %v2491, 0.0
  %v2890 = vmax.f32 %v2602, 0.0
  %v2891 = vmax.f32 %v2604, 0.0
  %v2892 = vmax.f32 %v2715, 0.0
  %v2893 = vmax.f32 %v2717, 0.0
  %v2894 = vmax.f32 %v2828, 0.0
  %v2895 = vmax.f32 %v2830, 0.0
  %2896 = vrot.lane.b32.xlu0 %v2832, 127
  %v2897 = vpop.permute.xlu0 %2896
  %2898 = vrot.lane.b32.xlu0 %v2840, 127
  %v2899 = vpop.permute.xlu0 %2898
  %2900 = vrot.lane.b32.xlu0 %v2848, 127
  %v2901 = vpop.permute.xlu0 %2900
  %2902 = vrot.lane.b32.xlu0 %v2856, 127
  %v2903 = vpop.permute.xlu0 %2902
  %2904 = vrot.lane.b32.xlu0 %v2864, 127
  %v2905 = vpop.permute.xlu0 %2904
  %2906 = vrot.lane.b32.xlu0 %v2872, 127
  %v2907 = vpop.permute.xlu0 %2906
  %2908 = vrot.lane.b32.xlu0 %v2880, 127
  %v2909 = vpop.permute.xlu0 %2908
  %2910 = vrot.lane.b32.xlu0 %v2888, 127
  %v2911 = vpop.permute.xlu0 %2910
  %2912 = vrot.lane.b32.xlu0 %v2833, 127
  %v2913 = vpop.permute.xlu0 %2912
  %2914 = vrot.lane.b32.xlu0 %v2841, 127
  %v2915 = vpop.permute.xlu0 %2914
  %2916 = vrot.lane.b32.xlu0 %v2849, 127
  %v2917 = vpop.permute.xlu0 %2916
  %2918 = vrot.lane.b32.xlu0 %v2857, 127
  %v2919 = vpop.permute.xlu0 %2918
  %2920 = vrot.lane.b32.xlu0 %v2865, 127
  %v2921 = vpop.permute.xlu0 %2920
  %2922 = vrot.lane.b32.xlu0 %v2873, 127
  %v2923 = vpop.permute.xlu0 %2922
  %2924 = vrot.lane.b32.xlu0 %v2881, 127
  %v2925 = vpop.permute.xlu0 %2924
  %2926 = vrot.lane.b32.xlu0 %v2889, 127
  %v2927 = vpop.permute.xlu0 %2926
  %2928 = vrot.lane.b32.xlu0 %v2834, 127
  %v2929 = vpop.permute.xlu0 %2928
  %2930 = vrot.lane.b32.xlu0 %v2842, 127
  %v2931 = vpop.permute.xlu0 %2930
  %2932 = vrot.lane.b32.xlu0 %v2850, 127
  %v2933 = vpop.permute.xlu0 %2932
  %2934 = vrot.lane.b32.xlu0 %v2858, 127
  %v2935 = vpop.permute.xlu0 %2934
  %2936 = vrot.lane.b32.xlu0 %v2866, 127
  %v2937 = vpop.permute.xlu0 %2936
  %2938 = vrot.lane.b32.xlu0 %v2874, 127
  %v2939 = vpop.permute.xlu0 %2938
  %2940 = vrot.lane.b32.xlu0 %v2882, 127
  %v2941 = vpop.permute.xlu0 %2940
  %2942 = vrot.lane.b32.xlu0 %v2890, 127
  %v2943 = vpop.permute.xlu0 %2942
  %2944 = vrot.lane.b32.xlu0 %v2835, 127
  %v2945 = vpop.permute.xlu0 %2944
  %2946 = vrot.lane.b32.xlu0 %v2843, 127
  %v2947 = vpop.permute.xlu0 %2946
  %2948 = vrot.lane.b32.xlu0 %v2851, 127
  %v2949 = vpop.permute.xlu0 %2948
  %2950 = vrot.lane.b32.xlu0 %v2859, 127
  %v2951 = vpop.permute.xlu0 %2950
  %2952 = vrot.lane.b32.xlu0 %v2867, 127
  %v2953 = vpop.permute.xlu0 %2952
  %2954 = vrot.lane.b32.xlu0 %v2875, 127
  %v2955 = vpop.permute.xlu0 %2954
  %2956 = vrot.lane.b32.xlu0 %v2883, 127
  %v2957 = vpop.permute.xlu0 %2956
  %2958 = vrot.lane.b32.xlu0 %v2891, 127
  %v2959 = vpop.permute.xlu0 %2958
  %2960 = vrot.lane.b32.xlu0 %v2836, 127
  %v2961 = vpop.permute.xlu0 %2960
  %2962 = vrot.lane.b32.xlu0 %v2844, 127
  %v2963 = vpop.permute.xlu0 %2962
  %2964 = vrot.lane.b32.xlu0 %v2852, 127
  %v2965 = vpop.permute.xlu0 %2964
  %2966 = vrot.lane.b32.xlu0 %v2860, 127
  %v2967 = vpop.permute.xlu0 %2966
  %2968 = vrot.lane.b32.xlu0 %v2868, 127
  %v2969 = vpop.permute.xlu0 %2968
  %2970 = vrot.lane.b32.xlu0 %v2876, 127
  %v2971 = vpop.permute.xlu0 %2970
  %2972 = vrot.lane.b32.xlu0 %v2884, 127
  %v2973 = vpop.permute.xlu0 %2972
  %2974 = vrot.lane.b32.xlu0 %v2892, 127
  %v2975 = vpop.permute.xlu0 %2974
  %2976 = vrot.lane.b32.xlu0 %v2837, 127
  %v2977 = vpop.permute.xlu0 %2976
  %2978 = vrot.lane.b32.xlu0 %v2845, 127
  %v2979 = vpop.permute.xlu0 %2978
  %2980 = vrot.lane.b32.xlu0 %v2853, 127
  %v2981 = vpop.permute.xlu0 %2980
  %2982 = vrot.lane.b32.xlu0 %v2861, 127
  %v2983 = vpop.permute.xlu0 %2982
  %2984 = vrot.lane.b32.xlu0 %v2869, 127
  %v2985 = vpop.permute.xlu0 %2984
  %2986 = vrot.lane.b32.xlu0 %v2877, 127
  %v2987 = vpop.permute.xlu0 %2986
  %2988 = vrot.lane.b32.xlu0 %v2885, 127
  %v2989 = vpop.permute.xlu0 %2988
  %2990 = vrot.lane.b32.xlu0 %v2893, 127
  %v2991 = vpop.permute.xlu0 %2990
  %2992 = vrot.lane.b32.xlu0 %v2838, 127
  %v2993 = vpop.permute.xlu0 %2992
  %2994 = vrot.lane.b32.xlu0 %v2846, 127
  %v2995 = vpop.permute.xlu0 %2994
  %2996 = vrot.lane.b32.xlu0 %v2854, 127
  %v2997 = vpop.permute.xlu0 %2996
  %2998 = vrot.lane.b32.xlu0 %v2862, 127
  %v2999 = vpop.permute.xlu0 %2998
  %3000 = vrot.lane.b32.xlu0 %v2870, 127
  %v3001 = vpop.permute.xlu0 %3000
  %3002 = vrot.lane.b32.xlu0 %v2878, 127
  %v3003 = vpop.permute.xlu0 %3002
  %3004 = vrot.lane.b32.xlu0 %v2886, 127
  %v3005 = vpop.permute.xlu0 %3004
  %3006 = vrot.lane.b32.xlu0 %v2894, 127
  %v3007 = vpop.permute.xlu0 %3006
  %3008 = vrot.lane.b32.xlu0 %v2839, 127
  %v3009 = vpop.permute.xlu0 %3008
  %3010 = vrot.lane.b32.xlu0 %v2847, 127
  %v3011 = vpop.permute.xlu0 %3010
  %3012 = vrot.lane.b32.xlu0 %v2855, 127
  %v3013 = vpop.permute.xlu0 %3012
  %3014 = vrot.lane.b32.xlu0 %v2863, 127
  %v3015 = vpop.permute.xlu0 %3014
  %3016 = vrot.lane.b32.xlu0 %v2871, 127
  %v3017 = vpop.permute.xlu0 %3016
  %3018 = vrot.lane.b32.xlu0 %v2879, 127
  %v3019 = vpop.permute.xlu0 %3018
  %3020 = vrot.lane.b32.xlu0 %v2887, 127
  %v3021 = vpop.permute.xlu0 %3020
  %3022 = vrot.lane.b32.xlu0 %v2895, 127
  %v3023 = vpop.permute.xlu0 %3022
  %v3024 = vsel %vm73, %v2993, %v3009
  %v3025 = vsel %vm73, %v2995, %v3011
  %v3026 = vsel %vm73, %v2997, %v3013
  %v3027 = vsel %vm73, %v2999, %v3015
  %v3028 = vsel %vm73, %v3001, %v3017
  %v3029 = vsel %vm73, %v3003, %v3019
  %v3030 = vsel %vm73, %v3005, %v3021
  %v3031 = vsel %vm73, %v3007, %v3023
  %v3032 = vsel %vm73, %v2977, %v2993
  %v3033 = vsel %vm73, %v2979, %v2995
  %v3034 = vsel %vm73, %v2981, %v2997
  %v3035 = vsel %vm73, %v2983, %v2999
  %v3036 = vsel %vm73, %v2985, %v3001
  %v3037 = vsel %vm73, %v2987, %v3003
  %v3038 = vsel %vm73, %v2989, %v3005
  %v3039 = vsel %vm73, %v2991, %v3007
  %v3040 = vsel %vm73, %v2961, %v2977
  %v3041 = vsel %vm73, %v2963, %v2979
  %v3042 = vsel %vm73, %v2965, %v2981
  %v3043 = vsel %vm73, %v2967, %v2983
  %v3044 = vsel %vm73, %v2969, %v2985
  %v3045 = vsel %vm73, %v2971, %v2987
  %v3046 = vsel %vm73, %v2973, %v2989
  %v3047 = vsel %vm73, %v2975, %v2991
  %v3048 = vsel %vm73, %v2945, %v2961
  %v3049 = vsel %vm73, %v2947, %v2963
  %v3050 = vsel %vm73, %v2949, %v2965
  %v3051 = vsel %vm73, %v2951, %v2967
  %v3052 = vsel %vm73, %v2953, %v2969
  %v3053 = vsel %vm73, %v2955, %v2971
  %v3054 = vsel %vm73, %v2957, %v2973
  %v3055 = vsel %vm73, %v2959, %v2975
  %v3056 = vsel %vm73, %v2929, %v2945
  %v3057 = vsel %vm73, %v2931, %v2947
  %v3058 = vsel %vm73, %v2933, %v2949
  %v3059 = vsel %vm73, %v2935, %v2951
  %v3060 = vsel %vm73, %v2937, %v2953
  %v3061 = vsel %vm73, %v2939, %v2955
  %v3062 = vsel %vm73, %v2941, %v2957
  %v3063 = vsel %vm73, %v2943, %v2959
  %v3064 = vsel %vm73, %v2913, %v2929
  %v3065 = vsel %vm73, %v2915, %v2931
  %v3066 = vsel %vm73, %v2917, %v2933
  %v3067 = vsel %vm73, %v2919, %v2935
  %v3068 = vsel %vm73, %v2921, %v2937
  %v3069 = vsel %vm73, %v2923, %v2939
  %v3070 = vsel %vm73, %v2925, %v2941
  %v3071 = vsel %vm73, %v2927, %v2943
  %v3072 = vsel %vm73, %v2897, %v2913
  %v3073 = vsel %vm73, %v2899, %v2915
  %v3074 = vsel %vm73, %v2901, %v2917
  %v3075 = vsel %vm73, %v2903, %v2919
  %v3076 = vsel %vm73, %v2905, %v2921
  %v3077 = vsel %vm73, %v2907, %v2923
  %v3078 = vsel %vm73, %v2909, %v2925
  %v3079 = vsel %vm73, %v2911, %v2927
  %v3080 = vsel %vm73, %v3009, %v2897
  %v3081 = vsel %vm73, %v3011, %v2899
  %v3082 = vsel %vm73, %v3013, %v2901
  %v3083 = vsel %vm73, %v3015, %v2903
  %v3084 = vsel %vm73, %v3017, %v2905
  %v3085 = vsel %vm73, %v3019, %v2907
  %v3086 = vsel %vm73, %v3021, %v2909
  %v3087 = vsel %vm73, %v3023, %v2911
  %v3088 = vmax.f32 %v2832, %v3072
  %v3089 = vmax.f32 %v2833, %v3064
  %v3090 = vmax.f32 %v2834, %v3056
  %v3091 = vmax.f32 %v2835, %v3048
  %v3092 = vmax.f32 %v2836, %v3040
  %v3093 = vmax.f32 %v2837, %v3032
  %v3094 = vmax.f32 %v2838, %v3024
  %v3095 = vmax.f32 %v2839, %v3080
  %v3096 = vmax.f32 %v2840, %v3073
  %v3097 = vmax.f32 %v2841, %v3065
  %v3098 = vmax.f32 %v2842, %v3057
  %v3099 = vmax.f32 %v2843, %v3049
  %v3100 = vmax.f32 %v2844, %v3041
  %v3101 = vmax.f32 %v2845, %v3033
  %v3102 = vmax.f32 %v2846, %v3025
  %v3103 = vmax.f32 %v2847, %v3081
  %v3104 = vmax.f32 %v2848, %v3074
  %v3105 = vmax.f32 %v2849, %v3066
  %v3106 = vmax.f32 %v2850, %v3058
  %v3107 = vmax.f32 %v2851, %v3050
  %v3108 = vmax.f32 %v2852, %v3042
  %v3109 = vmax.f32 %v2853, %v3034
  %v3110 = vmax.f32 %v2854, %v3026
  %v3111 = vmax.f32 %v2855, %v3082
  %v3112 = vmax.f32 %v2856, %v3075
  %v3113 = vmax.f32 %v2857, %v3067
  %v3114 = vmax.f32 %v2858, %v3059
  %v3115 = vmax.f32 %v2859, %v3051
  %v3116 = vmax.f32 %v2860, %v3043
  %v3117 = vmax.f32 %v2861, %v3035
  %v3118 = vmax.f32 %v2862, %v3027
  %v3119 = vmax.f32 %v2863, %v3083
  %v3120 = vmax.f32 %v2864, %v3076
  %v3121 = vmax.f32 %v2865, %v3068
  %v3122 = vmax.f32 %v2866, %v3060
  %v3123 = vmax.f32 %v2867, %v3052
  %v3124 = vmax.f32 %v2868, %v3044
  %v3125 = vmax.f32 %v2869, %v3036
  %v3126 = vmax.f32 %v2870, %v3028
  %v3127 = vmax.f32 %v2871, %v3084
  %v3128 = vmax.f32 %v2872, %v3077
  %v3129 = vmax.f32 %v2873, %v3069
  %v3130 = vmax.f32 %v2874, %v3061
  %v3131 = vmax.f32 %v2875, %v3053
  %v3132 = vmax.f32 %v2876, %v3045
  %v3133 = vmax.f32 %v2877, %v3037
  %v3134 = vmax.f32 %v2878, %v3029
  %v3135 = vmax.f32 %v2879, %v3085
  %v3136 = vmax.f32 %v2880, %v3078
  %v3137 = vmax.f32 %v2881, %v3070
  %v3138 = vmax.f32 %v2882, %v3062
  %v3139 = vmax.f32 %v2883, %v3054
  %v3140 = vmax.f32 %v2884, %v3046
  %v3141 = vmax.f32 %v2885, %v3038
  %v3142 = vmax.f32 %v2886, %v3030
  %v3143 = vmax.f32 %v2887, %v3086
  %v3144 = vmax.f32 %v2888, %v3079
  %v3145 = vmax.f32 %v2889, %v3071
  %v3146 = vmax.f32 %v2890, %v3063
  %v3147 = vmax.f32 %v2891, %v3055
  %v3148 = vmax.f32 %v2892, %v3047
  %v3149 = vmax.f32 %v2893, %v3039
  %v3150 = vmax.f32 %v2894, %v3031
  %v3151 = vmax.f32 %v2895, %v3087
  %v3152 = vld [vmem:[%s5] sm:$0xff]
  %v3153 = vld [vmem:[%s5 + $0x8] sm:$0xff]
  %v3154 = vld [vmem:[%s5 + $0x10] sm:$0xff]
  %v3155 = vld [vmem:[%s5 + $0x18] sm:$0xff]
  %v3156 = vld [vmem:[%s5 + $0x20] sm:$0xff]
  %v3157 = vld [vmem:[%s5 + $0x28] sm:$0xff]
  %v3158 = vld [vmem:[%s5 + $0x30] sm:$0xff]
  %v3159 = vld [vmem:[%s5 + $0x38] sm:$0xff]
  %v3160 = vld [vmem:[%s5 + $0x40] sm:$0xff]
  %v3161 = vld [vmem:[%s5 + $0x48] sm:$0xff]
  %v3162 = vld [vmem:[%s5 + $0x50] sm:$0xff]
  %v3163 = vld [vmem:[%s5 + $0x58] sm:$0xff]
  %v3164 = vld [vmem:[%s5 + $0x60] sm:$0xff]
  %v3165 = vld [vmem:[%s5 + $0x68] sm:$0xff]
  %v3166 = vld [vmem:[%s5 + $0x70] sm:$0xff]
  %v3167 = vld [vmem:[%s5 + $0x78] sm:$0xff]
  %3168 = vmatprep.subr.mxu0 0.0
  %3169 = vmatpush1.msra.mxu0 %v3167
  %3170 = vmatprep.subr.mxu0 0.0
  %3171 = vmatpush1.msra.mxu0 %v3166
  %3172 = vmatprep.subr.mxu0 0.0
  %3173 = vmatpush1.msra.mxu0 %v3165
  %3174 = vmatprep.subr.mxu0 0.0
  %3175 = vmatpush1.msra.mxu0 %v3164
  %3176 = vmatprep.subr.mxu0 0.0
  %3177 = vmatpush1.msra.mxu0 %v3163
  %3178 = vmatprep.subr.mxu0 0.0
  %3179 = vmatpush1.msra.mxu0 %v3162
  %3180 = vmatprep.subr.mxu0 0.0
  %3181 = vmatpush1.msra.mxu0 %v3161
  %3182 = vmatprep.subr.mxu0 0.0
  %3183 = vmatpush1.msra.mxu0 %v3160
  %3184 = vmatprep.subr.mxu0 0.0
  %3185 = vmatpush1.msra.mxu0 %v3159
  %3186 = vmatprep.subr.mxu0 0.0
  %3187 = vmatpush1.msra.mxu0 %v3158
  %3188 = vmatprep.subr.mxu0 0.0
  %3189 = vmatpush1.msra.mxu0 %v3157
  %3190 = vmatprep.subr.mxu0 0.0
  %3191 = vmatpush1.msra.mxu0 %v3156
  %3192 = vmatprep.subr.mxu0 0.0
  %3193 = vmatpush1.msra.mxu0 %v3155
  %3194 = vmatprep.subr.mxu0 0.0
  %3195 = vmatpush1.msra.mxu0 %v3154
  %3196 = vmatprep.subr.mxu0 0.0
  %3197 = vmatpush1.msra.mxu0 %v3153
  %3198 = vmatprep.subr.mxu0 0.0
  %3199 = vmatpush1.msra.mxu0 %v3152
  %3200 = vmatprep.subr.mxu0 0.0
  %3201 = vmatpush2.msra.mxu0 0.0
  %3202 = vmatprep.subr.mxu0 0.0
  %3203 = vmatpush2.msra.mxu0 0.0
  %3204 = vmatprep.subr.mxu0 0.0
  %3205 = vmatpush2.msra.mxu0 0.0
  %3206 = vmatprep.subr.mxu0 0.0
  %3207 = vmatpush2.msra.mxu0 0.0
  %3208 = vmatprep.subr.mxu0 0.0
  %3209 = vmatpush2.msra.mxu0 0.0
  %3210 = vmatprep.subr.mxu0 0.0
  %3211 = vmatpush2.msra.mxu0 0.0
  %3212 = vmatprep.subr.mxu0 0.0
  %3213 = vmatpush2.msra.mxu0 0.0
  %3214 = vmatprep.subr.mxu0 0.0
  %3215 = vmatpush2.msra.mxu0 0.0
  %3216 = vmatprep.subr.mxu0 0.0
  %3217 = vmatpush2.msra.mxu0 0.0
  %3218 = vmatprep.subr.mxu0 0.0
  %3219 = vmatpush2.msra.mxu0 0.0
  %3220 = vmatprep.subr.mxu0 0.0
  %3221 = vmatpush2.msra.mxu0 0.0
  %3222 = vmatprep.subr.mxu0 0.0
  %3223 = vmatpush2.msra.mxu0 0.0
  %3224 = vmatprep.subr.mxu0 0.0
  %3225 = vmatpush2.msra.mxu0 0.0
  %3226 = vmatprep.subr.mxu0 0.0
  %3227 = vmatpush2.msra.mxu0 0.0
  %3228 = vmatprep.subr.mxu0 0.0
  %3229 = vmatpush2.msra.mxu0 0.0
  %3230 = vmatprep.subr.mxu0 0.0
  %3231 = vmatpush2.msra.mxu0 0.0
  %3232 = vmatprep.mubr.f32.mxu0 0.0
  %3233 = vmatmul.mubr.f32.gmra.mxu0 %v3088
  %v3234 = vpop.f32.mrf.mxu0
  %v3235 = vadd.f32 0.0, %v3234
  %v3236 = vpop.f32.mrf.mxu0
  %3237 = vmatprep.mubr.f32.mxu0 0.0
  %3238 = vmatmul.mubr.f32.gmra.mxu0 %v3096
  %v3239 = vpop.f32.mrf.mxu0
  %v3240 = vadd.f32 0.0, %v3239
  %v3241 = vpop.f32.mrf.mxu0
  %3242 = vmatprep.mubr.f32.mxu0 0.0
  %3243 = vmatmul.mubr.f32.gmra.mxu0 %v3104
  %v3244 = vpop.f32.mrf.mxu0
  %v3245 = vadd.f32 0.0, %v3244
  %v3246 = vpop.f32.mrf.mxu0
  %3247 = vmatprep.mubr.f32.mxu0 0.0
  %3248 = vmatmul.mubr.f32.gmra.mxu0 %v3112
  %v3249 = vpop.f32.mrf.mxu0
  %v3250 = vadd.f32 0.0, %v3249
  %v3251 = vpop.f32.mrf.mxu0
  %3252 = vmatprep.mubr.f32.mxu0 0.0
  %3253 = vmatmul.mubr.f32.gmra.mxu0 %v3120
  %v3254 = vpop.f32.mrf.mxu0
  %v3255 = vadd.f32 0.0, %v3254
  %v3256 = vpop.f32.mrf.mxu0
  %3257 = vmatprep.mubr.f32.mxu0 0.0
  %3258 = vmatmul.mubr.f32.gmra.mxu0 %v3128
  %v3259 = vpop.f32.mrf.mxu0
  %v3260 = vadd.f32 0.0, %v3259
  %v3261 = vpop.f32.mrf.mxu0
  %3262 = vmatprep.mubr.f32.mxu0 0.0
  %3263 = vmatmul.mubr.f32.gmra.mxu0 %v3136
  %v3264 = vpop.f32.mrf.mxu0
  %v3265 = vadd.f32 0.0, %v3264
  %v3266 = vpop.f32.mrf.mxu0
  %3267 = vmatprep.mubr.f32.mxu0 0.0
  %3268 = vmatmul.mubr.f32.gmra.mxu0 %v3144
  %v3269 = vpop.f32.mrf.mxu0
  %v3270 = vadd.f32 0.0, %v3269
  %v3271 = vpop.f32.mrf.mxu0
  %3272 = vdwg.mxu0
  %vm3273 = vcmask 506880
  %3274 = vst.msk [vmem:[%s6] sm:$0xff] %vm3273, %v3235
  %3275 = vst.msk [vmem:[%s6 + $0x8] sm:$0xff] %vm3273, %v3240
  %3276 = vst.msk [vmem:[%s6 + $0x10] sm:$0xff] %vm3273, %v3245
  %3277 = vst.msk [vmem:[%s6 + $0x18] sm:$0xff] %vm3273, %v3250
  %3278 = vst.msk [vmem:[%s6 + $0x20] sm:$0xff] %vm3273, %v3255
  %3279 = vst.msk [vmem:[%s6 + $0x28] sm:$0xff] %vm3273, %v3260
  %3280 = vst.msk [vmem:[%s6 + $0x30] sm:$0xff] %vm3273, %v3265
  %3281 = vst.msk [vmem:[%s6 + $0x38] sm:$0xff] %vm3273, %v3270
  %3282 = vmatprep.subr.mxu0 0.0
  %3283 = vmatpush1.msra.mxu0 %v3167
  %3284 = vmatprep.subr.mxu0 0.0
  %3285 = vmatpush1.msra.mxu0 %v3166
  %3286 = vmatprep.subr.mxu0 0.0
  %3287 = vmatpush1.msra.mxu0 %v3165
  %3288 = vmatprep.subr.mxu0 0.0
  %3289 = vmatpush1.msra.mxu0 %v3164
  %3290 = vmatprep.subr.mxu0 0.0
  %3291 = vmatpush1.msra.mxu0 %v3163
  %3292 = vmatprep.subr.mxu0 0.0
  %3293 = vmatpush1.msra.mxu0 %v3162
  %3294 = vmatprep.subr.mxu0 0.0
  %3295 = vmatpush1.msra.mxu0 %v3161
  %3296 = vmatprep.subr.mxu0 0.0
  %3297 = vmatpush1.msra.mxu0 %v3160
  %3298 = vmatprep.subr.mxu0 0.0
  %3299 = vmatpush1.msra.mxu0 %v3159
  %3300 = vmatprep.subr.mxu0 0.0
  %3301 = vmatpush1.msra.mxu0 %v3158
  %3302 = vmatprep.subr.mxu0 0.0
  %3303 = vmatpush1.msra.mxu0 %v3157
  %3304 = vmatprep.subr.mxu0 0.0
  %3305 = vmatpush1.msra.mxu0 %v3156
  %3306 = vmatprep.subr.mxu0 0.0
  %3307 = vmatpush1.msra.mxu0 %v3155
  %3308 = vmatprep.subr.mxu0 0.0
  %3309 = vmatpush1.msra.mxu0 %v3154
  %3310 = vmatprep.subr.mxu0 0.0
  %3311 = vmatpush1.msra.mxu0 %v3153
  %3312 = vmatprep.subr.mxu0 0.0
  %3313 = vmatpush1.msra.mxu0 %v3152
  %3314 = vmatprep.subr.mxu0 0.0
  %3315 = vmatpush2.msra.mxu0 0.0
  %3316 = vmatprep.subr.mxu0 0.0
  %3317 = vmatpush2.msra.mxu0 0.0
  %3318 = vmatprep.subr.mxu0 0.0
  %3319 = vmatpush2.msra.mxu0 0.0
  %3320 = vmatprep.subr.mxu0 0.0
  %3321 = vmatpush2.msra.mxu0 0.0
  %3322 = vmatprep.subr.mxu0 0.0
  %3323 = vmatpush2.msra.mxu0 0.0
  %3324 = vmatprep.subr.mxu0 0.0
  %3325 = vmatpush2.msra.mxu0 0.0
  %3326 = vmatprep.subr.mxu0 0.0
  %3327 = vmatpush2.msra.mxu0 0.0
  %3328 = vmatprep.subr.mxu0 0.0
  %3329 = vmatpush2.msra.mxu0 0.0
  %3330 = vmatprep.subr.mxu0 0.0
  %3331 = vmatpush2.msra.mxu0 0.0
  %3332 = vmatprep.subr.mxu0 0.0
  %3333 = vmatpush2.msra.mxu0 0.0
  %3334 = vmatprep.subr.mxu0 0.0
  %3335 = vmatpush2.msra.mxu0 0.0
  %3336 = vmatprep.subr.mxu0 0.0
  %3337 = vmatpush2.msra.mxu0 0.0
  %3338 = vmatprep.subr.mxu0 0.0
  %3339 = vmatpush2.msra.mxu0 0.0
  %3340 = vmatprep.subr.mxu0 0.0
  %3341 = vmatpush2.msra.mxu0 0.0
  %3342 = vmatprep.subr.mxu0 0.0
  %3343 = vmatpush2.msra.mxu0 0.0
  %3344 = vmatprep.subr.mxu0 0.0
  %3345 = vmatpush2.msra.mxu0 0.0
  %3346 = vmatprep.mubr.f32.mxu0 0.0
  %3347 = vmatmul.mubr.f32.gmra.mxu0 %v3089
  %v3348 = vpop.f32.mrf.mxu0
  %v3349 = vadd.f32 0.0, %v3348
  %v3350 = vpop.f32.mrf.mxu0
  %3351 = vmatprep.mubr.f32.mxu0 0.0
  %3352 = vmatmul.mubr.f32.gmra.mxu0 %v3097
  %v3353 = vpop.f32.mrf.mxu0
  %v3354 = vadd.f32 0.0, %v3353
  %v3355 = vpop.f32.mrf.mxu0
  %3356 = vmatprep.mubr.f32.mxu0 0.0
  %3357 = vmatmul.mubr.f32.gmra.mxu0 %v3105
  %v3358 = vpop.f32.mrf.mxu0
  %v3359 = vadd.f32 0.0, %v3358
  %v3360 = vpop.f32.mrf.mxu0
  %3361 = vmatprep.mubr.f32.mxu0 0.0
  %3362 = vmatmul.mubr.f32.gmra.mxu0 %v3113
  %v3363 = vpop.f32.mrf.mxu0
  %v3364 = vadd.f32 0.0, %v3363
  %v3365 = vpop.f32.mrf.mxu0
  %3366 = vmatprep.mubr.f32.mxu0 0.0
  %3367 = vmatmul.mubr.f32.gmra.mxu0 %v3121
  %v3368 = vpop.f32.mrf.mxu0
  %v3369 = vadd.f32 0.0, %v3368
  %v3370 = vpop.f32.mrf.mxu0
  %3371 = vmatprep.mubr.f32.mxu0 0.0
  %3372 = vmatmul.mubr.f32.gmra.mxu0 %v3129
  %v3373 = vpop.f32.mrf.mxu0
  %v3374 = vadd.f32 0.0, %v3373
  %v3375 = vpop.f32.mrf.mxu0
  %3376 = vmatprep.mubr.f32.mxu0 0.0
  %3377 = vmatmul.mubr.f32.gmra.mxu0 %v3137
  %v3378 = vpop.f32.mrf.mxu0
  %v3379 = vadd.f32 0.0, %v3378
  %v3380 = vpop.f32.mrf.mxu0
  %3381 = vmatprep.mubr.f32.mxu0 0.0
  %3382 = vmatmul.mubr.f32.gmra.mxu0 %v3145
  %v3383 = vpop.f32.mrf.mxu0
  %v3384 = vadd.f32 0.0, %v3383
  %v3385 = vpop.f32.mrf.mxu0
  %3386 = vdwg.mxu0
  %s3387 = scalar_lea.vmem %s6, 64
  %3388 = vst.msk [vmem:[%s3387] sm:$0xff] %vm3273, %v3349
  %3389 = vst.msk [vmem:[%s3387 + $0x8] sm:$0xff] %vm3273, %v3354
  %3390 = vst.msk [vmem:[%s3387 + $0x10] sm:$0xff] %vm3273, %v3359
  %3391 = vst.msk [vmem:[%s3387 + $0x18] sm:$0xff] %vm3273, %v3364
  %3392 = vst.msk [vmem:[%s3387 + $0x20] sm:$0xff] %vm3273, %v3369
  %3393 = vst.msk [vmem:[%s3387 + $0x28] sm:$0xff] %vm3273, %v3374
  %3394 = vst.msk [vmem:[%s3387 + $0x30] sm:$0xff] %vm3273, %v3379
  %3395 = vst.msk [vmem:[%s3387 + $0x38] sm:$0xff] %vm3273, %v3384
  %3396 = vmatprep.subr.mxu0 0.0
  %3397 = vmatpush1.msra.mxu0 %v3167
  %3398 = vmatprep.subr.mxu0 0.0
  %3399 = vmatpush1.msra.mxu0 %v3166
  %3400 = vmatprep.subr.mxu0 0.0
  %3401 = vmatpush1.msra.mxu0 %v3165
  %3402 = vmatprep.subr.mxu0 0.0
  %3403 = vmatpush1.msra.mxu0 %v3164
  %3404 = vmatprep.subr.mxu0 0.0
  %3405 = vmatpush1.msra.mxu0 %v3163
  %3406 = vmatprep.subr.mxu0 0.0
  %3407 = vmatpush1.msra.mxu0 %v3162
  %3408 = vmatprep.subr.mxu0 0.0
  %3409 = vmatpush1.msra.mxu0 %v3161
  %3410 = vmatprep.subr.mxu0 0.0
  %3411 = vmatpush1.msra.mxu0 %v3160
  %3412 = vmatprep.subr.mxu0 0.0
  %3413 = vmatpush1.msra.mxu0 %v3159
  %3414 = vmatprep.subr.mxu0 0.0
  %3415 = vmatpush1.msra.mxu0 %v3158
  %3416 = vmatprep.subr.mxu0 0.0
  %3417 = vmatpush1.msra.mxu0 %v3157
  %3418 = vmatprep.subr.mxu0 0.0
  %3419 = vmatpush1.msra.mxu0 %v3156
  %3420 = vmatprep.subr.mxu0 0.0
  %3421 = vmatpush1.msra.mxu0 %v3155
  %3422 = vmatprep.subr.mxu0 0.0
  %3423 = vmatpush1.msra.mxu0 %v3154
  %3424 = vmatprep.subr.mxu0 0.0
  %3425 = vmatpush1.msra.mxu0 %v3153
  %3426 = vmatprep.subr.mxu0 0.0
  %3427 = vmatpush1.msra.mxu0 %v3152
  %3428 = vmatprep.subr.mxu0 0.0
  %3429 = vmatpush2.msra.mxu0 0.0
  %3430 = vmatprep.subr.mxu0 0.0
  %3431 = vmatpush2.msra.mxu0 0.0
  %3432 = vmatprep.subr.mxu0 0.0
  %3433 = vmatpush2.msra.mxu0 0.0
  %3434 = vmatprep.subr.mxu0 0.0
  %3435 = vmatpush2.msra.mxu0 0.0
  %3436 = vmatprep.subr.mxu0 0.0
  %3437 = vmatpush2.msra.mxu0 0.0
  %3438 = vmatprep.subr.mxu0 0.0
  %3439 = vmatpush2.msra.mxu0 0.0
  %3440 = vmatprep.subr.mxu0 0.0
  %3441 = vmatpush2.msra.mxu0 0.0
  %3442 = vmatprep.subr.mxu0 0.0
  %3443 = vmatpush2.msra.mxu0 0.0
  %3444 = vmatprep.subr.mxu0 0.0
  %3445 = vmatpush2.msra.mxu0 0.0
  %3446 = vmatprep.subr.mxu0 0.0
  %3447 = vmatpush2.msra.mxu0 0.0
  %3448 = vmatprep.subr.mxu0 0.0
  %3449 = vmatpush2.msra.mxu0 0.0
  %3450 = vmatprep.subr.mxu0 0.0
  %3451 = vmatpush2.msra.mxu0 0.0
  %3452 = vmatprep.subr.mxu0 0.0
  %3453 = vmatpush2.msra.mxu0 0.0
  %3454 = vmatprep.subr.mxu0 0.0
  %3455 = vmatpush2.msra.mxu0 0.0
  %3456 = vmatprep.subr.mxu0 0.0
  %3457 = vmatpush2.msra.mxu0 0.0
  %3458 = vmatprep.subr.mxu0 0.0
  %3459 = vmatpush2.msra.mxu0 0.0
  %3460 = vmatprep.mubr.f32.mxu0 0.0
  %3461 = vmatmul.mubr.f32.gmra.mxu0 %v3090
  %v3462 = vpop.f32.mrf.mxu0
  %v3463 = vadd.f32 0.0, %v3462
  %v3464 = vpop.f32.mrf.mxu0
  %3465 = vmatprep.mubr.f32.mxu0 0.0
  %3466 = vmatmul.mubr.f32.gmra.mxu0 %v3098
  %v3467 = vpop.f32.mrf.mxu0
  %v3468 = vadd.f32 0.0, %v3467
  %v3469 = vpop.f32.mrf.mxu0
  %3470 = vmatprep.mubr.f32.mxu0 0.0
  %3471 = vmatmul.mubr.f32.gmra.mxu0 %v3106
  %v3472 = vpop.f32.mrf.mxu0
  %v3473 = vadd.f32 0.0, %v3472
  %v3474 = vpop.f32.mrf.mxu0
  %3475 = vmatprep.mubr.f32.mxu0 0.0
  %3476 = vmatmul.mubr.f32.gmra.mxu0 %v3114
  %v3477 = vpop.f32.mrf.mxu0
  %v3478 = vadd.f32 0.0, %v3477
  %v3479 = vpop.f32.mrf.mxu0
  %3480 = vmatprep.mubr.f32.mxu0 0.0
  %3481 = vmatmul.mubr.f32.gmra.mxu0 %v3122
  %v3482 = vpop.f32.mrf.mxu0
  %v3483 = vadd.f32 0.0, %v3482
  %v3484 = vpop.f32.mrf.mxu0
  %3485 = vmatprep.mubr.f32.mxu0 0.0
  %3486 = vmatmul.mubr.f32.gmra.mxu0 %v3130
  %v3487 = vpop.f32.mrf.mxu0
  %v3488 = vadd.f32 0.0, %v3487
  %v3489 = vpop.f32.mrf.mxu0
  %3490 = vmatprep.mubr.f32.mxu0 0.0
  %3491 = vmatmul.mubr.f32.gmra.mxu0 %v3138
  %v3492 = vpop.f32.mrf.mxu0
  %v3493 = vadd.f32 0.0, %v3492
  %v3494 = vpop.f32.mrf.mxu0
  %3495 = vmatprep.mubr.f32.mxu0 0.0
  %3496 = vmatmul.mubr.f32.gmra.mxu0 %v3146
  %v3497 = vpop.f32.mrf.mxu0
  %v3498 = vadd.f32 0.0, %v3497
  %v3499 = vpop.f32.mrf.mxu0
  %3500 = vdwg.mxu0
  %s3501 = scalar_lea.vmem %s6, 128
  %3502 = vst.msk [vmem:[%s3501] sm:$0xff] %vm3273, %v3463
  %3503 = vst.msk [vmem:[%s3501 + $0x8] sm:$0xff] %vm3273, %v3468
  %3504 = vst.msk [vmem:[%s3501 + $0x10] sm:$0xff] %vm3273, %v3473
  %3505 = vst.msk [vmem:[%s3501 + $0x18] sm:$0xff] %vm3273, %v3478
  %3506 = vst.msk [vmem:[%s3501 + $0x20] sm:$0xff] %vm3273, %v3483
  %3507 = vst.msk [vmem:[%s3501 + $0x28] sm:$0xff] %vm3273, %v3488
  %3508 = vst.msk [vmem:[%s3501 + $0x30] sm:$0xff] %vm3273, %v3493
  %3509 = vst.msk [vmem:[%s3501 + $0x38] sm:$0xff] %vm3273, %v3498
  %3510 = vmatprep.subr.mxu0 0.0
  %3511 = vmatpush1.msra.mxu0 %v3167
  %3512 = vmatprep.subr.mxu0 0.0
  %3513 = vmatpush1.msra.mxu0 %v3166
  %3514 = vmatprep.subr.mxu0 0.0
  %3515 = vmatpush1.msra.mxu0 %v3165
  %3516 = vmatprep.subr.mxu0 0.0
  %3517 = vmatpush1.msra.mxu0 %v3164
  %3518 = vmatprep.subr.mxu0 0.0
  %3519 = vmatpush1.msra.mxu0 %v3163
  %3520 = vmatprep.subr.mxu0 0.0
  %3521 = vmatpush1.msra.mxu0 %v3162
  %3522 = vmatprep.subr.mxu0 0.0
  %3523 = vmatpush1.msra.mxu0 %v3161
  %3524 = vmatprep.subr.mxu0 0.0
  %3525 = vmatpush1.msra.mxu0 %v3160
  %3526 = vmatprep.subr.mxu0 0.0
  %3527 = vmatpush1.msra.mxu0 %v3159
  %3528 = vmatprep.subr.mxu0 0.0
  %3529 = vmatpush1.msra.mxu0 %v3158
  %3530 = vmatprep.subr.mxu0 0.0
  %3531 = vmatpush1.msra.mxu0 %v3157
  %3532 = vmatprep.subr.mxu0 0.0
  %3533 = vmatpush1.msra.mxu0 %v3156
  %3534 = vmatprep.subr.mxu0 0.0
  %3535 = vmatpush1.msra.mxu0 %v3155
  %3536 = vmatprep.subr.mxu0 0.0
  %3537 = vmatpush1.msra.mxu0 %v3154
  %3538 = vmatprep.subr.mxu0 0.0
  %3539 = vmatpush1.msra.mxu0 %v3153
  %3540 = vmatprep.subr.mxu0 0.0
  %3541 = vmatpush1.msra.mxu0 %v3152
  %3542 = vmatprep.subr.mxu0 0.0
  %3543 = vmatpush2.msra.mxu0 0.0
  %3544 = vmatprep.subr.mxu0 0.0
  %3545 = vmatpush2.msra.mxu0 0.0
  %3546 = vmatprep.subr.mxu0 0.0
  %3547 = vmatpush2.msra.mxu0 0.0
  %3548 = vmatprep.subr.mxu0 0.0
  %3549 = vmatpush2.msra.mxu0 0.0
  %3550 = vmatprep.subr.mxu0 0.0
  %3551 = vmatpush2.msra.mxu0 0.0
  %3552 = vmatprep.subr.mxu0 0.0
  %3553 = vmatpush2.msra.mxu0 0.0
  %3554 = vmatprep.subr.mxu0 0.0
  %3555 = vmatpush2.msra.mxu0 0.0
  %3556 = vmatprep.subr.mxu0 0.0
  %3557 = vmatpush2.msra.mxu0 0.0
  %3558 = vmatprep.subr.mxu0 0.0
  %3559 = vmatpush2.msra.mxu0 0.0
  %3560 = vmatprep.subr.mxu0 0.0
  %3561 = vmatpush2.msra.mxu0 0.0
  %3562 = vmatprep.subr.mxu0 0.0
  %3563 = vmatpush2.msra.mxu0 0.0
  %3564 = vmatprep.subr.mxu0 0.0
  %3565 = vmatpush2.msra.mxu0 0.0
  %3566 = vmatprep.subr.mxu0 0.0
  %3567 = vmatpush2.msra.mxu0 0.0
  %3568 = vmatprep.subr.mxu0 0.0
  %3569 = vmatpush2.msra.mxu0 0.0
  %3570 = vmatprep.subr.mxu0 0.0
  %3571 = vmatpush2.msra.mxu0 0.0
  %3572 = vmatprep.subr.mxu0 0.0
  %3573 = vmatpush2.msra.mxu0 0.0
  %3574 = vmatprep.mubr.f32.mxu0 0.0
  %3575 = vmatmul.mubr.f32.gmra.mxu0 %v3091
  %v3576 = vpop.f32.mrf.mxu0
  %v3577 = vadd.f32 0.0, %v3576
  %v3578 = vpop.f32.mrf.mxu0
  %3579 = vmatprep.mubr.f32.mxu0 0.0
  %3580 = vmatmul.mubr.f32.gmra.mxu0 %v3099
  %v3581 = vpop.f32.mrf.mxu0
  %v3582 = vadd.f32 0.0, %v3581
  %v3583 = vpop.f32.mrf.mxu0
  %3584 = vmatprep.mubr.f32.mxu0 0.0
  %3585 = vmatmul.mubr.f32.gmra.mxu0 %v3107
  %v3586 = vpop.f32.mrf.mxu0
  %v3587 = vadd.f32 0.0, %v3586
  %v3588 = vpop.f32.mrf.mxu0
  %3589 = vmatprep.mubr.f32.mxu0 0.0
  %3590 = vmatmul.mubr.f32.gmra.mxu0 %v3115
  %v3591 = vpop.f32.mrf.mxu0
  %v3592 = vadd.f32 0.0, %v3591
  %v3593 = vpop.f32.mrf.mxu0
  %3594 = vmatprep.mubr.f32.mxu0 0.0
  %3595 = vmatmul.mubr.f32.gmra.mxu0 %v3123
  %v3596 = vpop.f32.mrf.mxu0
  %v3597 = vadd.f32 0.0, %v3596
  %v3598 = vpop.f32.mrf.mxu0
  %3599 = vmatprep.mubr.f32.mxu0 0.0
  %3600 = vmatmul.mubr.f32.gmra.mxu0 %v3131
  %v3601 = vpop.f32.mrf.mxu0
  %v3602 = vadd.f32 0.0, %v3601
  %v3603 = vpop.f32.mrf.mxu0
  %3604 = vmatprep.mubr.f32.mxu0 0.0
  %3605 = vmatmul.mubr.f32.gmra.mxu0 %v3139
  %v3606 = vpop.f32.mrf.mxu0
  %v3607 = vadd.f32 0.0, %v3606
  %v3608 = vpop.f32.mrf.mxu0
  %3609 = vmatprep.mubr.f32.mxu0 0.0
  %3610 = vmatmul.mubr.f32.gmra.mxu0 %v3147
  %v3611 = vpop.f32.mrf.mxu0
  %v3612 = vadd.f32 0.0, %v3611
  %v3613 = vpop.f32.mrf.mxu0
  %3614 = vdwg.mxu0
  %s3615 = scalar_lea.vmem %s6, 192
  %3616 = vst.msk [vmem:[%s3615] sm:$0xff] %vm3273, %v3577
  %3617 = vst.msk [vmem:[%s3615 + $0x8] sm:$0xff] %vm3273, %v3582
  %3618 = vst.msk [vmem:[%s3615 + $0x10] sm:$0xff] %vm3273, %v3587
  %3619 = vst.msk [vmem:[%s3615 + $0x18] sm:$0xff] %vm3273, %v3592
  %3620 = vst.msk [vmem:[%s3615 + $0x20] sm:$0xff] %vm3273, %v3597
  %3621 = vst.msk [vmem:[%s3615 + $0x28] sm:$0xff] %vm3273, %v3602
  %3622 = vst.msk [vmem:[%s3615 + $0x30] sm:$0xff] %vm3273, %v3607
  %3623 = vst.msk [vmem:[%s3615 + $0x38] sm:$0xff] %vm3273, %v3612
  %3624 = vmatprep.subr.mxu0 0.0
  %3625 = vmatpush1.msra.mxu0 %v3167
  %3626 = vmatprep.subr.mxu0 0.0
  %3627 = vmatpush1.msra.mxu0 %v3166
  %3628 = vmatprep.subr.mxu0 0.0
  %3629 = vmatpush1.msra.mxu0 %v3165
  %3630 = vmatprep.subr.mxu0 0.0
  %3631 = vmatpush1.msra.mxu0 %v3164
  %3632 = vmatprep.subr.mxu0 0.0
  %3633 = vmatpush1.msra.mxu0 %v3163
  %3634 = vmatprep.subr.mxu0 0.0
  %3635 = vmatpush1.msra.mxu0 %v3162
  %3636 = vmatprep.subr.mxu0 0.0
  %3637 = vmatpush1.msra.mxu0 %v3161
  %3638 = vmatprep.subr.mxu0 0.0
  %3639 = vmatpush1.msra.mxu0 %v3160
  %3640 = vmatprep.subr.mxu0 0.0
  %3641 = vmatpush1.msra.mxu0 %v3159
  %3642 = vmatprep.subr.mxu0 0.0
  %3643 = vmatpush1.msra.mxu0 %v3158
  %3644 = vmatprep.subr.mxu0 0.0
  %3645 = vmatpush1.msra.mxu0 %v3157
  %3646 = vmatprep.subr.mxu0 0.0
  %3647 = vmatpush1.msra.mxu0 %v3156
  %3648 = vmatprep.subr.mxu0 0.0
  %3649 = vmatpush1.msra.mxu0 %v3155
  %3650 = vmatprep.subr.mxu0 0.0
  %3651 = vmatpush1.msra.mxu0 %v3154
  %3652 = vmatprep.subr.mxu0 0.0
  %3653 = vmatpush1.msra.mxu0 %v3153
  %3654 = vmatprep.subr.mxu0 0.0
  %3655 = vmatpush1.msra.mxu0 %v3152
  %3656 = vmatprep.subr.mxu0 0.0
  %3657 = vmatpush2.msra.mxu0 0.0
  %3658 = vmatprep.subr.mxu0 0.0
  %3659 = vmatpush2.msra.mxu0 0.0
  %3660 = vmatprep.subr.mxu0 0.0
  %3661 = vmatpush2.msra.mxu0 0.0
  %3662 = vmatprep.subr.mxu0 0.0
  %3663 = vmatpush2.msra.mxu0 0.0
  %3664 = vmatprep.subr.mxu0 0.0
  %3665 = vmatpush2.msra.mxu0 0.0
  %3666 = vmatprep.subr.mxu0 0.0
  %3667 = vmatpush2.msra.mxu0 0.0
  %3668 = vmatprep.subr.mxu0 0.0
  %3669 = vmatpush2.msra.mxu0 0.0
  %3670 = vmatprep.subr.mxu0 0.0
  %3671 = vmatpush2.msra.mxu0 0.0
  %3672 = vmatprep.subr.mxu0 0.0
  %3673 = vmatpush2.msra.mxu0 0.0
  %3674 = vmatprep.subr.mxu0 0.0
  %3675 = vmatpush2.msra.mxu0 0.0
  %3676 = vmatprep.subr.mxu0 0.0
  %3677 = vmatpush2.msra.mxu0 0.0
  %3678 = vmatprep.subr.mxu0 0.0
  %3679 = vmatpush2.msra.mxu0 0.0
  %3680 = vmatprep.subr.mxu0 0.0
  %3681 = vmatpush2.msra.mxu0 0.0
  %3682 = vmatprep.subr.mxu0 0.0
  %3683 = vmatpush2.msra.mxu0 0.0
  %3684 = vmatprep.subr.mxu0 0.0
  %3685 = vmatpush2.msra.mxu0 0.0
  %3686 = vmatprep.subr.mxu0 0.0
  %3687 = vmatpush2.msra.mxu0 0.0
  %3688 = vmatprep.mubr.f32.mxu0 0.0
  %3689 = vmatmul.mubr.f32.gmra.mxu0 %v3092
  %v3690 = vpop.f32.mrf.mxu0
  %v3691 = vadd.f32 0.0, %v3690
  %v3692 = vpop.f32.mrf.mxu0
  %3693 = vmatprep.mubr.f32.mxu0 0.0
  %3694 = vmatmul.mubr.f32.gmra.mxu0 %v3100
  %v3695 = vpop.f32.mrf.mxu0
  %v3696 = vadd.f32 0.0, %v3695
  %v3697 = vpop.f32.mrf.mxu0
  %3698 = vmatprep.mubr.f32.mxu0 0.0
  %3699 = vmatmul.mubr.f32.gmra.mxu0 %v3108
  %v3700 = vpop.f32.mrf.mxu0
  %v3701 = vadd.f32 0.0, %v3700
  %v3702 = vpop.f32.mrf.mxu0
  %3703 = vmatprep.mubr.f32.mxu0 0.0
  %3704 = vmatmul.mubr.f32.gmra.mxu0 %v3116
  %v3705 = vpop.f32.mrf.mxu0
  %v3706 = vadd.f32 0.0, %v3705
  %v3707 = vpop.f32.mrf.mxu0
  %3708 = vmatprep.mubr.f32.mxu0 0.0
  %3709 = vmatmul.mubr.f32.gmra.mxu0 %v3124
  %v3710 = vpop.f32.mrf.mxu0
  %v3711 = vadd.f32 0.0, %v3710
  %v3712 = vpop.f32.mrf.mxu0
  %3713 = vmatprep.mubr.f32.mxu0 0.0
  %3714 = vmatmul.mubr.f32.gmra.mxu0 %v3132
  %v3715 = vpop.f32.mrf.mxu0
  %v3716 = vadd.f32 0.0, %v3715
  %v3717 = vpop.f32.mrf.mxu0
  %3718 = vmatprep.mubr.f32.mxu0 0.0
  %3719 = vmatmul.mubr.f32.gmra.mxu0 %v3140
  %v3720 = vpop.f32.mrf.mxu0
  %v3721 = vadd.f32 0.0, %v3720
  %v3722 = vpop.f32.mrf.mxu0
  %3723 = vmatprep.mubr.f32.mxu0 0.0
  %3724 = vmatmul.mubr.f32.gmra.mxu0 %v3148
  %v3725 = vpop.f32.mrf.mxu0
  %v3726 = vadd.f32 0.0, %v3725
  %v3727 = vpop.f32.mrf.mxu0
  %3728 = vdwg.mxu0
  %s3729 = scalar_lea.vmem %s6, 256
  %3730 = vst.msk [vmem:[%s3729] sm:$0xff] %vm3273, %v3691
  %3731 = vst.msk [vmem:[%s3729 + $0x8] sm:$0xff] %vm3273, %v3696
  %3732 = vst.msk [vmem:[%s3729 + $0x10] sm:$0xff] %vm3273, %v3701
  %3733 = vst.msk [vmem:[%s3729 + $0x18] sm:$0xff] %vm3273, %v3706
  %3734 = vst.msk [vmem:[%s3729 + $0x20] sm:$0xff] %vm3273, %v3711
  %3735 = vst.msk [vmem:[%s3729 + $0x28] sm:$0xff] %vm3273, %v3716
  %3736 = vst.msk [vmem:[%s3729 + $0x30] sm:$0xff] %vm3273, %v3721
  %3737 = vst.msk [vmem:[%s3729 + $0x38] sm:$0xff] %vm3273, %v3726
  %3738 = vmatprep.subr.mxu0 0.0
  %3739 = vmatpush1.msra.mxu0 %v3167
  %3740 = vmatprep.subr.mxu0 0.0
  %3741 = vmatpush1.msra.mxu0 %v3166
  %3742 = vmatprep.subr.mxu0 0.0
  %3743 = vmatpush1.msra.mxu0 %v3165
  %3744 = vmatprep.subr.mxu0 0.0
  %3745 = vmatpush1.msra.mxu0 %v3164
  %3746 = vmatprep.subr.mxu0 0.0
  %3747 = vmatpush1.msra.mxu0 %v3163
  %3748 = vmatprep.subr.mxu0 0.0
  %3749 = vmatpush1.msra.mxu0 %v3162
  %3750 = vmatprep.subr.mxu0 0.0
  %3751 = vmatpush1.msra.mxu0 %v3161
  %3752 = vmatprep.subr.mxu0 0.0
  %3753 = vmatpush1.msra.mxu0 %v3160
  %3754 = vmatprep.subr.mxu0 0.0
  %3755 = vmatpush1.msra.mxu0 %v3159
  %3756 = vmatprep.subr.mxu0 0.0
  %3757 = vmatpush1.msra.mxu0 %v3158
  %3758 = vmatprep.subr.mxu0 0.0
  %3759 = vmatpush1.msra.mxu0 %v3157
  %3760 = vmatprep.subr.mxu0 0.0
  %3761 = vmatpush1.msra.mxu0 %v3156
  %3762 = vmatprep.subr.mxu0 0.0
  %3763 = vmatpush1.msra.mxu0 %v3155
  %3764 = vmatprep.subr.mxu0 0.0
  %3765 = vmatpush1.msra.mxu0 %v3154
  %3766 = vmatprep.subr.mxu0 0.0
  %3767 = vmatpush1.msra.mxu0 %v3153
  %3768 = vmatprep.subr.mxu0 0.0
  %3769 = vmatpush1.msra.mxu0 %v3152
  %3770 = vmatprep.subr.mxu0 0.0
  %3771 = vmatpush2.msra.mxu0 0.0
  %3772 = vmatprep.subr.mxu0 0.0
  %3773 = vmatpush2.msra.mxu0 0.0
  %3774 = vmatprep.subr.mxu0 0.0
  %3775 = vmatpush2.msra.mxu0 0.0
  %3776 = vmatprep.subr.mxu0 0.0
  %3777 = vmatpush2.msra.mxu0 0.0
  %3778 = vmatprep.subr.mxu0 0.0
  %3779 = vmatpush2.msra.mxu0 0.0
  %3780 = vmatprep.subr.mxu0 0.0
  %3781 = vmatpush2.msra.mxu0 0.0
  %3782 = vmatprep.subr.mxu0 0.0
  %3783 = vmatpush2.msra.mxu0 0.0
  %3784 = vmatprep.subr.mxu0 0.0
  %3785 = vmatpush2.msra.mxu0 0.0
  %3786 = vmatprep.subr.mxu0 0.0
  %3787 = vmatpush2.msra.mxu0 0.0
  %3788 = vmatprep.subr.mxu0 0.0
  %3789 = vmatpush2.msra.mxu0 0.0
  %3790 = vmatprep.subr.mxu0 0.0
  %3791 = vmatpush2.msra.mxu0 0.0
  %3792 = vmatprep.subr.mxu0 0.0
  %3793 = vmatpush2.msra.mxu0 0.0
  %3794 = vmatprep.subr.mxu0 0.0
  %3795 = vmatpush2.msra.mxu0 0.0
  %3796 = vmatprep.subr.mxu0 0.0
  %3797 = vmatpush2.msra.mxu0 0.0
  %3798 = vmatprep.subr.mxu0 0.0
  %3799 = vmatpush2.msra.mxu0 0.0
  %3800 = vmatprep.subr.mxu0 0.0
  %3801 = vmatpush2.msra.mxu0 0.0
  %3802 = vmatprep.mubr.f32.mxu0 0.0
  %3803 = vmatmul.mubr.f32.gmra.mxu0 %v3093
  %v3804 = vpop.f32.mrf.mxu0
  %v3805 = vadd.f32 0.0, %v3804
  %v3806 = vpop.f32.mrf.mxu0
  %3807 = vmatprep.mubr.f32.mxu0 0.0
  %3808 = vmatmul.mubr.f32.gmra.mxu0 %v3101
  %v3809 = vpop.f32.mrf.mxu0
  %v3810 = vadd.f32 0.0, %v3809
  %v3811 = vpop.f32.mrf.mxu0
  %3812 = vmatprep.mubr.f32.mxu0 0.0
  %3813 = vmatmul.mubr.f32.gmra.mxu0 %v3109
  %v3814 = vpop.f32.mrf.mxu0
  %v3815 = vadd.f32 0.0, %v3814
  %v3816 = vpop.f32.mrf.mxu0
  %3817 = vmatprep.mubr.f32.mxu0 0.0
  %3818 = vmatmul.mubr.f32.gmra.mxu0 %v3117
  %v3819 = vpop.f32.mrf.mxu0
  %v3820 = vadd.f32 0.0, %v3819
  %v3821 = vpop.f32.mrf.mxu0
  %3822 = vmatprep.mubr.f32.mxu0 0.0
  %3823 = vmatmul.mubr.f32.gmra.mxu0 %v3125
  %v3824 = vpop.f32.mrf.mxu0
  %v3825 = vadd.f32 0.0, %v3824
  %v3826 = vpop.f32.mrf.mxu0
  %3827 = vmatprep.mubr.f32.mxu0 0.0
  %3828 = vmatmul.mubr.f32.gmra.mxu0 %v3133
  %v3829 = vpop.f32.mrf.mxu0
  %v3830 = vadd.f32 0.0, %v3829
  %v3831 = vpop.f32.mrf.mxu0
  %3832 = vmatprep.mubr.f32.mxu0 0.0
  %3833 = vmatmul.mubr.f32.gmra.mxu0 %v3141
  %v3834 = vpop.f32.mrf.mxu0
  %v3835 = vadd.f32 0.0, %v3834
  %v3836 = vpop.f32.mrf.mxu0
  %3837 = vmatprep.mubr.f32.mxu0 0.0
  %3838 = vmatmul.mubr.f32.gmra.mxu0 %v3149
  %v3839 = vpop.f32.mrf.mxu0
  %v3840 = vadd.f32 0.0, %v3839
  %v3841 = vpop.f32.mrf.mxu0
  %3842 = vdwg.mxu0
  %s3843 = scalar_lea.vmem %s6, 320
  %3844 = vst.msk [vmem:[%s3843] sm:$0xff] %vm3273, %v3805
  %3845 = vst.msk [vmem:[%s3843 + $0x8] sm:$0xff] %vm3273, %v3810
  %3846 = vst.msk [vmem:[%s3843 + $0x10] sm:$0xff] %vm3273, %v3815
  %3847 = vst.msk [vmem:[%s3843 + $0x18] sm:$0xff] %vm3273, %v3820
  %3848 = vst.msk [vmem:[%s3843 + $0x20] sm:$0xff] %vm3273, %v3825
  %3849 = vst.msk [vmem:[%s3843 + $0x28] sm:$0xff] %vm3273, %v3830
  %3850 = vst.msk [vmem:[%s3843 + $0x30] sm:$0xff] %vm3273, %v3835
  %3851 = vst.msk [vmem:[%s3843 + $0x38] sm:$0xff] %vm3273, %v3840
  %3852 = vmatprep.subr.mxu0 0.0
  %3853 = vmatpush1.msra.mxu0 %v3167
  %3854 = vmatprep.subr.mxu0 0.0
  %3855 = vmatpush1.msra.mxu0 %v3166
  %3856 = vmatprep.subr.mxu0 0.0
  %3857 = vmatpush1.msra.mxu0 %v3165
  %3858 = vmatprep.subr.mxu0 0.0
  %3859 = vmatpush1.msra.mxu0 %v3164
  %3860 = vmatprep.subr.mxu0 0.0
  %3861 = vmatpush1.msra.mxu0 %v3163
  %3862 = vmatprep.subr.mxu0 0.0
  %3863 = vmatpush1.msra.mxu0 %v3162
  %3864 = vmatprep.subr.mxu0 0.0
  %3865 = vmatpush1.msra.mxu0 %v3161
  %3866 = vmatprep.subr.mxu0 0.0
  %3867 = vmatpush1.msra.mxu0 %v3160
  %3868 = vmatprep.subr.mxu0 0.0
  %3869 = vmatpush1.msra.mxu0 %v3159
  %3870 = vmatprep.subr.mxu0 0.0
  %3871 = vmatpush1.msra.mxu0 %v3158
  %3872 = vmatprep.subr.mxu0 0.0
  %3873 = vmatpush1.msra.mxu0 %v3157
  %3874 = vmatprep.subr.mxu0 0.0
  %3875 = vmatpush1.msra.mxu0 %v3156
  %3876 = vmatprep.subr.mxu0 0.0
  %3877 = vmatpush1.msra.mxu0 %v3155
  %3878 = vmatprep.subr.mxu0 0.0
  %3879 = vmatpush1.msra.mxu0 %v3154
  %3880 = vmatprep.subr.mxu0 0.0
  %3881 = vmatpush1.msra.mxu0 %v3153
  %3882 = vmatprep.subr.mxu0 0.0
  %3883 = vmatpush1.msra.mxu0 %v3152
  %3884 = vmatprep.subr.mxu0 0.0
  %3885 = vmatpush2.msra.mxu0 0.0
  %3886 = vmatprep.subr.mxu0 0.0
  %3887 = vmatpush2.msra.mxu0 0.0
  %3888 = vmatprep.subr.mxu0 0.0
  %3889 = vmatpush2.msra.mxu0 0.0
  %3890 = vmatprep.subr.mxu0 0.0
  %3891 = vmatpush2.msra.mxu0 0.0
  %3892 = vmatprep.subr.mxu0 0.0
  %3893 = vmatpush2.msra.mxu0 0.0
  %3894 = vmatprep.subr.mxu0 0.0
  %3895 = vmatpush2.msra.mxu0 0.0
  %3896 = vmatprep.subr.mxu0 0.0
  %3897 = vmatpush2.msra.mxu0 0.0
  %3898 = vmatprep.subr.mxu0 0.0
  %3899 = vmatpush2.msra.mxu0 0.0
  %3900 = vmatprep.subr.mxu0 0.0
  %3901 = vmatpush2.msra.mxu0 0.0
  %3902 = vmatprep.subr.mxu0 0.0
  %3903 = vmatpush2.msra.mxu0 0.0
  %3904 = vmatprep.subr.mxu0 0.0
  %3905 = vmatpush2.msra.mxu0 0.0
  %3906 = vmatprep.subr.mxu0 0.0
  %3907 = vmatpush2.msra.mxu0 0.0
  %3908 = vmatprep.subr.mxu0 0.0
  %3909 = vmatpush2.msra.mxu0 0.0
  %3910 = vmatprep.subr.mxu0 0.0
  %3911 = vmatpush2.msra.mxu0 0.0
  %3912 = vmatprep.subr.mxu0 0.0
  %3913 = vmatpush2.msra.mxu0 0.0
  %3914 = vmatprep.subr.mxu0 0.0
  %3915 = vmatpush2.msra.mxu0 0.0
  %3916 = vmatprep.mubr.f32.mxu0 0.0
  %3917 = vmatmul.mubr.f32.gmra.mxu0 %v3094
  %v3918 = vpop.f32.mrf.mxu0
  %v3919 = vadd.f32 0.0, %v3918
  %v3920 = vpop.f32.mrf.mxu0
  %3921 = vmatprep.mubr.f32.mxu0 0.0
  %3922 = vmatmul.mubr.f32.gmra.mxu0 %v3102
  %v3923 = vpop.f32.mrf.mxu0
  %v3924 = vadd.f32 0.0, %v3923
  %v3925 = vpop.f32.mrf.mxu0
  %3926 = vmatprep.mubr.f32.mxu0 0.0
  %3927 = vmatmul.mubr.f32.gmra.mxu0 %v3110
  %v3928 = vpop.f32.mrf.mxu0
  %v3929 = vadd.f32 0.0, %v3928
  %v3930 = vpop.f32.mrf.mxu0
  %3931 = vmatprep.mubr.f32.mxu0 0.0
  %3932 = vmatmul.mubr.f32.gmra.mxu0 %v3118
  %v3933 = vpop.f32.mrf.mxu0
  %v3934 = vadd.f32 0.0, %v3933
  %v3935 = vpop.f32.mrf.mxu0
  %3936 = vmatprep.mubr.f32.mxu0 0.0
  %3937 = vmatmul.mubr.f32.gmra.mxu0 %v3126
  %v3938 = vpop.f32.mrf.mxu0
  %v3939 = vadd.f32 0.0, %v3938
  %v3940 = vpop.f32.mrf.mxu0
  %3941 = vmatprep.mubr.f32.mxu0 0.0
  %3942 = vmatmul.mubr.f32.gmra.mxu0 %v3134
  %v3943 = vpop.f32.mrf.mxu0
  %v3944 = vadd.f32 0.0, %v3943
  %v3945 = vpop.f32.mrf.mxu0
  %3946 = vmatprep.mubr.f32.mxu0 0.0
  %3947 = vmatmul.mubr.f32.gmra.mxu0 %v3142
  %v3948 = vpop.f32.mrf.mxu0
  %v3949 = vadd.f32 0.0, %v3948
  %v3950 = vpop.f32.mrf.mxu0
  %3951 = vmatprep.mubr.f32.mxu0 0.0
  %3952 = vmatmul.mubr.f32.gmra.mxu0 %v3150
  %v3953 = vpop.f32.mrf.mxu0
  %v3954 = vadd.f32 0.0, %v3953
  %v3955 = vpop.f32.mrf.mxu0
  %3956 = vdwg.mxu0
  %s3957 = scalar_lea.vmem %s6, 384
  %3958 = vst.msk [vmem:[%s3957] sm:$0xff] %vm3273, %v3919
  %3959 = vst.msk [vmem:[%s3957 + $0x8] sm:$0xff] %vm3273, %v3924
  %3960 = vst.msk [vmem:[%s3957 + $0x10] sm:$0xff] %vm3273, %v3929
  %3961 = vst.msk [vmem:[%s3957 + $0x18] sm:$0xff] %vm3273, %v3934
  %3962 = vst.msk [vmem:[%s3957 + $0x20] sm:$0xff] %vm3273, %v3939
  %3963 = vst.msk [vmem:[%s3957 + $0x28] sm:$0xff] %vm3273, %v3944
  %3964 = vst.msk [vmem:[%s3957 + $0x30] sm:$0xff] %vm3273, %v3949
  %3965 = vst.msk [vmem:[%s3957 + $0x38] sm:$0xff] %vm3273, %v3954
  %3966 = vmatprep.subr.mxu0 0.0
  %3967 = vmatpush1.msra.mxu0 %v3167
  %3968 = vmatprep.subr.mxu0 0.0
  %3969 = vmatpush1.msra.mxu0 %v3166
  %3970 = vmatprep.subr.mxu0 0.0
  %3971 = vmatpush1.msra.mxu0 %v3165
  %3972 = vmatprep.subr.mxu0 0.0
  %3973 = vmatpush1.msra.mxu0 %v3164
  %3974 = vmatprep.subr.mxu0 0.0
  %3975 = vmatpush1.msra.mxu0 %v3163
  %3976 = vmatprep.subr.mxu0 0.0
  %3977 = vmatpush1.msra.mxu0 %v3162
  %3978 = vmatprep.subr.mxu0 0.0
  %3979 = vmatpush1.msra.mxu0 %v3161
  %3980 = vmatprep.subr.mxu0 0.0
  %3981 = vmatpush1.msra.mxu0 %v3160
  %3982 = vmatprep.subr.mxu0 0.0
  %3983 = vmatpush1.msra.mxu0 %v3159
  %3984 = vmatprep.subr.mxu0 0.0
  %3985 = vmatpush1.msra.mxu0 %v3158
  %3986 = vmatprep.subr.mxu0 0.0
  %3987 = vmatpush1.msra.mxu0 %v3157
  %3988 = vmatprep.subr.mxu0 0.0
  %3989 = vmatpush1.msra.mxu0 %v3156
  %3990 = vmatprep.subr.mxu0 0.0
  %3991 = vmatpush1.msra.mxu0 %v3155
  %3992 = vmatprep.subr.mxu0 0.0
  %3993 = vmatpush1.msra.mxu0 %v3154
  %3994 = vmatprep.subr.mxu0 0.0
  %3995 = vmatpush1.msra.mxu0 %v3153
  %3996 = vmatprep.subr.mxu0 0.0
  %3997 = vmatpush1.msra.mxu0 %v3152
  %3998 = vmatprep.subr.mxu0 0.0
  %3999 = vmatpush2.msra.mxu0 0.0
  %4000 = vmatprep.subr.mxu0 0.0
  %4001 = vmatpush2.msra.mxu0 0.0
  %4002 = vmatprep.subr.mxu0 0.0
  %4003 = vmatpush2.msra.mxu0 0.0
  %4004 = vmatprep.subr.mxu0 0.0
  %4005 = vmatpush2.msra.mxu0 0.0
  %4006 = vmatprep.subr.mxu0 0.0
  %4007 = vmatpush2.msra.mxu0 0.0
  %4008 = vmatprep.subr.mxu0 0.0
  %4009 = vmatpush2.msra.mxu0 0.0
  %4010 = vmatprep.subr.mxu0 0.0
  %4011 = vmatpush2.msra.mxu0 0.0
  %4012 = vmatprep.subr.mxu0 0.0
  %4013 = vmatpush2.msra.mxu0 0.0
  %4014 = vmatprep.subr.mxu0 0.0
  %4015 = vmatpush2.msra.mxu0 0.0
  %4016 = vmatprep.subr.mxu0 0.0
  %4017 = vmatpush2.msra.mxu0 0.0
  %4018 = vmatprep.subr.mxu0 0.0
  %4019 = vmatpush2.msra.mxu0 0.0
  %4020 = vmatprep.subr.mxu0 0.0
  %4021 = vmatpush2.msra.mxu0 0.0
  %4022 = vmatprep.subr.mxu0 0.0
  %4023 = vmatpush2.msra.mxu0 0.0
  %4024 = vmatprep.subr.mxu0 0.0
  %4025 = vmatpush2.msra.mxu0 0.0
  %4026 = vmatprep.subr.mxu0 0.0
  %4027 = vmatpush2.msra.mxu0 0.0
  %4028 = vmatprep.subr.mxu0 0.0
  %4029 = vmatpush2.msra.mxu0 0.0
  %4030 = vmatprep.mubr.f32.mxu0 0.0
  %4031 = vmatmul.mubr.f32.gmra.mxu0 %v3095
  %v4032 = vpop.f32.mrf.mxu0
  %v4033 = vadd.f32 0.0, %v4032
  %v4034 = vpop.f32.mrf.mxu0
  %4035 = vmatprep.mubr.f32.mxu0 0.0
  %4036 = vmatmul.mubr.f32.gmra.mxu0 %v3103
  %v4037 = vpop.f32.mrf.mxu0
  %v4038 = vadd.f32 0.0, %v4037
  %v4039 = vpop.f32.mrf.mxu0
  %4040 = vmatprep.mubr.f32.mxu0 0.0
  %4041 = vmatmul.mubr.f32.gmra.mxu0 %v3111
  %v4042 = vpop.f32.mrf.mxu0
  %v4043 = vadd.f32 0.0, %v4042
  %v4044 = vpop.f32.mrf.mxu0
  %4045 = vmatprep.mubr.f32.mxu0 0.0
  %4046 = vmatmul.mubr.f32.gmra.mxu0 %v3119
  %v4047 = vpop.f32.mrf.mxu0
  %v4048 = vadd.f32 0.0, %v4047
  %v4049 = vpop.f32.mrf.mxu0
  %4050 = vmatprep.mubr.f32.mxu0 0.0
  %4051 = vmatmul.mubr.f32.gmra.mxu0 %v3127
  %v4052 = vpop.f32.mrf.mxu0
  %v4053 = vadd.f32 0.0, %v4052
  %v4054 = vpop.f32.mrf.mxu0
  %4055 = vmatprep.mubr.f32.mxu0 0.0
  %4056 = vmatmul.mubr.f32.gmra.mxu0 %v3135
  %v4057 = vpop.f32.mrf.mxu0
  %v4058 = vadd.f32 0.0, %v4057
  %v4059 = vpop.f32.mrf.mxu0
  %4060 = vmatprep.mubr.f32.mxu0 0.0
  %4061 = vmatmul.mubr.f32.gmra.mxu0 %v3143
  %v4062 = vpop.f32.mrf.mxu0
  %v4063 = vadd.f32 0.0, %v4062
  %v4064 = vpop.f32.mrf.mxu0
  %4065 = vmatprep.mubr.f32.mxu0 0.0
  %4066 = vmatmul.mubr.f32.gmra.mxu0 %v3151
  %v4067 = vpop.f32.mrf.mxu0
  %v4068 = vadd.f32 0.0, %v4067
  %v4069 = vpop.f32.mrf.mxu0
  %4070 = vdwg.mxu0
  %s4071 = scalar_lea.vmem %s6, 448
  %4072 = vst.msk [vmem:[%s4071] sm:$0xff] %vm3273, %v4033
  %4073 = vst.msk [vmem:[%s4071 + $0x8] sm:$0xff] %vm3273, %v4038
  %4074 = vst.msk [vmem:[%s4071 + $0x10] sm:$0xff] %vm3273, %v4043
  %4075 = vst.msk [vmem:[%s4071 + $0x18] sm:$0xff] %vm3273, %v4048
  %4076 = vst.msk [vmem:[%s4071 + $0x20] sm:$0xff] %vm3273, %v4053
  %4077 = vst.msk [vmem:[%s4071 + $0x28] sm:$0xff] %vm3273, %v4058
  %4078 = vst.msk [vmem:[%s4071 + $0x30] sm:$0xff] %vm3273, %v4063
  %4079 = vst.msk [vmem:[%s4071 + $0x38] sm:$0xff] %vm3273, %v4068
  // Predicated region
  $region26: #{tpu_custom_call.1} parent=0 // pred_check
    _
  $region27: #{tpu_custom_call.1} parent=0 // pred_check_branch
    %4081 = sbr.rel (0) target = $region29
  $region28: #{tpu_custom_call.1} parent=0 // pred_region
    _
  $region29: #{tpu_custom_call.1} parent=0 // pred_fallthru
    _
  // Predicated region
  $region30: #{tpu_custom_call.1} parent=0 // pred_check
    _
  $region31: #{tpu_custom_call.1} parent=0 // pred_check_branch
    %4083 = sbr.rel (0) target = $region33
  $region32: #{tpu_custom_call.1} parent=0 // pred_region
    _
  $region33: #{tpu_custom_call.1} parent=0 // pred_fallthru
    _

</llo_original>
